<compile_context>
chip_gen: v5e
topology: v5e:2x2
jax: 0.10.0
libtpu: 0.0.40
codegen_flags: <defaults>
</compile_context>

<pallas_src>
import functools

import numpy as np
import jax
import jax.numpy as jnp
from jax import lax
from jax.experimental import pallas as pl
from jax.experimental.pallas import tpu as pltpu

EPS = 1e-5
NEG_SLOPE = 0.1
K3 = 3            # Conv3d kernel size (3x3x3), padding=1 throughout the module
NTAP = K3 ** 3    # 27 taps


def _round_up(x, m):
    return ((x + m - 1) // m) * m


def _tap_groups(c):
    """Partition the 27 taps into lane-dense groups of 128 // c taps each."""
    g = max(1, 128 // c)
    return [list(range(i, min(i + g, NTAP))) for i in range(0, NTAP, g)]


# ---------------------------------------------------------------------------
# host-side glue (trace-time constants + plain-JAX im2col for the first conv)
# ---------------------------------------------------------------------------
def _stride1_tap_masks(s):
    """(S^3, 27) f32 0/1 masks: mask[p, t] = 1 iff tap t of a pad-1 3x3x3
    stride-1 conv at output voxel p reads an in-bounds input voxel."""
    p_tot = s ** 3
    m = np.zeros((p_tot, NTAP), np.float32)
    for d in range(s):
        for h in range(s):
            for w in range(s):
                p = (d * s + h) * s + w
                for kd in range(K3):
                    for kh in range(K3):
                        for kw in range(K3):
                            t = (kd * K3 + kh) * K3 + kw
                            if (0 <= d + kd - 1 < s and 0 <= h + kh - 1 < s
                                    and 0 <= w + kw - 1 < s):
                                m[p, t] = 1.0
    return m


def _im2col_3d(x, stride):
    """pad=1 / k=3 im2col: (N,D,H,W,C) -> (N, Do*Ho*Wo, 27*C); K ordered
    (kd, kh, kw, c) to match w.reshape(27*C, Cout)."""
    n, d, h, w, c = x.shape
    do = (d + 2 - K3) // stride + 1
    ho = (h + 2 - K3) // stride + 1
    wo = (w + 2 - K3) // stride + 1
    xp = jnp.pad(x, ((0, 0), (1, 1), (1, 1), (1, 1), (0, 0)))
    cols = []
    for kd in range(K3):
        for kh in range(K3):
            for kw in range(K3):
                cols.append(xp[:,
                               kd:kd + stride * (do - 1) + 1:stride,
                               kh:kh + stride * (ho - 1) + 1:stride,
                               kw:kw + stride * (wo - 1) + 1:stride, :])
    patches = jnp.stack(cols, axis=-2)                      # (N,Do,Ho,Wo,27,C)
    return patches.reshape(n, do * ho * wo, NTAP * c)


def _pack_affine(layer_params, cmax):
    """gamma/beta of all layers -> one (2*L, cmax) f32 array:
    row 2l = gamma_l, row 2l+1 = beta_l, zero-padded on the channel axis."""
    rows = []
    for p in layer_params:
        c = p["gamma"].shape[0]
        rows.append(jnp.pad(p["gamma"].astype(jnp.float32), (0, cmax - c)))
        rows.append(jnp.pad(p["beta"].astype(jnp.float32), (0, cmax - c)))
    return jnp.stack(rows, axis=0)


# ---------------------------------------------------------------------------
# fused DeepEncoder forward (single pallas_call)
# ---------------------------------------------------------------------------
def deep_encoder_forward(x4, params, strides):
    """x4: (N, D, H, W, Cin) f32, NDHWC.  Returns (x6, x5), both NDHWC."""
    N, D, H, W, C0 = x4.shape
    assert D == H == W, "cubic volumes assumed in this toy config"
    p51, p52 = params["conv5"]
    p61, p62 = params["conv6"]
    for p in (p51, p52, p61, p62):
        assert p["w"].shape[0] == K3
    C5 = p51["w"].shape[-1]
    C6 = p61["w"].shape[-1]
    s5, s6 = int(strides[4]), int(strides[5])

    S1 = (D + 2 - K3) // s5 + 1          # spatial side of x5
    S2 = (S1 + 2 - K3) // s6 + 1         # spatial side of x6
    P5, P6 = S1 ** 3, S2 ** 3
    HALO_A = _round_up(S1 * S1 + S1 + 1, 8)   # flat-row halo for 3^3 taps, S1 grid
    HALO_B = _round_up(S2 * S2 + S2 + 1, 8)
    K1, KA, KB = NTAP * C0, NTAP * C5, NTAP * C6
    KMAX = max(KA, KB)
    CMAX = max(C5, C6)

    # host glue: im2col only for conv5.conv1 (its input lives in HBM); bf16 MXU input
    # TODO(synk): move on-chip at real SDF volumes (27x HBM traffic inflation).
    patches1 = _im2col_3d(x4.astype(jnp.bfloat16), stride=s5)      # (N, P5, K1)

    # weights -> (K, Cout) bf16 MXU inputs.  Conv bias is dropped on purpose:
    # InstanceNorm's mean subtraction cancels a per-channel constant exactly.
    w1 = p51["w"].reshape(K1, C5).astype(jnp.bfloat16)
    w2 = p52["w"].reshape(KA, C5).astype(jnp.bfloat16)
    w3 = p61["w"].reshape(KA, C6).astype(jnp.bfloat16)
    w4 = p62["w"].reshape(KB, C6).astype(jnp.bfloat16)

    gb = _pack_affine((p51, p52, p61, p62), CMAX)                  # (8, CMAX) f32

    # boundary masks, pre-expanded to the patch column layout (t*C + c)
    mAe = jnp.asarray(np.repeat(_stride1_tap_masks(S1), C5, axis=1))   # (P5, KA)
    mBe = jnp.asarray(np.repeat(_stride1_tap_masks(S2), C6, axis=1))   # (P6, KB)

    # constant 0/1 selection matrix picking the stride-s6 rows of the
    # full-resolution stride-1 conv output (conv6.conv1).
    sel_np = np.zeros((P6, P5), np.float32)
    q = 0
    for d in range(S2):
        for h in range(S2):
            for w in range(S2):
                sel_np[q, ((d * s6) * S1 + h * s6) * S1 + w * s6] = 1.0
                q += 1
    sel = jnp.asarray(sel_np)                                      # (P6, P5) f32

    def kernel(p1_ref, w1_ref, w2_ref, w3_ref, w4_ref, gb_ref, mAe_ref, mBe_ref,
               sel_ref, x5_ref, x6_ref, xpad_a, xpad_b, patch_s):

        # Zero only the halo rows, once per grid step (the interior is fully
        # overwritten by every conv_stride1 call; halos stay zero afterwards).
        xpad_a[0:HALO_A, :] = jnp.zeros((HALO_A, C5), jnp.float32)
        xpad_a[HALO_A + P5:HALO_A + P5 + HALO_A, :] = jnp.zeros((HALO_A, C5), jnp.float32)
        xpad_b[0:HALO_B, :] = jnp.zeros((HALO_B, C6), jnp.float32)
        xpad_b[HALO_B + P6:HALO_B + P6 + HALO_B, :] = jnp.zeros((HALO_B, C6), jnp.float32)

        def inorm_act(y, l, c):
            # InstanceNorm3d(affine) + LeakyReLU(0.1); affine folded into a
            # single y*s + t pass; all statistics in f32; rsqrt on the EUP.
            g = gb_ref[2 * l:2 * l + 1, 0:c]                       # (1, c)
            b = gb_ref[2 * l + 1:2 * l + 2, 0:c]                   # (1, c)
            mu = jnp.mean(y, axis=0, keepdims=True)
            var = jnp.mean((y - mu) * (y - mu), axis=0, keepdims=True)
            s = g * lax.rsqrt(var + EPS)
            t = b - mu * s
            yn = y * s + t
            return jnp.where(yn >= 0.0, yn, NEG_SLOPE * yn)

        def conv_stride1(x2d, xpad_ref, mexp_ref, w_ref, P, C, S, halo):
            # pad=1 / k=3 / stride=1 conv of a flattened (P=S^3, C) activation:
            # 27 shifted row slices of a zero-haloed flat copy, masked with a
            # precomputed 0/1 boundary mask, are grouped into lane-dense
            # 128-wide column groups and written (bf16) into the im2col patch
            # scratch -> one bf16 MXU matmul with f32 accumulation.
            xpad_ref[halo:halo + P, :] = x2d
            for taps in _tap_groups(C):
                slabs = []
                for t in taps:
                    kd, kh, kw = t // 9, (t // 3) % 3, t % 3
                    off = (kd - 1) * S * S + (kh - 1) * S + (kw - 1)
                    slabs.append(xpad_ref[halo + off:halo + off + P, :])
                grp = slabs[0] if len(slabs) == 1 else jnp.concatenate(slabs, axis=-1)
                c0 = taps[0] * C
                c1 = c0 + len(taps) * C
                patch_s[0:P, c0:c1] = (grp * mexp_ref[0:P, c0:c1]).astype(jnp.bfloat16)
            patch = patch_s[0:P, 0:NTAP * C]                       # bf16
            return jnp.dot(patch, w_ref[...], preferred_element_type=jnp.float32)

        # ---- conv5.conv1 (stride s5): host im2col patches -> one MXU matmul
        y1 = jnp.dot(p1_ref[0], w1_ref[...], preferred_element_type=jnp.float32)
        a1 = inorm_act(y1, 0, C5)                                  # (P5, C5)

        # ---- conv5.conv2 (stride 1): on-chip im2col
        y2 = conv_stride1(a1, xpad_a, mAe_ref, w2_ref, P5, C5, S1, HALO_A)
        x5 = inorm_act(y2, 1, C5)                                  # (P5, C5)
        x5_ref[0] = x5

        # ---- conv6.conv1 (stride s6): same stride-1 patch build as above,
        #      then pick the stride-s6 rows with a constant 0/1 selection
        #      matmul on the MXU (exact; no sublane gathers).
        y3f = conv_stride1(x5, xpad_a, mAe_ref, w3_ref, P5, C5, S1, HALO_A)
        y3 = jnp.dot(sel_ref[...], y3f, preferred_element_type=jnp.float32)   # (P6, C6)
        a3 = inorm_act(y3, 2, C6)                                  # (P6, C6)

        # ---- conv6.conv2 (stride 1)
        y4 = conv_stride1(a3, xpad_b, mBe_ref, w4_ref, P6, C6, S2, HALO_B)
        x6_ref[0] = inorm_act(y4, 3, C6)                           # (P6, C6)

    x5_flat, x6_flat = pl.pallas_call(
        kernel,
        out_shape=(jax.ShapeDtypeStruct((N, P5, C5), jnp.float32),
                   jax.ShapeDtypeStruct((N, P6, C6), jnp.float32)),
        grid_spec=pltpu.PrefetchScalarGridSpec(
            num_scalar_prefetch=0,
            grid=(N,),
            in_specs=[
                pl.BlockSpec((1, P5, K1), lambda n: (n, 0, 0)),    # x4 patches
                pl.BlockSpec((K1, C5), lambda n: (0, 0)),          # w1
                pl.BlockSpec((KA, C5), lambda n: (0, 0)),          # w2
                pl.BlockSpec((KA, C6), lambda n: (0, 0)),          # w3
                pl.BlockSpec((KB, C6), lambda n: (0, 0)),          # w4
                pl.BlockSpec((8, CMAX), lambda n: (0, 0)),         # gamma/beta
                pl.BlockSpec((P5, KA), lambda n: (0, 0)),          # expanded masks, S1
                pl.BlockSpec((P6, KB), lambda n: (0, 0)),          # expanded masks, S2
                pl.BlockSpec((P6, P5), lambda n: (0, 0)),          # stride-2 selector
            ],
            out_specs=(
                pl.BlockSpec((1, P5, C5), lambda n: (n, 0, 0)),    # x5
                pl.BlockSpec((1, P6, C6), lambda n: (n, 0, 0)),    # x6
            ),
            scratch_shapes=[
                pltpu.VMEM((P5 + 2 * HALO_A, C5), jnp.float32),    # zero-haloed act (L2/L3)
                pltpu.VMEM((P6 + 2 * HALO_B, C6), jnp.float32),    # zero-haloed act (L4)
                pltpu.VMEM((P5, KMAX), jnp.bfloat16),              # shared bf16 im2col patch
            ]),
        compiler_params=pltpu.CompilerParams(
            dimension_semantics=("parallel",),   # N=2 -> both v7x TensorCores
        ),
    )(patches1, w1, w2, w3, w4, gb, mAe, mBe, sel)

    x5 = x5_flat.reshape(N, S1, S1, S1, C5)
    x6 = x6_flat.reshape(N, S2, S2, S2, C6)
    return x6, x5


# ---------------------------------------------------------------------------
# deterministic synthetic parameters
# ---------------------------------------------------------------------------
def make_conv_params(key, cin, cout, k):
    kw_, kb_, kg_, kbe_ = jax.random.split(key, 4)
    fan_in = cin * k * k * k
    return {
        "w": jax.random.normal(kw_, (k, k, k, cin, cout), jnp.float32) * fan_in ** -0.5,
        "b": jax.random.normal(kb_, (cout,), jnp.float32) * 0.01,
        # PyTorch default init is gamma=1, beta=0; perturb so the folded
        # InstanceNorm affine path is genuinely exercised by the check.
        "gamma": 1.0 + 0.1 * jax.random.normal(kg_, (cout,), jnp.float32),
        "beta": 0.1 * jax.random.normal(kbe_, (cout,), jnp.float32),
    }


# ---------------------------------------------------------------------------
# reference (mirrors the kernel's bf16-MXU / f32-accumulation numerics)
# ---------------------------------------------------------------------------
def _ref_convolution(x, w, b, gamma, beta, stride):
    # The conv bias is kept here; the kernel drops it because InstanceNorm's
    # mean subtraction cancels a per-channel constant exactly.
    dn = lax.conv_dimension_numbers(x.shape, w.shape, ("NDHWC", "DHWIO", "NDHWC"))
    y = lax.conv_general_dilated(
        x.astype(jnp.bfloat16), w.astype(jnp.bfloat16), (stride,) * 3,
        [(1, 1)] * 3, dimension_numbers=dn, preferred_element_type=jnp.float32)
    y = y + b
    mu = jnp.mean(y, axis=(1, 2, 3), keepdims=True)
    var = jnp.mean((y - mu) ** 2, axis=(1, 2, 3), keepdims=True)
    yn = (y - mu) * lax.rsqrt(var + EPS) * gamma + beta
    return jnp.where(yn >= 0, yn, NEG_SLOPE * yn)


def _ref_forward(x4, params, strides):
    def dc(x, ps, s):
        p1, p2 = ps
        x = _ref_convolution(x, p1["w"], p1["b"], p1["gamma"], p1["beta"], s)
        x = _ref_convolution(x, p2["w"], p2["b"], p2["gamma"], p2["beta"], 1)
        return x
    x5 = dc(x4, params["conv5"], strides[4])
    x6 = dc(x5, params["conv6"], strides[5])
    return x6, x5


if __name__ == "__main__":
    # Module config (only features[3..5], strides[4..5], kernel_size[4..5] used).
    features = [8, 16, 32, 8, 16, 32]
    strides = [1, 2, 2, 2, 2, 2]
    kernel_size = [3, 3, 3, 3, 3, 3]

    key = jax.random.PRNGKey(0)
    k_in, k51, k52, k61, k62 = jax.random.split(key, 5)

    params = {
        "conv5": (make_conv_params(k51, features[3], features[4], kernel_size[4]),
                  make_conv_params(k52, features[4], features[4], kernel_size[4])),
        "conv6": (make_conv_params(k61, features[4], features[5], kernel_size[5]),
                  make_conv_params(k62, features[5], features[5], kernel_size[5])),
    }

    # x4: PyTorch NCDHW (2, 8, 8, 8, 8) -> NDHWC here (N=2, D=H=W=8, C=features[3]=8)
    N, D = 2, 8
    x4 = jax.random.normal(k_in, (N, D, D, D, features[3]), jnp.float32)

    fwd = jax.jit(functools.partial(deep_encoder_forward, strides=tuple(strides)))
    x6, x5 = fwd(x4, params)
    jax.block_until_ready((x6, x5))

    # shapes (NDHWC): x5 = (2,4,4,4,16), x6 = (2,2,2,2,32)
    assert x5.shape == (N, 4, 4, 4, features[4]), x5.shape
    assert x6.shape == (N, 2, 2, 2, features[5]), x6.shape

    # correctness vs. a reference using the same bf16-input / f32-accumulation
    # numerics (tolerance covers accumulation-order differences only).
    r6, r5 = _ref_forward(x4, params, strides)
    assert jnp.allclose(x5, r5, rtol=1e-2, atol=1e-2), float(jnp.max(jnp.abs(x5 - r5)))
    assert jnp.allclose(x6, r6, rtol=1e-2, atol=1e-2), float(jnp.max(jnp.abs(x6 - r6)))

    print("KERNEL_OK")
</pallas_src>

<mosaic_0001>
module attributes {stable_mosaic.version = 11 : i64} {
  func.func @kernel(%arg0: i32, %arg1: memref<1x64x216xbf16, #tpu.memory_space<vmem>>, %arg2: memref<216x16xbf16, #tpu.memory_space<vmem>>, %arg3: memref<432x16xbf16, #tpu.memory_space<vmem>>, %arg4: memref<432x32xbf16, #tpu.memory_space<vmem>>, %arg5: memref<864x32xbf16, #tpu.memory_space<vmem>>, %arg6: memref<8x32xf32, #tpu.memory_space<vmem>>, %arg7: memref<64x432xf32, #tpu.memory_space<vmem>>, %arg8: memref<8x864xf32, #tpu.memory_space<vmem>>, %arg9: memref<8x64xf32, #tpu.memory_space<vmem>>, %arg10: memref<1x64x16xf32, #tpu.memory_space<vmem>>, %arg11: memref<1x8x32xf32, #tpu.memory_space<vmem>>, %arg12: memref<112x16xf32, #tpu.memory_space<vmem>>, %arg13: memref<24x32xf32, #tpu.memory_space<vmem>>, %arg14: memref<64x864xbf16, #tpu.memory_space<vmem>>) attributes {dimension_semantics = [#tpu.dimension_semantics<parallel>], iteration_bounds = array<i64: 2>, scalar_prefetch = 0 : i64, scratch_operands = 3 : i64, tpu.core_type = #tpu.core_type<tc>, window_params = [{transform_indices = @transform_0, window_bounds = array<i64: 1, 64, 216>}, {pipeline_mode = #tpu.pipeline_mode<synchronous>, transform_indices = @transform_1, window_bounds = array<i64: 216, 16>}, {pipeline_mode = #tpu.pipeline_mode<synchronous>, transform_indices = @transform_2, window_bounds = array<i64: 432, 16>}, {pipeline_mode = #tpu.pipeline_mode<synchronous>, transform_indices = @transform_3, window_bounds = array<i64: 432, 32>}, {pipeline_mode = #tpu.pipeline_mode<synchronous>, transform_indices = @transform_4, window_bounds = array<i64: 864, 32>}, {pipeline_mode = #tpu.pipeline_mode<synchronous>, transform_indices = @transform_5, window_bounds = array<i64: 8, 32>}, {pipeline_mode = #tpu.pipeline_mode<synchronous>, transform_indices = @transform_6, window_bounds = array<i64: 64, 432>}, {pipeline_mode = #tpu.pipeline_mode<synchronous>, transform_indices = @transform_7, window_bounds = array<i64: 8, 864>}, {pipeline_mode = #tpu.pipeline_mode<synchronous>, transform_indices = @transform_8, window_bounds = array<i64: 8, 64>}, {transform_indices = @transform_9, window_bounds = array<i64: 1, 64, 16>}, {transform_indices = @transform_10, window_bounds = array<i64: 1, 8, 32>}]} {
    %cst = arith.constant 0.000000e+00 : f32
    %0 = vector.broadcast %cst : f32 to vector<24x16xf32>
    %c0 = arith.constant 0 : index
    %c0_0 = arith.constant 0 : index
    %1 = vector.load %arg12[%c0, %c0_0] : memref<112x16xf32, #tpu.memory_space<vmem>>, vector<24x16xf32>
    tpu.vector_store %arg12[%c0, %c0_0], %0 {strides = array<i32>} : memref<112x16xf32, #tpu.memory_space<vmem>>, vector<24x16xf32>,
    %cst_1 = arith.constant 0.000000e+00 : f32
    %2 = vector.broadcast %cst_1 : f32 to vector<24x16xf32>
    %c88 = arith.constant 88 : index
    %c0_2 = arith.constant 0 : index
    %3 = vector.load %arg12[%c88, %c0_2] : memref<112x16xf32, #tpu.memory_space<vmem>>, vector<24x16xf32>
    tpu.vector_store %arg12[%c88, %c0_2], %2 {strides = array<i32>} : memref<112x16xf32, #tpu.memory_space<vmem>>, vector<24x16xf32>,
    %cst_3 = arith.constant 0.000000e+00 : f32
    %4 = vector.broadcast %cst_3 : f32 to vector<8x32xf32>
    %c0_4 = arith.constant 0 : index
    %c0_5 = arith.constant 0 : index
    %5 = vector.load %arg13[%c0_4, %c0_5] : memref<24x32xf32, #tpu.memory_space<vmem>>, vector<8x32xf32>
    tpu.vector_store %arg13[%c0_4, %c0_5], %4 {strides = array<i32>} : memref<24x32xf32, #tpu.memory_space<vmem>>, vector<8x32xf32>,
    %cst_6 = arith.constant 0.000000e+00 : f32
    %6 = vector.broadcast %cst_6 : f32 to vector<8x32xf32>
    %c16 = arith.constant 16 : index
    %c0_7 = arith.constant 0 : index
    %7 = vector.load %arg13[%c16, %c0_7] : memref<24x32xf32, #tpu.memory_space<vmem>>, vector<8x32xf32>
    tpu.vector_store %arg13[%c16, %c0_7], %6 {strides = array<i32>} : memref<24x32xf32, #tpu.memory_space<vmem>>, vector<8x32xf32>,
    %c0_8 = arith.constant 0 : index
    %c0_9 = arith.constant 0 : index
    %c0_10 = arith.constant 0 : index
    %8 = vector.load %arg1[%c0_8, %c0_9, %c0_10] : memref<1x64x216xbf16, #tpu.memory_space<vmem>>, vector<1x64x216xbf16>
    %9 = vector.shape_cast %8 : vector<1x64x216xbf16> to vector<64x216xbf16>
    %c0_11 = arith.constant 0 : index
    %c0_12 = arith.constant 0 : index
    %10 = vector.load %arg2[%c0_11, %c0_12] : memref<216x16xbf16, #tpu.memory_space<vmem>>, vector<216x16xbf16>
    %cst_13 = arith.constant dense<0.000000e+00> : vector<64x16xf32>
    %11 = tpu.matmul %9, %10, %cst_13 {dimension_numbers = #tpu.dot_dimension_numbers<[1], [0], [0], [1], [0, 0, 1, 1], [], []>} : vector<64x216xbf16>, vector<216x16xbf16>, vector<64x16xf32> -> vector<64x16xf32>
    %c0_14 = arith.constant 0 : index
    %c0_15 = arith.constant 0 : index
    %12 = vector.load %arg6[%c0_14, %c0_15] : memref<8x32xf32, #tpu.memory_space<vmem>>, vector<1x16xf32>
    %c1 = arith.constant 1 : index
    %c0_16 = arith.constant 0 : index
    %13 = vector.load %arg6[%c1, %c0_16] : memref<8x32xf32, #tpu.memory_space<vmem>>, vector<1x16xf32>
    %cst_17 = arith.constant dense<0.000000e+00> : vector<16xf32>
    %14 = vector.multi_reduction <add>, %11, %cst_17 [0] : vector<64x16xf32> to vector<16xf32>
    %15 = vector.shape_cast %14 : vector<16xf32> to vector<1x16xf32>
    %cst_18 = arith.constant 6.400000e+01 : f32
    %16 = vector.broadcast %cst_18 : f32 to vector<1x16xf32>
    %17 = arith.divf %15, %16 : vector<1x16xf32>
    %18 = vector.broadcast %17 : vector<1x16xf32> to vector<64x16xf32>
    %19 = arith.subf %11, %18 : vector<64x16xf32>
    %20 = vector.broadcast %17 : vector<1x16xf32> to vector<64x16xf32>
    %21 = arith.subf %11, %20 : vector<64x16xf32>
    %22 = arith.mulf %19, %21 : vector<64x16xf32>
    %cst_19 = arith.constant dense<0.000000e+00> : vector<16xf32>
    %23 = vector.multi_reduction <add>, %22, %cst_19 [0] : vector<64x16xf32> to vector<16xf32>
    %24 = vector.shape_cast %23 : vector<16xf32> to vector<1x16xf32>
    %cst_20 = arith.constant 6.400000e+01 : f32
    %25 = vector.broadcast %cst_20 : f32 to vector<1x16xf32>
    %26 = arith.divf %24, %25 : vector<1x16xf32>
    %cst_21 = arith.constant 9.99999974E-6 : f32
    %27 = vector.broadcast %cst_21 : f32 to vector<1x16xf32>
    %28 = arith.addf %26, %27 : vector<1x16xf32>
    %29 = math.rsqrt %28 : vector<1x16xf32>
    %30 = arith.mulf %12, %29 : vector<1x16xf32>
    %31 = arith.mulf %17, %30 : vector<1x16xf32>
    %32 = arith.subf %13, %31 : vector<1x16xf32>
    %33 = vector.broadcast %30 : vector<1x16xf32> to vector<64x16xf32>
    %34 = arith.mulf %11, %33 : vector<64x16xf32>
    %35 = vector.broadcast %32 : vector<1x16xf32> to vector<64x16xf32>
    %36 = arith.addf %34, %35 : vector<64x16xf32>
    %cst_22 = arith.constant 0.000000e+00 : f32
    %37 = vector.broadcast %cst_22 : f32 to vector<64x16xf32>
    %38 = arith.cmpf oge, %36, %37 : vector<64x16xf32>
    %cst_23 = arith.constant 1.000000e-01 : f32
    %39 = vector.broadcast %cst_23 : f32 to vector<64x16xf32>
    %40 = arith.mulf %39, %36 : vector<64x16xf32>
    %41 = arith.select %38, %36, %40 : vector<64x16xi1>, vector<64x16xf32>
    %c24 = arith.constant 24 : index
    %c0_24 = arith.constant 0 : index
    %42 = vector.load %arg12[%c24, %c0_24] : memref<112x16xf32, #tpu.memory_space<vmem>>, vector<64x16xf32>
    tpu.vector_store %arg12[%c24, %c0_24], %41 {strides = array<i32>} : memref<112x16xf32, #tpu.memory_space<vmem>>, vector<64x16xf32>,
    %c3 = arith.constant 3 : index
    %c0_25 = arith.constant 0 : index
    %43 = vector.load %arg12[%c3, %c0_25] : memref<112x16xf32, #tpu.memory_space<vmem>>, vector<64x16xf32>
    %c4 = arith.constant 4 : index
    %c0_26 = arith.constant 0 : index
    %44 = vector.load %arg12[%c4, %c0_26] : memref<112x16xf32, #tpu.memory_space<vmem>>, vector<64x16xf32>
    %c5 = arith.constant 5 : index
    %c0_27 = arith.constant 0 : index
    %45 = vector.load %arg12[%c5, %c0_27] : memref<112x16xf32, #tpu.memory_space<vmem>>, vector<64x16xf32>
    %c7 = arith.constant 7 : index
    %c0_28 = arith.constant 0 : index
    %46 = vector.load %arg12[%c7, %c0_28] : memref<112x16xf32, #tpu.memory_space<vmem>>, vector<64x16xf32>
    %c8 = arith.constant 8 : index
    %c0_29 = arith.constant 0 : index
    %47 = vector.load %arg12[%c8, %c0_29] : memref<112x16xf32, #tpu.memory_space<vmem>>, vector<64x16xf32>
    %c9 = arith.constant 9 : index
    %c0_30 = arith.constant 0 : index
    %48 = vector.load %arg12[%c9, %c0_30] : memref<112x16xf32, #tpu.memory_space<vmem>>, vector<64x16xf32>
    %c11 = arith.constant 11 : index
    %c0_31 = arith.constant 0 : index
    %49 = vector.load %arg12[%c11, %c0_31] : memref<112x16xf32, #tpu.memory_space<vmem>>, vector<64x16xf32>
    %c12 = arith.constant 12 : index
    %c0_32 = arith.constant 0 : index
    %50 = vector.load %arg12[%c12, %c0_32] : memref<112x16xf32, #tpu.memory_space<vmem>>, vector<64x16xf32>
    %51 = tpu.concatenate %43, %44, %45, %46, %47, %48, %49, %50 in 1 : vector<64x16xf32>, vector<64x16xf32>, vector<64x16xf32>, vector<64x16xf32>, vector<64x16xf32>, vector<64x16xf32>, vector<64x16xf32>, vector<64x16xf32> -> vector<64x128xf32>
    %c0_33 = arith.constant 0 : index
    %c0_34 = arith.constant 0 : index
    %52 = vector.load %arg7[%c0_33, %c0_34] : memref<64x432xf32, #tpu.memory_space<vmem>>, vector<64x128xf32>
    %53 = arith.mulf %51, %52 : vector<64x128xf32>
    %54 = arith.truncf %53 : vector<64x128xf32> to vector<64x128xbf16>
    %c0_35 = arith.constant 0 : index
    %c0_36 = arith.constant 0 : index
    %55 = vector.load %arg14[%c0_35, %c0_36] : memref<64x864xbf16, #tpu.memory_space<vmem>>, vector<64x128xbf16>
    tpu.vector_store %arg14[%c0_35, %c0_36], %54 {strides = array<i32>} : memref<64x864xbf16, #tpu.memory_space<vmem>>, vector<64x128xbf16>,
    %c13 = arith.constant 13 : index
    %c0_37 = arith.constant 0 : index
    %56 = vector.load %arg12[%c13, %c0_37] : memref<112x16xf32, #tpu.memory_space<vmem>>, vector<64x16xf32>
    %c19 = arith.constant 19 : index
    %c0_38 = arith.constant 0 : index
    %57 = vector.load %arg12[%c19, %c0_38] : memref<112x16xf32, #tpu.memory_space<vmem>>, vector<64x16xf32>
    %c20 = arith.constant 20 : index
    %c0_39 = arith.constant 0 : index
    %58 = vector.load %arg12[%c20, %c0_39] : memref<112x16xf32, #tpu.memory_space<vmem>>, vector<64x16xf32>
    %c21 = arith.constant 21 : index
    %c0_40 = arith.constant 0 : index
    %59 = vector.load %arg12[%c21, %c0_40] : memref<112x16xf32, #tpu.memory_space<vmem>>, vector<64x16xf32>
    %c23 = arith.constant 23 : index
    %c0_41 = arith.constant 0 : index
    %60 = vector.load %arg12[%c23, %c0_41] : memref<112x16xf32, #tpu.memory_space<vmem>>, vector<64x16xf32>
    %c24_42 = arith.constant 24 : index
    %c0_43 = arith.constant 0 : index
    %61 = vector.load %arg12[%c24_42, %c0_43] : memref<112x16xf32, #tpu.memory_space<vmem>>, vector<64x16xf32>
    %c25 = arith.constant 25 : index
    %c0_44 = arith.constant 0 : index
    %62 = vector.load %arg12[%c25, %c0_44] : memref<112x16xf32, #tpu.memory_space<vmem>>, vector<64x16xf32>
    %c27 = arith.constant 27 : index
    %c0_45 = arith.constant 0 : index
    %63 = vector.load %arg12[%c27, %c0_45] : memref<112x16xf32, #tpu.memory_space<vmem>>, vector<64x16xf32>
    %64 = tpu.concatenate %56, %57, %58, %59, %60, %61, %62, %63 in 1 : vector<64x16xf32>, vector<64x16xf32>, vector<64x16xf32>, vector<64x16xf32>, vector<64x16xf32>, vector<64x16xf32>, vector<64x16xf32>, vector<64x16xf32> -> vector<64x128xf32>
    %c0_46 = arith.constant 0 : index
    %c128 = arith.constant 128 : index
    %65 = vector.load %arg7[%c0_46, %c128] : memref<64x432xf32, #tpu.memory_space<vmem>>, vector<64x128xf32>
    %66 = arith.mulf %64, %65 : vector<64x128xf32>
    %67 = arith.truncf %66 : vector<64x128xf32> to vector<64x128xbf16>
    %c0_47 = arith.constant 0 : index
    %c128_48 = arith.constant 128 : index
    %68 = vector.load %arg14[%c0_47, %c128_48] : memref<64x864xbf16, #tpu.memory_space<vmem>>, vector<64x128xbf16>
    tpu.vector_store %arg14[%c0_47, %c128_48], %67 {strides = array<i32>} : memref<64x864xbf16, #tpu.memory_space<vmem>>, vector<64x128xbf16>,
    %c28 = arith.constant 28 : index
    %c0_49 = arith.constant 0 : index
    %69 = vector.load %arg12[%c28, %c0_49] : memref<112x16xf32, #tpu.memory_space<vmem>>, vector<64x16xf32>
    %c29 = arith.constant 29 : index
    %c0_50 = arith.constant 0 : index
    %70 = vector.load %arg12[%c29, %c0_50] : memref<112x16xf32, #tpu.memory_space<vmem>>, vector<64x16xf32>
    %c35 = arith.constant 35 : index
    %c0_51 = arith.constant 0 : index
    %71 = vector.load %arg12[%c35, %c0_51] : memref<112x16xf32, #tpu.memory_space<vmem>>, vector<64x16xf32>
    %c36 = arith.constant 36 : index
    %c0_52 = arith.constant 0 : index
    %72 = vector.load %arg12[%c36, %c0_52] : memref<112x16xf32, #tpu.memory_space<vmem>>, vector<64x16xf32>
    %c37 = arith.constant 37 : index
    %c0_53 = arith.constant 0 : index
    %73 = vector.load %arg12[%c37, %c0_53] : memref<112x16xf32, #tpu.memory_space<vmem>>, vector<64x16xf32>
    %c39 = arith.constant 39 : index
    %c0_54 = arith.constant 0 : index
    %74 = vector.load %arg12[%c39, %c0_54] : memref<112x16xf32, #tpu.memory_space<vmem>>, vector<64x16xf32>
    %c40 = arith.constant 40 : index
    %c0_55 = arith.constant 0 : index
    %75 = vector.load %arg12[%c40, %c0_55] : memref<112x16xf32, #tpu.memory_space<vmem>>, vector<64x16xf32>
    %c41 = arith.constant 41 : index
    %c0_56 = arith.constant 0 : index
    %76 = vector.load %arg12[%c41, %c0_56] : memref<112x16xf32, #tpu.memory_space<vmem>>, vector<64x16xf32>
    %77 = tpu.concatenate %69, %70, %71, %72, %73, %74, %75, %76 in 1 : vector<64x16xf32>, vector<64x16xf32>, vector<64x16xf32>, vector<64x16xf32>, vector<64x16xf32>, vector<64x16xf32>, vector<64x16xf32>, vector<64x16xf32> -> vector<64x128xf32>
    %c0_57 = arith.constant 0 : index
    %c256 = arith.constant 256 : index
    %78 = vector.load %arg7[%c0_57, %c256] : memref<64x432xf32, #tpu.memory_space<vmem>>, vector<64x128xf32>
    %79 = arith.mulf %77, %78 : vector<64x128xf32>
    %80 = arith.truncf %79 : vector<64x128xf32> to vector<64x128xbf16>
    %c0_58 = arith.constant 0 : index
    %c256_59 = arith.constant 256 : index
    %81 = vector.load %arg14[%c0_58, %c256_59] : memref<64x864xbf16, #tpu.memory_space<vmem>>, vector<64x128xbf16>
    tpu.vector_store %arg14[%c0_58, %c256_59], %80 {strides = array<i32>} : memref<64x864xbf16, #tpu.memory_space<vmem>>, vector<64x128xbf16>,
    %c43 = arith.constant 43 : index
    %c0_60 = arith.constant 0 : index
    %82 = vector.load %arg12[%c43, %c0_60] : memref<112x16xf32, #tpu.memory_space<vmem>>, vector<64x16xf32>
    %c44 = arith.constant 44 : index
    %c0_61 = arith.constant 0 : index
    %83 = vector.load %arg12[%c44, %c0_61] : memref<112x16xf32, #tpu.memory_space<vmem>>, vector<64x16xf32>
    %c45 = arith.constant 45 : index
    %c0_62 = arith.constant 0 : index
    %84 = vector.load %arg12[%c45, %c0_62] : memref<112x16xf32, #tpu.memory_space<vmem>>, vector<64x16xf32>
    %85 = tpu.concatenate %82, %83, %84 in 1 : vector<64x16xf32>, vector<64x16xf32>, vector<64x16xf32> -> vector<64x48xf32>
    %c0_63 = arith.constant 0 : index
    %c384 = arith.constant 384 : index
    %86 = vector.load %arg7[%c0_63, %c384] : memref<64x432xf32, #tpu.memory_space<vmem>>, vector<64x48xf32>
    %87 = arith.mulf %85, %86 : vector<64x48xf32>
    %88 = arith.truncf %87 : vector<64x48xf32> to vector<64x48xbf16>
    %c0_64 = arith.constant 0 : index
    %c384_65 = arith.constant 384 : index
    %89 = vector.load %arg14[%c0_64, %c384_65] : memref<64x864xbf16, #tpu.memory_space<vmem>>, vector<64x48xbf16>
    tpu.vector_store %arg14[%c0_64, %c384_65], %88 {strides = array<i32>} : memref<64x864xbf16, #tpu.memory_space<vmem>>, vector<64x48xbf16>,
    %c0_66 = arith.constant 0 : index
    %c0_67 = arith.constant 0 : index
    %90 = vector.load %arg14[%c0_66, %c0_67] : memref<64x864xbf16, #tpu.memory_space<vmem>>, vector<64x432xbf16>
    %c0_68 = arith.constant 0 : index
    %c0_69 = arith.constant 0 : index
    %91 = vector.load %arg3[%c0_68, %c0_69] : memref<432x16xbf16, #tpu.memory_space<vmem>>, vector<432x16xbf16>
    %cst_70 = arith.constant dense<0.000000e+00> : vector<64x16xf32>
    %92 = tpu.matmul %90, %91, %cst_70 {dimension_numbers = #tpu.dot_dimension_numbers<[1], [0], [0], [1], [0, 0, 1, 1], [], []>} : vector<64x432xbf16>, vector<432x16xbf16>, vector<64x16xf32> -> vector<64x16xf32>
    %c2 = arith.constant 2 : index
    %c0_71 = arith.constant 0 : index
    %93 = vector.load %arg6[%c2, %c0_71] : memref<8x32xf32, #tpu.memory_space<vmem>>, vector<1x16xf32>
    %c3_72 = arith.constant 3 : index
    %c0_73 = arith.constant 0 : index
    %94 = vector.load %arg6[%c3_72, %c0_73] : memref<8x32xf32, #tpu.memory_space<vmem>>, vector<1x16xf32>
    %cst_74 = arith.constant dense<0.000000e+00> : vector<16xf32>
    %95 = vector.multi_reduction <add>, %92, %cst_74 [0] : vector<64x16xf32> to vector<16xf32>
    %96 = vector.shape_cast %95 : vector<16xf32> to vector<1x16xf32>
    %cst_75 = arith.constant 6.400000e+01 : f32
    %97 = vector.broadcast %cst_75 : f32 to vector<1x16xf32>
    %98 = arith.divf %96, %97 : vector<1x16xf32>
    %99 = vector.broadcast %98 : vector<1x16xf32> to vector<64x16xf32>
    %100 = arith.subf %92, %99 : vector<64x16xf32>
    %101 = vector.broadcast %98 : vector<1x16xf32> to vector<64x16xf32>
    %102 = arith.subf %92, %101 : vector<64x16xf32>
    %103 = arith.mulf %100, %102 : vector<64x16xf32>
    %cst_76 = arith.constant dense<0.000000e+00> : vector<16xf32>
    %104 = vector.multi_reduction <add>, %103, %cst_76 [0] : vector<64x16xf32> to vector<16xf32>
    %105 = vector.shape_cast %104 : vector<16xf32> to vector<1x16xf32>
    %cst_77 = arith.constant 6.400000e+01 : f32
    %106 = vector.broadcast %cst_77 : f32 to vector<1x16xf32>
    %107 = arith.divf %105, %106 : vector<1x16xf32>
    %cst_78 = arith.constant 9.99999974E-6 : f32
    %108 = vector.broadcast %cst_78 : f32 to vector<1x16xf32>
    %109 = arith.addf %107, %108 : vector<1x16xf32>
    %110 = math.rsqrt %109 : vector<1x16xf32>
    %111 = arith.mulf %93, %110 : vector<1x16xf32>
    %112 = arith.mulf %98, %111 : vector<1x16xf32>
    %113 = arith.subf %94, %112 : vector<1x16xf32>
    %114 = vector.broadcast %111 : vector<1x16xf32> to vector<64x16xf32>
    %115 = arith.mulf %92, %114 : vector<64x16xf32>
    %116 = vector.broadcast %113 : vector<1x16xf32> to vector<64x16xf32>
    %117 = arith.addf %115, %116 : vector<64x16xf32>
    %cst_79 = arith.constant 0.000000e+00 : f32
    %118 = vector.broadcast %cst_79 : f32 to vector<64x16xf32>
    %119 = arith.cmpf oge, %117, %118 : vector<64x16xf32>
    %cst_80 = arith.constant 1.000000e-01 : f32
    %120 = vector.broadcast %cst_80 : f32 to vector<64x16xf32>
    %121 = arith.mulf %120, %117 : vector<64x16xf32>
    %122 = arith.select %119, %117, %121 : vector<64x16xi1>, vector<64x16xf32>
    %c0_81 = arith.constant 0 : index
    %c0_82 = arith.constant 0 : index
    %c0_83 = arith.constant 0 : index
    %123 = vector.load %arg10[%c0_81, %c0_82, %c0_83] : memref<1x64x16xf32, #tpu.memory_space<vmem>>, vector<1x64x16xf32>
    %124 = vector.shape_cast %123 : vector<1x64x16xf32> to vector<64x16xf32>
    %125 = vector.shape_cast %122 : vector<64x16xf32> to vector<1x64x16xf32>
    tpu.vector_store %arg10[%c0_81, %c0_82, %c0_83], %125 {strides = array<i32>} : memref<1x64x16xf32, #tpu.memory_space<vmem>>, vector<1x64x16xf32>,
    %c24_84 = arith.constant 24 : index
    %c0_85 = arith.constant 0 : index
    %126 = vector.load %arg12[%c24_84, %c0_85] : memref<112x16xf32, #tpu.memory_space<vmem>>, vector<64x16xf32>
    tpu.vector_store %arg12[%c24_84, %c0_85], %122 {strides = array<i32>} : memref<112x16xf32, #tpu.memory_space<vmem>>, vector<64x16xf32>,
    %c3_86 = arith.constant 3 : index
    %c0_87 = arith.constant 0 : index
    %127 = vector.load %arg12[%c3_86, %c0_87] : memref<112x16xf32, #tpu.memory_space<vmem>>, vector<64x16xf32>
    %c4_88 = arith.constant 4 : index
    %c0_89 = arith.constant 0 : index
    %128 = vector.load %arg12[%c4_88, %c0_89] : memref<112x16xf32, #tpu.memory_space<vmem>>, vector<64x16xf32>
    %c5_90 = arith.constant 5 : index
    %c0_91 = arith.constant 0 : index
    %129 = vector.load %arg12[%c5_90, %c0_91] : memref<112x16xf32, #tpu.memory_space<vmem>>, vector<64x16xf32>
    %c7_92 = arith.constant 7 : index
    %c0_93 = arith.constant 0 : index
    %130 = vector.load %arg12[%c7_92, %c0_93] : memref<112x16xf32, #tpu.memory_space<vmem>>, vector<64x16xf32>
    %c8_94 = arith.constant 8 : index
    %c0_95 = arith.constant 0 : index
    %131 = vector.load %arg12[%c8_94, %c0_95] : memref<112x16xf32, #tpu.memory_space<vmem>>, vector<64x16xf32>
    %c9_96 = arith.constant 9 : index
    %c0_97 = arith.constant 0 : index
    %132 = vector.load %arg12[%c9_96, %c0_97] : memref<112x16xf32, #tpu.memory_space<vmem>>, vector<64x16xf32>
    %c11_98 = arith.constant 11 : index
    %c0_99 = arith.constant 0 : index
    %133 = vector.load %arg12[%c11_98, %c0_99] : memref<112x16xf32, #tpu.memory_space<vmem>>, vector<64x16xf32>
    %c12_100 = arith.constant 12 : index
    %c0_101 = arith.constant 0 : index
    %134 = vector.load %arg12[%c12_100, %c0_101] : memref<112x16xf32, #tpu.memory_space<vmem>>, vector<64x16xf32>
    %135 = tpu.concatenate %127, %128, %129, %130, %131, %132, %133, %134 in 1 : vector<64x16xf32>, vector<64x16xf32>, vector<64x16xf32>, vector<64x16xf32>, vector<64x16xf32>, vector<64x16xf32>, vector<64x16xf32>, vector<64x16xf32> -> vector<64x128xf32>
    %c0_102 = arith.constant 0 : index
    %c0_103 = arith.constant 0 : index
    %136 = vector.load %arg7[%c0_102, %c0_103] : memref<64x432xf32, #tpu.memory_space<vmem>>, vector<64x128xf32>
    %137 = arith.mulf %135, %136 : vector<64x128xf32>
    %138 = arith.truncf %137 : vector<64x128xf32> to vector<64x128xbf16>
    %c0_104 = arith.constant 0 : index
    %c0_105 = arith.constant 0 : index
    %139 = vector.load %arg14[%c0_104, %c0_105] : memref<64x864xbf16, #tpu.memory_space<vmem>>, vector<64x128xbf16>
    tpu.vector_store %arg14[%c0_104, %c0_105], %138 {strides = array<i32>} : memref<64x864xbf16, #tpu.memory_space<vmem>>, vector<64x128xbf16>,
    %c13_106 = arith.constant 13 : index
    %c0_107 = arith.constant 0 : index
    %140 = vector.load %arg12[%c13_106, %c0_107] : memref<112x16xf32, #tpu.memory_space<vmem>>, vector<64x16xf32>
    %c19_108 = arith.constant 19 : index
    %c0_109 = arith.constant 0 : index
    %141 = vector.load %arg12[%c19_108, %c0_109] : memref<112x16xf32, #tpu.memory_space<vmem>>, vector<64x16xf32>
    %c20_110 = arith.constant 20 : index
    %c0_111 = arith.constant 0 : index
    %142 = vector.load %arg12[%c20_110, %c0_111] : memref<112x16xf32, #tpu.memory_space<vmem>>, vector<64x16xf32>
    %c21_112 = arith.constant 21 : index
    %c0_113 = arith.constant 0 : index
    %143 = vector.load %arg12[%c21_112, %c0_113] : memref<112x16xf32, #tpu.memory_space<vmem>>, vector<64x16xf32>
    %c23_114 = arith.constant 23 : index
    %c0_115 = arith.constant 0 : index
    %144 = vector.load %arg12[%c23_114, %c0_115] : memref<112x16xf32, #tpu.memory_space<vmem>>, vector<64x16xf32>
    %c24_116 = arith.constant 24 : index
    %c0_117 = arith.constant 0 : index
    %145 = vector.load %arg12[%c24_116, %c0_117] : memref<112x16xf32, #tpu.memory_space<vmem>>, vector<64x16xf32>
    %c25_118 = arith.constant 25 : index
    %c0_119 = arith.constant 0 : index
    %146 = vector.load %arg12[%c25_118, %c0_119] : memref<112x16xf32, #tpu.memory_space<vmem>>, vector<64x16xf32>
    %c27_120 = arith.constant 27 : index
    %c0_121 = arith.constant 0 : index
    %147 = vector.load %arg12[%c27_120, %c0_121] : memref<112x16xf32, #tpu.memory_space<vmem>>, vector<64x16xf32>
    %148 = tpu.concatenate %140, %141, %142, %143, %144, %145, %146, %147 in 1 : vector<64x16xf32>, vector<64x16xf32>, vector<64x16xf32>, vector<64x16xf32>, vector<64x16xf32>, vector<64x16xf32>, vector<64x16xf32>, vector<64x16xf32> -> vector<64x128xf32>
    %c0_122 = arith.constant 0 : index
    %c128_123 = arith.constant 128 : index
    %149 = vector.load %arg7[%c0_122, %c128_123] : memref<64x432xf32, #tpu.memory_space<vmem>>, vector<64x128xf32>
    %150 = arith.mulf %148, %149 : vector<64x128xf32>
    %151 = arith.truncf %150 : vector<64x128xf32> to vector<64x128xbf16>
    %c0_124 = arith.constant 0 : index
    %c128_125 = arith.constant 128 : index
    %152 = vector.load %arg14[%c0_124, %c128_125] : memref<64x864xbf16, #tpu.memory_space<vmem>>, vector<64x128xbf16>
    tpu.vector_store %arg14[%c0_124, %c128_125], %151 {strides = array<i32>} : memref<64x864xbf16, #tpu.memory_space<vmem>>, vector<64x128xbf16>,
    %c28_126 = arith.constant 28 : index
    %c0_127 = arith.constant 0 : index
    %153 = vector.load %arg12[%c28_126, %c0_127] : memref<112x16xf32, #tpu.memory_space<vmem>>, vector<64x16xf32>
    %c29_128 = arith.constant 29 : index
    %c0_129 = arith.constant 0 : index
    %154 = vector.load %arg12[%c29_128, %c0_129] : memref<112x16xf32, #tpu.memory_space<vmem>>, vector<64x16xf32>
    %c35_130 = arith.constant 35 : index
    %c0_131 = arith.constant 0 : index
    %155 = vector.load %arg12[%c35_130, %c0_131] : memref<112x16xf32, #tpu.memory_space<vmem>>, vector<64x16xf32>
    %c36_132 = arith.constant 36 : index
    %c0_133 = arith.constant 0 : index
    %156 = vector.load %arg12[%c36_132, %c0_133] : memref<112x16xf32, #tpu.memory_space<vmem>>, vector<64x16xf32>
    %c37_134 = arith.constant 37 : index
    %c0_135 = arith.constant 0 : index
    %157 = vector.load %arg12[%c37_134, %c0_135] : memref<112x16xf32, #tpu.memory_space<vmem>>, vector<64x16xf32>
    %c39_136 = arith.constant 39 : index
    %c0_137 = arith.constant 0 : index
    %158 = vector.load %arg12[%c39_136, %c0_137] : memref<112x16xf32, #tpu.memory_space<vmem>>, vector<64x16xf32>
    %c40_138 = arith.constant 40 : index
    %c0_139 = arith.constant 0 : index
    %159 = vector.load %arg12[%c40_138, %c0_139] : memref<112x16xf32, #tpu.memory_space<vmem>>, vector<64x16xf32>
    %c41_140 = arith.constant 41 : index
    %c0_141 = arith.constant 0 : index
    %160 = vector.load %arg12[%c41_140, %c0_141] : memref<112x16xf32, #tpu.memory_space<vmem>>, vector<64x16xf32>
    %161 = tpu.concatenate %153, %154, %155, %156, %157, %158, %159, %160 in 1 : vector<64x16xf32>, vector<64x16xf32>, vector<64x16xf32>, vector<64x16xf32>, vector<64x16xf32>, vector<64x16xf32>, vector<64x16xf32>, vector<64x16xf32> -> vector<64x128xf32>
    %c0_142 = arith.constant 0 : index
    %c256_143 = arith.constant 256 : index
    %162 = vector.load %arg7[%c0_142, %c256_143] : memref<64x432xf32, #tpu.memory_space<vmem>>, vector<64x128xf32>
    %163 = arith.mulf %161, %162 : vector<64x128xf32>
    %164 = arith.truncf %163 : vector<64x128xf32> to vector<64x128xbf16>
    %c0_144 = arith.constant 0 : index
    %c256_145 = arith.constant 256 : index
    %165 = vector.load %arg14[%c0_144, %c256_145] : memref<64x864xbf16, #tpu.memory_space<vmem>>, vector<64x128xbf16>
    tpu.vector_store %arg14[%c0_144, %c256_145], %164 {strides = array<i32>} : memref<64x864xbf16, #tpu.memory_space<vmem>>, vector<64x128xbf16>,
    %c43_146 = arith.constant 43 : index
    %c0_147 = arith.constant 0 : index
    %166 = vector.load %arg12[%c43_146, %c0_147] : memref<112x16xf32, #tpu.memory_space<vmem>>, vector<64x16xf32>
    %c44_148 = arith.constant 44 : index
    %c0_149 = arith.constant 0 : index
    %167 = vector.load %arg12[%c44_148, %c0_149] : memref<112x16xf32, #tpu.memory_space<vmem>>, vector<64x16xf32>
    %c45_150 = arith.constant 45 : index
    %c0_151 = arith.constant 0 : index
    %168 = vector.load %arg12[%c45_150, %c0_151] : memref<112x16xf32, #tpu.memory_space<vmem>>, vector<64x16xf32>
    %169 = tpu.concatenate %166, %167, %168 in 1 : vector<64x16xf32>, vector<64x16xf32>, vector<64x16xf32> -> vector<64x48xf32>
    %c0_152 = arith.constant 0 : index
    %c384_153 = arith.constant 384 : index
    %170 = vector.load %arg7[%c0_152, %c384_153] : memref<64x432xf32, #tpu.memory_space<vmem>>, vector<64x48xf32>
    %171 = arith.mulf %169, %170 : vector<64x48xf32>
    %172 = arith.truncf %171 : vector<64x48xf32> to vector<64x48xbf16>
    %c0_154 = arith.constant 0 : index
    %c384_155 = arith.constant 384 : index
    %173 = vector.load %arg14[%c0_154, %c384_155] : memref<64x864xbf16, #tpu.memory_space<vmem>>, vector<64x48xbf16>
    tpu.vector_store %arg14[%c0_154, %c384_155], %172 {strides = array<i32>} : memref<64x864xbf16, #tpu.memory_space<vmem>>, vector<64x48xbf16>,
    %c0_156 = arith.constant 0 : index
    %c0_157 = arith.constant 0 : index
    %174 = vector.load %arg14[%c0_156, %c0_157] : memref<64x864xbf16, #tpu.memory_space<vmem>>, vector<64x432xbf16>
    %c0_158 = arith.constant 0 : index
    %c0_159 = arith.constant 0 : index
    %175 = vector.load %arg4[%c0_158, %c0_159] : memref<432x32xbf16, #tpu.memory_space<vmem>>, vector<432x32xbf16>
    %cst_160 = arith.constant dense<0.000000e+00> : vector<64x32xf32>
    %176 = tpu.matmul %174, %175, %cst_160 {dimension_numbers = #tpu.dot_dimension_numbers<[1], [0], [0], [1], [0, 0, 1, 1], [], []>} : vector<64x432xbf16>, vector<432x32xbf16>, vector<64x32xf32> -> vector<64x32xf32>
    %c0_161 = arith.constant 0 : index
    %c0_162 = arith.constant 0 : index
    %177 = vector.load %arg9[%c0_161, %c0_162] : memref<8x64xf32, #tpu.memory_space<vmem>>, vector<8x64xf32>
    %cst_163 = arith.constant dense<0.000000e+00> : vector<8x32xf32>
    %178 = tpu.matmul %177, %176, %cst_163 {dimension_numbers = #tpu.dot_dimension_numbers<[1], [0], [0], [1], [0, 0, 1, 1], [], []>} : vector<8x64xf32>, vector<64x32xf32>, vector<8x32xf32> -> vector<8x32xf32>
    %c4_164 = arith.constant 4 : index
    %c0_165 = arith.constant 0 : index
    %179 = vector.load %arg6[%c4_164, %c0_165] : memref<8x32xf32, #tpu.memory_space<vmem>>, vector<1x32xf32>
    %c5_166 = arith.constant 5 : index
    %c0_167 = arith.constant 0 : index
    %180 = vector.load %arg6[%c5_166, %c0_167] : memref<8x32xf32, #tpu.memory_space<vmem>>, vector<1x32xf32>
    %cst_168 = arith.constant dense<0.000000e+00> : vector<32xf32>
    %181 = vector.multi_reduction <add>, %178, %cst_168 [0] : vector<8x32xf32> to vector<32xf32>
    %182 = vector.shape_cast %181 : vector<32xf32> to vector<1x32xf32>
    %cst_169 = arith.constant 8.000000e+00 : f32
    %183 = vector.broadcast %cst_169 : f32 to vector<1x32xf32>
    %184 = arith.divf %182, %183 : vector<1x32xf32>
    %185 = vector.broadcast %184 : vector<1x32xf32> to vector<8x32xf32>
    %186 = arith.subf %178, %185 : vector<8x32xf32>
    %187 = vector.broadcast %184 : vector<1x32xf32> to vector<8x32xf32>
    %188 = arith.subf %178, %187 : vector<8x32xf32>
    %189 = arith.mulf %186, %188 : vector<8x32xf32>
    %cst_170 = arith.constant dense<0.000000e+00> : vector<32xf32>
    %190 = vector.multi_reduction <add>, %189, %cst_170 [0] : vector<8x32xf32> to vector<32xf32>
    %191 = vector.shape_cast %190 : vector<32xf32> to vector<1x32xf32>
    %cst_171 = arith.constant 8.000000e+00 : f32
    %192 = vector.broadcast %cst_171 : f32 to vector<1x32xf32>
    %193 = arith.divf %191, %192 : vector<1x32xf32>
    %cst_172 = arith.constant 9.99999974E-6 : f32
    %194 = vector.broadcast %cst_172 : f32 to vector<1x32xf32>
    %195 = arith.addf %193, %194 : vector<1x32xf32>
    %196 = math.rsqrt %195 : vector<1x32xf32>
    %197 = arith.mulf %179, %196 : vector<1x32xf32>
    %198 = arith.mulf %184, %197 : vector<1x32xf32>
    %199 = arith.subf %180, %198 : vector<1x32xf32>
    %200 = vector.broadcast %197 : vector<1x32xf32> to vector<8x32xf32>
    %201 = arith.mulf %178, %200 : vector<8x32xf32>
    %202 = vector.broadcast %199 : vector<1x32xf32> to vector<8x32xf32>
    %203 = arith.addf %201, %202 : vector<8x32xf32>
    %cst_173 = arith.constant 0.000000e+00 : f32
    %204 = vector.broadcast %cst_173 : f32 to vector<8x32xf32>
    %205 = arith.cmpf oge, %203, %204 : vector<8x32xf32>
    %cst_174 = arith.constant 1.000000e-01 : f32
    %206 = vector.broadcast %cst_174 : f32 to vector<8x32xf32>
    %207 = arith.mulf %206, %203 : vector<8x32xf32>
    %208 = arith.select %205, %203, %207 : vector<8x32xi1>, vector<8x32xf32>
    %c8_175 = arith.constant 8 : index
    %c0_176 = arith.constant 0 : index
    %209 = vector.load %arg13[%c8_175, %c0_176] : memref<24x32xf32, #tpu.memory_space<vmem>>, vector<8x32xf32>
    tpu.vector_store %arg13[%c8_175, %c0_176], %208 {strides = array<i32>} : memref<24x32xf32, #tpu.memory_space<vmem>>, vector<8x32xf32>,
    %c1_177 = arith.constant 1 : index
    %c0_178 = arith.constant 0 : index
    %210 = vector.load %arg13[%c1_177, %c0_178] : memref<24x32xf32, #tpu.memory_space<vmem>>, vector<8x32xf32>
    %c2_179 = arith.constant 2 : index
    %c0_180 = arith.constant 0 : index
    %211 = vector.load %arg13[%c2_179, %c0_180] : memref<24x32xf32, #tpu.memory_space<vmem>>, vector<8x32xf32>
    %c3_181 = arith.constant 3 : index
    %c0_182 = arith.constant 0 : index
    %212 = vector.load %arg13[%c3_181, %c0_182] : memref<24x32xf32, #tpu.memory_space<vmem>>, vector<8x32xf32>
    %c3_183 = arith.constant 3 : index
    %c0_184 = arith.constant 0 : index
    %213 = vector.load %arg13[%c3_183, %c0_184] : memref<24x32xf32, #tpu.memory_space<vmem>>, vector<8x32xf32>
    %214 = tpu.concatenate %210, %211, %212, %213 in 1 : vector<8x32xf32>, vector<8x32xf32>, vector<8x32xf32>, vector<8x32xf32> -> vector<8x128xf32>
    %c0_185 = arith.constant 0 : index
    %c0_186 = arith.constant 0 : index
    %215 = vector.load %arg8[%c0_185, %c0_186] : memref<8x864xf32, #tpu.memory_space<vmem>>, vector<8x128xf32>
    %216 = arith.mulf %214, %215 : vector<8x128xf32>
    %217 = arith.truncf %216 : vector<8x128xf32> to vector<8x128xbf16>
    %c0_187 = arith.constant 0 : index
    %c0_188 = arith.constant 0 : index
    %218 = vector.load %arg14[%c0_187, %c0_188] : memref<64x864xbf16, #tpu.memory_space<vmem>>, vector<8x128xbf16>
    tpu.vector_store %arg14[%c0_187, %c0_188], %217 {strides = array<i32>} : memref<64x864xbf16, #tpu.memory_space<vmem>>, vector<8x128xbf16>,
    %c4_189 = arith.constant 4 : index
    %c0_190 = arith.constant 0 : index
    %219 = vector.load %arg13[%c4_189, %c0_190] : memref<24x32xf32, #tpu.memory_space<vmem>>, vector<8x32xf32>
    %c5_191 = arith.constant 5 : index
    %c0_192 = arith.constant 0 : index
    %220 = vector.load %arg13[%c5_191, %c0_192] : memref<24x32xf32, #tpu.memory_space<vmem>>, vector<8x32xf32>
    %c5_193 = arith.constant 5 : index
    %c0_194 = arith.constant 0 : index
    %221 = vector.load %arg13[%c5_193, %c0_194] : memref<24x32xf32, #tpu.memory_space<vmem>>, vector<8x32xf32>
    %c6 = arith.constant 6 : index
    %c0_195 = arith.constant 0 : index
    %222 = vector.load %arg13[%c6, %c0_195] : memref<24x32xf32, #tpu.memory_space<vmem>>, vector<8x32xf32>
    %223 = tpu.concatenate %219, %220, %221, %222 in 1 : vector<8x32xf32>, vector<8x32xf32>, vector<8x32xf32>, vector<8x32xf32> -> vector<8x128xf32>
    %c0_196 = arith.constant 0 : index
    %c128_197 = arith.constant 128 : index
    %224 = vector.load %arg8[%c0_196, %c128_197] : memref<8x864xf32, #tpu.memory_space<vmem>>, vector<8x128xf32>
    %225 = arith.mulf %223, %224 : vector<8x128xf32>
    %226 = arith.truncf %225 : vector<8x128xf32> to vector<8x128xbf16>
    %c0_198 = arith.constant 0 : index
    %c128_199 = arith.constant 128 : index
    %227 = vector.load %arg14[%c0_198, %c128_199] : memref<64x864xbf16, #tpu.memory_space<vmem>>, vector<8x128xbf16>
    tpu.vector_store %arg14[%c0_198, %c128_199], %226 {strides = array<i32>} : memref<64x864xbf16, #tpu.memory_space<vmem>>, vector<8x128xbf16>,
    %c7_200 = arith.constant 7 : index
    %c0_201 = arith.constant 0 : index
    %228 = vector.load %arg13[%c7_200, %c0_201] : memref<24x32xf32, #tpu.memory_space<vmem>>, vector<8x32xf32>
    %c5_202 = arith.constant 5 : index
    %c0_203 = arith.constant 0 : index
    %229 = vector.load %arg13[%c5_202, %c0_203] : memref<24x32xf32, #tpu.memory_space<vmem>>, vector<8x32xf32>
    %c6_204 = arith.constant 6 : index
    %c0_205 = arith.constant 0 : index
    %230 = vector.load %arg13[%c6_204, %c0_205] : memref<24x32xf32, #tpu.memory_space<vmem>>, vector<8x32xf32>
    %c7_206 = arith.constant 7 : index
    %c0_207 = arith.constant 0 : index
    %231 = vector.load %arg13[%c7_206, %c0_207] : memref<24x32xf32, #tpu.memory_space<vmem>>, vector<8x32xf32>
    %232 = tpu.concatenate %228, %229, %230, %231 in 1 : vector<8x32xf32>, vector<8x32xf32>, vector<8x32xf32>, vector<8x32xf32> -> vector<8x128xf32>
    %c0_208 = arith.constant 0 : index
    %c256_209 = arith.constant 256 : index
    %233 = vector.load %arg8[%c0_208, %c256_209] : memref<8x864xf32, #tpu.memory_space<vmem>>, vector<8x128xf32>
    %234 = arith.mulf %232, %233 : vector<8x128xf32>
    %235 = arith.truncf %234 : vector<8x128xf32> to vector<8x128xbf16>
    %c0_210 = arith.constant 0 : index
    %c256_211 = arith.constant 256 : index
    %236 = vector.load %arg14[%c0_210, %c256_211] : memref<64x864xbf16, #tpu.memory_space<vmem>>, vector<8x128xbf16>
    tpu.vector_store %arg14[%c0_210, %c256_211], %235 {strides = array<i32>} : memref<64x864xbf16, #tpu.memory_space<vmem>>, vector<8x128xbf16>,
    %c7_212 = arith.constant 7 : index
    %c0_213 = arith.constant 0 : index
    %237 = vector.load %arg13[%c7_212, %c0_213] : memref<24x32xf32, #tpu.memory_space<vmem>>, vector<8x32xf32>
    %c8_214 = arith.constant 8 : index
    %c0_215 = arith.constant 0 : index
    %238 = vector.load %arg13[%c8_214, %c0_215] : memref<24x32xf32, #tpu.memory_space<vmem>>, vector<8x32xf32>
    %c9_216 = arith.constant 9 : index
    %c0_217 = arith.constant 0 : index
    %239 = vector.load %arg13[%c9_216, %c0_217] : memref<24x32xf32, #tpu.memory_space<vmem>>, vector<8x32xf32>
    %c9_218 = arith.constant 9 : index
    %c0_219 = arith.constant 0 : index
    %240 = vector.load %arg13[%c9_218, %c0_219] : memref<24x32xf32, #tpu.memory_space<vmem>>, vector<8x32xf32>
    %241 = tpu.concatenate %237, %238, %239, %240 in 1 : vector<8x32xf32>, vector<8x32xf32>, vector<8x32xf32>, vector<8x32xf32> -> vector<8x128xf32>
    %c0_220 = arith.constant 0 : index
    %c384_221 = arith.constant 384 : index
    %242 = vector.load %arg8[%c0_220, %c384_221] : memref<8x864xf32, #tpu.memory_space<vmem>>, vector<8x128xf32>
    %243 = arith.mulf %241, %242 : vector<8x128xf32>
    %244 = arith.truncf %243 : vector<8x128xf32> to vector<8x128xbf16>
    %c0_222 = arith.constant 0 : index
    %c384_223 = arith.constant 384 : index
    %245 = vector.load %arg14[%c0_222, %c384_223] : memref<64x864xbf16, #tpu.memory_space<vmem>>, vector<8x128xbf16>
    tpu.vector_store %arg14[%c0_222, %c384_223], %244 {strides = array<i32>} : memref<64x864xbf16, #tpu.memory_space<vmem>>, vector<8x128xbf16>,
    %c10 = arith.constant 10 : index
    %c0_224 = arith.constant 0 : index
    %246 = vector.load %arg13[%c10, %c0_224] : memref<24x32xf32, #tpu.memory_space<vmem>>, vector<8x32xf32>
    %c11_225 = arith.constant 11 : index
    %c0_226 = arith.constant 0 : index
    %247 = vector.load %arg13[%c11_225, %c0_226] : memref<24x32xf32, #tpu.memory_space<vmem>>, vector<8x32xf32>
    %c9_227 = arith.constant 9 : index
    %c0_228 = arith.constant 0 : index
    %248 = vector.load %arg13[%c9_227, %c0_228] : memref<24x32xf32, #tpu.memory_space<vmem>>, vector<8x32xf32>
    %c10_229 = arith.constant 10 : index
    %c0_230 = arith.constant 0 : index
    %249 = vector.load %arg13[%c10_229, %c0_230] : memref<24x32xf32, #tpu.memory_space<vmem>>, vector<8x32xf32>
    %250 = tpu.concatenate %246, %247, %248, %249 in 1 : vector<8x32xf32>, vector<8x32xf32>, vector<8x32xf32>, vector<8x32xf32> -> vector<8x128xf32>
    %c0_231 = arith.constant 0 : index
    %c512 = arith.constant 512 : index
    %251 = vector.load %arg8[%c0_231, %c512] : memref<8x864xf32, #tpu.memory_space<vmem>>, vector<8x128xf32>
    %252 = arith.mulf %250, %251 : vector<8x128xf32>
    %253 = arith.truncf %252 : vector<8x128xf32> to vector<8x128xbf16>
    %c0_232 = arith.constant 0 : index
    %c512_233 = arith.constant 512 : index
    %254 = vector.load %arg14[%c0_232, %c512_233] : memref<64x864xbf16, #tpu.memory_space<vmem>>, vector<8x128xbf16>
    tpu.vector_store %arg14[%c0_232, %c512_233], %253 {strides = array<i32>} : memref<64x864xbf16, #tpu.memory_space<vmem>>, vector<8x128xbf16>,
    %c11_234 = arith.constant 11 : index
    %c0_235 = arith.constant 0 : index
    %255 = vector.load %arg13[%c11_234, %c0_235] : memref<24x32xf32, #tpu.memory_space<vmem>>, vector<8x32xf32>
    %c11_236 = arith.constant 11 : index
    %c0_237 = arith.constant 0 : index
    %256 = vector.load %arg13[%c11_236, %c0_237] : memref<24x32xf32, #tpu.memory_space<vmem>>, vector<8x32xf32>
    %c12_238 = arith.constant 12 : index
    %c0_239 = arith.constant 0 : index
    %257 = vector.load %arg13[%c12_238, %c0_239] : memref<24x32xf32, #tpu.memory_space<vmem>>, vector<8x32xf32>
    %c13_240 = arith.constant 13 : index
    %c0_241 = arith.constant 0 : index
    %258 = vector.load %arg13[%c13_240, %c0_241] : memref<24x32xf32, #tpu.memory_space<vmem>>, vector<8x32xf32>
    %259 = tpu.concatenate %255, %256, %257, %258 in 1 : vector<8x32xf32>, vector<8x32xf32>, vector<8x32xf32>, vector<8x32xf32> -> vector<8x128xf32>
    %c0_242 = arith.constant 0 : index
    %c640 = arith.constant 640 : index
    %260 = vector.load %arg8[%c0_242, %c640] : memref<8x864xf32, #tpu.memory_space<vmem>>, vector<8x128xf32>
    %261 = arith.mulf %259, %260 : vector<8x128xf32>
    %262 = arith.truncf %261 : vector<8x128xf32> to vector<8x128xbf16>
    %c0_243 = arith.constant 0 : index
    %c640_244 = arith.constant 640 : index
    %263 = vector.load %arg14[%c0_243, %c640_244] : memref<64x864xbf16, #tpu.memory_space<vmem>>, vector<8x128xbf16>
    tpu.vector_store %arg14[%c0_243, %c640_244], %262 {strides = array<i32>} : memref<64x864xbf16, #tpu.memory_space<vmem>>, vector<8x128xbf16>,
    %c13_245 = arith.constant 13 : index
    %c0_246 = arith.constant 0 : index
    %264 = vector.load %arg13[%c13_245, %c0_246] : memref<24x32xf32, #tpu.memory_space<vmem>>, vector<8x32xf32>
    %c14 = arith.constant 14 : index
    %c0_247 = arith.constant 0 : index
    %265 = vector.load %arg13[%c14, %c0_247] : memref<24x32xf32, #tpu.memory_space<vmem>>, vector<8x32xf32>
    %c15 = arith.constant 15 : index
    %c0_248 = arith.constant 0 : index
    %266 = vector.load %arg13[%c15, %c0_248] : memref<24x32xf32, #tpu.memory_space<vmem>>, vector<8x32xf32>
    %267 = tpu.concatenate %264, %265, %266 in 1 : vector<8x32xf32>, vector<8x32xf32>, vector<8x32xf32> -> vector<8x96xf32>
    %c0_249 = arith.constant 0 : index
    %c768 = arith.constant 768 : index
    %268 = vector.load %arg8[%c0_249, %c768] : memref<8x864xf32, #tpu.memory_space<vmem>>, vector<8x96xf32>
    %269 = arith.mulf %267, %268 : vector<8x96xf32>
    %270 = arith.truncf %269 : vector<8x96xf32> to vector<8x96xbf16>
    %c0_250 = arith.constant 0 : index
    %c768_251 = arith.constant 768 : index
    %271 = vector.load %arg14[%c0_250, %c768_251] : memref<64x864xbf16, #tpu.memory_space<vmem>>, vector<8x96xbf16>
    tpu.vector_store %arg14[%c0_250, %c768_251], %270 {strides = array<i32>} : memref<64x864xbf16, #tpu.memory_space<vmem>>, vector<8x96xbf16>,
    %c0_252 = arith.constant 0 : index
    %c0_253 = arith.constant 0 : index
    %272 = vector.load %arg14[%c0_252, %c0_253] : memref<64x864xbf16, #tpu.memory_space<vmem>>, vector<8x864xbf16>
    %c0_254 = arith.constant 0 : index
    %c0_255 = arith.constant 0 : index
    %273 = vector.load %arg5[%c0_254, %c0_255] : memref<864x32xbf16, #tpu.memory_space<vmem>>, vector<864x32xbf16>
    %cst_256 = arith.constant dense<0.000000e+00> : vector<8x32xf32>
    %274 = tpu.matmul %272, %273, %cst_256 {dimension_numbers = #tpu.dot_dimension_numbers<[1], [0], [0], [1], [0, 0, 1, 1], [], []>} : vector<8x864xbf16>, vector<864x32xbf16>, vector<8x32xf32> -> vector<8x32xf32>
    %c6_257 = arith.constant 6 : index
    %c0_258 = arith.constant 0 : index
    %275 = vector.load %arg6[%c6_257, %c0_258] : memref<8x32xf32, #tpu.memory_space<vmem>>, vector<1x32xf32>
    %c7_259 = arith.constant 7 : index
    %c0_260 = arith.constant 0 : index
    %276 = vector.load %arg6[%c7_259, %c0_260] : memref<8x32xf32, #tpu.memory_space<vmem>>, vector<1x32xf32>
    %cst_261 = arith.constant dense<0.000000e+00> : vector<32xf32>
    %277 = vector.multi_reduction <add>, %274, %cst_261 [0] : vector<8x32xf32> to vector<32xf32>
    %278 = vector.shape_cast %277 : vector<32xf32> to vector<1x32xf32>
    %cst_262 = arith.constant 8.000000e+00 : f32
    %279 = vector.broadcast %cst_262 : f32 to vector<1x32xf32>
    %280 = arith.divf %278, %279 : vector<1x32xf32>
    %281 = vector.broadcast %280 : vector<1x32xf32> to vector<8x32xf32>
    %282 = arith.subf %274, %281 : vector<8x32xf32>
    %283 = vector.broadcast %280 : vector<1x32xf32> to vector<8x32xf32>
    %284 = arith.subf %274, %283 : vector<8x32xf32>
    %285 = arith.mulf %282, %284 : vector<8x32xf32>
    %cst_263 = arith.constant dense<0.000000e+00> : vector<32xf32>
    %286 = vector.multi_reduction <add>, %285, %cst_263 [0] : vector<8x32xf32> to vector<32xf32>
    %287 = vector.shape_cast %286 : vector<32xf32> to vector<1x32xf32>
    %cst_264 = arith.constant 8.000000e+00 : f32
    %288 = vector.broadcast %cst_264 : f32 to vector<1x32xf32>
    %289 = arith.divf %287, %288 : vector<1x32xf32>
    %cst_265 = arith.constant 9.99999974E-6 : f32
    %290 = vector.broadcast %cst_265 : f32 to vector<1x32xf32>
    %291 = arith.addf %289, %290 : vector<1x32xf32>
    %292 = math.rsqrt %291 : vector<1x32xf32>
    %293 = arith.mulf %275, %292 : vector<1x32xf32>
    %294 = arith.mulf %280, %293 : vector<1x32xf32>
    %295 = arith.subf %276, %294 : vector<1x32xf32>
    %296 = vector.broadcast %293 : vector<1x32xf32> to vector<8x32xf32>
    %297 = arith.mulf %274, %296 : vector<8x32xf32>
    %298 = vector.broadcast %295 : vector<1x32xf32> to vector<8x32xf32>
    %299 = arith.addf %297, %298 : vector<8x32xf32>
    %cst_266 = arith.constant 0.000000e+00 : f32
    %300 = vector.broadcast %cst_266 : f32 to vector<8x32xf32>
    %301 = arith.cmpf oge, %299, %300 : vector<8x32xf32>
    %cst_267 = arith.constant 1.000000e-01 : f32
    %302 = vector.broadcast %cst_267 : f32 to vector<8x32xf32>
    %303 = arith.mulf %302, %299 : vector<8x32xf32>
    %304 = arith.select %301, %299, %303 : vector<8x32xi1>, vector<8x32xf32>
    %c0_268 = arith.constant 0 : index
    %c0_269 = arith.constant 0 : index
    %c0_270 = arith.constant 0 : index
    %305 = vector.load %arg11[%c0_268, %c0_269, %c0_270] : memref<1x8x32xf32, #tpu.memory_space<vmem>>, vector<1x8x32xf32>
    %306 = vector.shape_cast %305 : vector<1x8x32xf32> to vector<8x32xf32>
    %307 = vector.shape_cast %304 : vector<8x32xf32> to vector<1x8x32xf32>
    tpu.vector_store %arg11[%c0_268, %c0_269, %c0_270], %307 {strides = array<i32>} : memref<1x8x32xf32, #tpu.memory_space<vmem>>, vector<1x8x32xf32>,
    return
  }
  func.func @transform_0(%arg0: i32) -> (i32, i32, i32) {
    %c0_i32 = arith.constant 0 : i32
    %c0_i32_0 = arith.constant 0 : i32
    %c0_i32_1 = arith.constant 0 : i32
    return %arg0, %c0_i32, %c0_i32_0 : i32, i32, i32
  }
  func.func @transform_1(%arg0: i32) -> (i32, i32) {
    %c0_i32 = arith.constant 0 : i32
    %c0_i32_0 = arith.constant 0 : i32
    %c0_i32_1 = arith.constant 0 : i32
    return %c0_i32, %c0_i32_0 : i32, i32
  }
  func.func @transform_2(%arg0: i32) -> (i32, i32) {
    %c0_i32 = arith.constant 0 : i32
    %c0_i32_0 = arith.constant 0 : i32
    %c0_i32_1 = arith.constant 0 : i32
    return %c0_i32, %c0_i32_0 : i32, i32
  }
  func.func @transform_3(%arg0: i32) -> (i32, i32) {
    %c0_i32 = arith.constant 0 : i32
    %c0_i32_0 = arith.constant 0 : i32
    %c0_i32_1 = arith.constant 0 : i32
    return %c0_i32, %c0_i32_0 : i32, i32
  }
  func.func @transform_4(%arg0: i32) -> (i32, i32) {
    %c0_i32 = arith.constant 0 : i32
    %c0_i32_0 = arith.constant 0 : i32
    %c0_i32_1 = arith.constant 0 : i32
    return %c0_i32, %c0_i32_0 : i32, i32
  }
  func.func @transform_5(%arg0: i32) -> (i32, i32) {
    %c0_i32 = arith.constant 0 : i32
    %c0_i32_0 = arith.constant 0 : i32
    %c0_i32_1 = arith.constant 0 : i32
    return %c0_i32, %c0_i32_0 : i32, i32
  }
  func.func @transform_6(%arg0: i32) -> (i32, i32) {
    %c0_i32 = arith.constant 0 : i32
    %c0_i32_0 = arith.constant 0 : i32
    %c0_i32_1 = arith.constant 0 : i32
    return %c0_i32, %c0_i32_0 : i32, i32
  }
  func.func @transform_7(%arg0: i32) -> (i32, i32) {
    %c0_i32 = arith.constant 0 : i32
    %c0_i32_0 = arith.constant 0 : i32
    %c0_i32_1 = arith.constant 0 : i32
    return %c0_i32, %c0_i32_0 : i32, i32
  }
  func.func @transform_8(%arg0: i32) -> (i32, i32) {
    %c0_i32 = arith.constant 0 : i32
    %c0_i32_0 = arith.constant 0 : i32
    %c0_i32_1 = arith.constant 0 : i32
    return %c0_i32, %c0_i32_0 : i32, i32
  }
  func.func @transform_9(%arg0: i32) -> (i32, i32, i32) {
    %c0_i32 = arith.constant 0 : i32
    %c0_i32_0 = arith.constant 0 : i32
    %c0_i32_1 = arith.constant 0 : i32
    return %arg0, %c0_i32, %c0_i32_0 : i32, i32, i32
  }
  func.func @transform_10(%arg0: i32) -> (i32, i32, i32) {
    %c0_i32 = arith.constant 0 : i32
    %c0_i32_0 = arith.constant 0 : i32
    %c0_i32_1 = arith.constant 0 : i32
    return %arg0, %c0_i32, %c0_i32_0 : i32, i32, i32
  }
}

</mosaic_0001>

<llo_original>
// kernel: deep_encoder_forward.1
$region0: #{deep_encoder_forward.1}
  #allocation0 [shape = 'u32[]', space=smem, size = 0x4, offset = 0x4, fixed_abs, tag = 'smem constant byte address 0x4 - core index']
  #allocation1 [shape = 'u32[72,128]{1,0:T(1,128)}', space=vmem, size = 0x9000, scoped, tag = 'internal scratch']
  #allocation2 [shape = 'f32[112,16]{1,0:T(8,128)}', space=vmem, size = 0xe000, scoped, tag = 'scratch operand']
  #allocation3 [shape = 'f32[24,32]{1,0:T(8,128)}', space=vmem, size = 0x3000, scoped, tag = 'scratch operand']
  #allocation4 [shape = 'bf16[64,864]{1,0:T(8,128)(2,1)}', space=vmem, size = 0x1c000, scoped, tag = 'scratch operand']
  %s0 = inlined_call_operand.vmem [shape: bf16[2,64,216], index: 0, kind: input, shape index: {}]
  %s1 = inlined_call_operand.vmem [shape: bf16[216,16], index: 1, kind: input, shape index: {}]
  %s2 = inlined_call_operand.vmem [shape: bf16[432,16], index: 2, kind: input, shape index: {}]
  %s3 = inlined_call_operand.vmem [shape: bf16[432,32], index: 3, kind: input, shape index: {}]
  %s4 = inlined_call_operand.vmem [shape: bf16[864,32], index: 4, kind: input, shape index: {}]
  %s5 = inlined_call_operand.vmem [shape: f32[8,32], index: 5, kind: input, shape index: {}]
  %s6 = inlined_call_operand.vmem [shape: f32[64,432], index: 6, kind: input, shape index: {}]
  %s7 = inlined_call_operand.vmem [shape: f32[8,864], index: 7, kind: input, shape index: {}]
  %s8 = inlined_call_operand.vmem [shape: f32[8,64], index: 8, kind: input, shape index: {}]
  %s9 = inlined_call_operand.hbm [shape: f32[2,64,16], index: 9, kind: output, shape index: {0}]
  %s10 = inlined_call_operand.hbm [shape: f32[2,8,32], index: 10, kind: output, shape index: {1}]
  %11 = xla_tuple %s9, %s10
  %s12 = sld [smem:[#allocation0]]
  $region77: #{deep_encoder_forward.1} parent=0
    _
  %s14 = ssub.s32 1, %s12
  %s15 = scalar_select 0, %s14, %s12
  $region1: #{deep_encoder_forward.1} parent=0
    #allocation5 [shape = 'u8[65536]{0}', space=vmem, size = 0x10000, scoped, tag = 'output window, operand 0']
    #allocation6 [shape = 's32[2]{0}', space=sflag, size = 0x8, scoped, tag = 'scoped memory for deep_encoder_forward.1']
    #allocation7 [shape = 'u8[8192]{0}', space=vmem, size = 0x2000, scoped, tag = 'output window, operand 1']
    #allocation8 [shape = 's32[2]{0}', space=sflag, size = 0x8, scoped, tag = 'scoped memory for deep_encoder_forward.1']
    %16 = vsyncpa [#allocation6], 0
    %s17 = scalar_lea.sflag [#allocation6], 1
    %18 = vsyncpa %s17, 0
    %19 = vsyncpa [#allocation8], 0
    %s20 = scalar_lea.sflag [#allocation8], 1
    %21 = vsyncpa %s20, 0
    loop: start=0, step=1, limit=4
    $region2: #{deep_encoder_forward.1} parent=1 // loop_pre_header
      _
    $region3: #{deep_encoder_forward.1} parent=1 // loop_header
      %s23 = sphi 0, %s27
      %p24 = scmp.ge.s32.totalorder %s23, 4
      %s33 = sphi 0, %s35
      %s36 = sphi 0, %s33
      %s37 = sphi 0, %s36
      %s53 = sphi 0, %s37
      %s57 = sphi 0, %s57
      %s59 = sphi 0, %s57
      %s60 = sphi 0, %s59
      %s74 = sphi 0, %s60
      %s78 = sphi 0, %s78
      %s80 = sphi 0, %s78
      %s81 = sphi 0, %s80
      %s95 = sphi 0, %s81
      %s99 = sphi 0, %s99
      %s101 = sphi 0, %s99
      %s102 = sphi 0, %s101
      %s116 = sphi 0, %s102
      %s120 = sphi 0, %s120
      %s122 = sphi 0, %s120
      %s123 = sphi 0, %s122
      %s137 = sphi 0, %s123
      %s141 = sphi 0, %s141
      %s143 = sphi 0, %s141
      %s144 = sphi 0, %s143
      %s158 = sphi 0, %s144
      %s162 = sphi 0, %s162
      %s164 = sphi 0, %s162
      %s165 = sphi 0, %s164
      %s179 = sphi 0, %s165
      %s183 = sphi 0, %s183
      %s185 = sphi 0, %s183
      %s186 = sphi 0, %s185
      %s200 = sphi 0, %s186
      %s204 = sphi 0, %s204
      %s206 = sphi 0, %s204
      %s207 = sphi 0, %s206
      %s221 = sphi 0, %s207
      %s227 = sphi 0, %s229
      %s230 = sphi 0, %s227
      %s231 = sphi 0, %s230
      %s247 = sphi 0, %s231
      %s253 = sphi 0, %s255
      %s256 = sphi 0, %s253
      %s257 = sphi 0, %s256
      %s273 = sphi 0, %s257
    $region4: #{deep_encoder_forward.1} parent=1 // loop_header_branch
      %26 = sbr.rel (%p24) target = $region8
    $region5: #{deep_encoder_forward.1} parent=1 // loop_body
      %s28 = ssub.s32 %s23, 1
      %s29 = ssub.s32 %s23, 2
      %s30 = sadd.s32 %s23, 1
      %s31 = ssub.s32 %s23, %s30
      %p32 = scmp.eq.s32.totalorder %s31, 0
      %s34 = sadd.s32 %s33, 1
      %s35 = scalar_select %p32, %s33, %s34
      %p38 = pneg %p32
      %p39 = scmp.eq.s32.totalorder %s23, 1
      %p40 = por %p38, %p39
      %p41 = scmp.ne.s32.totalorder %s33, %s36
      %p42 = scmp.eq.s32.totalorder %s23, 0
      %p43 = por %p41, %p42
      %p44 = scmp.ne.s32.totalorder %s33, %s36
      %p45 = scmp.eq.s32.totalorder %s28, 1
      %p46 = por %p44, %p45
      %p47 = scmp.ne.s32.totalorder %s36, %s37
      %p48 = scmp.eq.s32.totalorder %s28, 0
      %p49 = por %p47, %p48
      %p50 = scmp.ne.s32.totalorder %s36, %s37
      %p51 = scmp.eq.s32.totalorder %s29, 1
      %p52 = por %p50, %p51
      %p54 = scmp.ne.s32.totalorder %s37, %s53
      %p55 = scmp.eq.s32.totalorder %s29, 0
      %p56 = por %p54, %p55
      %s58 = sadd.s32 %s57, 1
      %p61 = scmp.eq.s32.totalorder %s23, 1
      %p62 = scmp.ne.s32.totalorder %s57, %s59
      %p63 = scmp.eq.s32.totalorder %s23, 0
      %p64 = por %p62, %p63
      %p65 = scmp.ne.s32.totalorder %s57, %s59
      %p66 = scmp.eq.s32.totalorder %s28, 1
      %p67 = por %p65, %p66
      %p68 = scmp.ne.s32.totalorder %s59, %s60
      %p69 = scmp.eq.s32.totalorder %s28, 0
      %p70 = por %p68, %p69
      %p71 = scmp.ne.s32.totalorder %s59, %s60
      %p72 = scmp.eq.s32.totalorder %s29, 1
      %p73 = por %p71, %p72
      %p75 = scmp.ne.s32.totalorder %s60, %s74
      %p76 = scmp.eq.s32.totalorder %s29, 0
      %p77 = por %p75, %p76
      %s79 = sadd.s32 %s78, 1
      %p82 = scmp.eq.s32.totalorder %s23, 1
      %p83 = scmp.ne.s32.totalorder %s78, %s80
      %p84 = scmp.eq.s32.totalorder %s23, 0
      %p85 = por %p83, %p84
      %p86 = scmp.ne.s32.totalorder %s78, %s80
      %p87 = scmp.eq.s32.totalorder %s28, 1
      %p88 = por %p86, %p87
      %p89 = scmp.ne.s32.totalorder %s80, %s81
      %p90 = scmp.eq.s32.totalorder %s28, 0
      %p91 = por %p89, %p90
      %p92 = scmp.ne.s32.totalorder %s80, %s81
      %p93 = scmp.eq.s32.totalorder %s29, 1
      %p94 = por %p92, %p93
      %p96 = scmp.ne.s32.totalorder %s81, %s95
      %p97 = scmp.eq.s32.totalorder %s29, 0
      %p98 = por %p96, %p97
      %s100 = sadd.s32 %s99, 1
      %p103 = scmp.eq.s32.totalorder %s23, 1
      %p104 = scmp.ne.s32.totalorder %s99, %s101
      %p105 = scmp.eq.s32.totalorder %s23, 0
      %p106 = por %p104, %p105
      %p107 = scmp.ne.s32.totalorder %s99, %s101
      %p108 = scmp.eq.s32.totalorder %s28, 1
      %p109 = por %p107, %p108
      %p110 = scmp.ne.s32.totalorder %s101, %s102
      %p111 = scmp.eq.s32.totalorder %s28, 0
      %p112 = por %p110, %p111
      %p113 = scmp.ne.s32.totalorder %s101, %s102
      %p114 = scmp.eq.s32.totalorder %s29, 1
      %p115 = por %p113, %p114
      %p117 = scmp.ne.s32.totalorder %s102, %s116
      %p118 = scmp.eq.s32.totalorder %s29, 0
      %p119 = por %p117, %p118
      %s121 = sadd.s32 %s120, 1
      %p124 = scmp.eq.s32.totalorder %s23, 1
      %p125 = scmp.ne.s32.totalorder %s120, %s122
      %p126 = scmp.eq.s32.totalorder %s23, 0
      %p127 = por %p125, %p126
      %p128 = scmp.ne.s32.totalorder %s120, %s122
      %p129 = scmp.eq.s32.totalorder %s28, 1
      %p130 = por %p128, %p129
      %p131 = scmp.ne.s32.totalorder %s122, %s123
      %p132 = scmp.eq.s32.totalorder %s28, 0
      %p133 = por %p131, %p132
      %p134 = scmp.ne.s32.totalorder %s122, %s123
      %p135 = scmp.eq.s32.totalorder %s29, 1
      %p136 = por %p134, %p135
      %p138 = scmp.ne.s32.totalorder %s123, %s137
      %p139 = scmp.eq.s32.totalorder %s29, 0
      %p140 = por %p138, %p139
      %s142 = sadd.s32 %s141, 1
      %p145 = scmp.eq.s32.totalorder %s23, 1
      %p146 = scmp.ne.s32.totalorder %s141, %s143
      %p147 = scmp.eq.s32.totalorder %s23, 0
      %p148 = por %p146, %p147
      %p149 = scmp.ne.s32.totalorder %s141, %s143
      %p150 = scmp.eq.s32.totalorder %s28, 1
      %p151 = por %p149, %p150
      %p152 = scmp.ne.s32.totalorder %s143, %s144
      %p153 = scmp.eq.s32.totalorder %s28, 0
      %p154 = por %p152, %p153
      %p155 = scmp.ne.s32.totalorder %s143, %s144
      %p156 = scmp.eq.s32.totalorder %s29, 1
      %p157 = por %p155, %p156
      %p159 = scmp.ne.s32.totalorder %s144, %s158
      %p160 = scmp.eq.s32.totalorder %s29, 0
      %p161 = por %p159, %p160
      %s163 = sadd.s32 %s162, 1
      %p166 = scmp.eq.s32.totalorder %s23, 1
      %p167 = scmp.ne.s32.totalorder %s162, %s164
      %p168 = scmp.eq.s32.totalorder %s23, 0
      %p169 = por %p167, %p168
      %p170 = scmp.ne.s32.totalorder %s162, %s164
      %p171 = scmp.eq.s32.totalorder %s28, 1
      %p172 = por %p170, %p171
      %p173 = scmp.ne.s32.totalorder %s164, %s165
      %p174 = scmp.eq.s32.totalorder %s28, 0
      %p175 = por %p173, %p174
      %p176 = scmp.ne.s32.totalorder %s164, %s165
      %p177 = scmp.eq.s32.totalorder %s29, 1
      %p178 = por %p176, %p177
      %p180 = scmp.ne.s32.totalorder %s165, %s179
      %p181 = scmp.eq.s32.totalorder %s29, 0
      %p182 = por %p180, %p181
      %s184 = sadd.s32 %s183, 1
      %p187 = scmp.eq.s32.totalorder %s23, 1
      %p188 = scmp.ne.s32.totalorder %s183, %s185
      %p189 = scmp.eq.s32.totalorder %s23, 0
      %p190 = por %p188, %p189
      %p191 = scmp.ne.s32.totalorder %s183, %s185
      %p192 = scmp.eq.s32.totalorder %s28, 1
      %p193 = por %p191, %p192
      %p194 = scmp.ne.s32.totalorder %s185, %s186
      %p195 = scmp.eq.s32.totalorder %s28, 0
      %p196 = por %p194, %p195
      %p197 = scmp.ne.s32.totalorder %s185, %s186
      %p198 = scmp.eq.s32.totalorder %s29, 1
      %p199 = por %p197, %p198
      %p201 = scmp.ne.s32.totalorder %s186, %s200
      %p202 = scmp.eq.s32.totalorder %s29, 0
      %p203 = por %p201, %p202
      %s205 = sadd.s32 %s204, 1
      %p208 = scmp.eq.s32.totalorder %s23, 1
      %p209 = scmp.ne.s32.totalorder %s204, %s206
      %p210 = scmp.eq.s32.totalorder %s23, 0
      %p211 = por %p209, %p210
      %p212 = scmp.ne.s32.totalorder %s204, %s206
      %p213 = scmp.eq.s32.totalorder %s28, 1
      %p214 = por %p212, %p213
      %p215 = scmp.ne.s32.totalorder %s206, %s207
      %p216 = scmp.eq.s32.totalorder %s28, 0
      %p217 = por %p215, %p216
      %p218 = scmp.ne.s32.totalorder %s206, %s207
      %p219 = scmp.eq.s32.totalorder %s29, 1
      %p220 = por %p218, %p219
      %p222 = scmp.ne.s32.totalorder %s207, %s221
      %p223 = scmp.eq.s32.totalorder %s29, 0
      %p224 = por %p222, %p223
      %s225 = ssub.s32 %s23, %s30
      %p226 = scmp.eq.s32.totalorder %s225, 0
      %s228 = sadd.s32 %s227, 1
      %s229 = scalar_select %p226, %s227, %s228
      %p232 = pneg %p226
      %p233 = scmp.eq.s32.totalorder %s23, 1
      %p234 = por %p232, %p233
      %p235 = scmp.ne.s32.totalorder %s227, %s230
      %p236 = scmp.eq.s32.totalorder %s23, 0
      %p237 = por %p235, %p236
      %p238 = scmp.ne.s32.totalorder %s227, %s230
      %p239 = scmp.eq.s32.totalorder %s28, 1
      %p240 = por %p238, %p239
      %p241 = scmp.ne.s32.totalorder %s230, %s231
      %p242 = scmp.eq.s32.totalorder %s28, 0
      %p243 = por %p241, %p242
      %p244 = scmp.ne.s32.totalorder %s230, %s231
      %p245 = scmp.eq.s32.totalorder %s29, 1
      %p246 = por %p244, %p245
      %p248 = scmp.ne.s32.totalorder %s231, %s247
      %p249 = scmp.eq.s32.totalorder %s29, 0
      %p250 = por %p248, %p249
      %s251 = ssub.s32 %s23, %s30
      %p252 = scmp.eq.s32.totalorder %s251, 0
      %s254 = sadd.s32 %s253, 1
      %s255 = scalar_select %p252, %s253, %s254
      %p258 = pneg %p252
      %p259 = scmp.eq.s32.totalorder %s23, 1
      %p260 = por %p258, %p259
      %p261 = scmp.ne.s32.totalorder %s253, %s256
      %p262 = scmp.eq.s32.totalorder %s23, 0
      %p263 = por %p261, %p262
      %p264 = scmp.ne.s32.totalorder %s253, %s256
      %p265 = scmp.eq.s32.totalorder %s28, 1
      %p266 = por %p264, %p265
      %p267 = scmp.ne.s32.totalorder %s256, %s257
      %p268 = scmp.eq.s32.totalorder %s28, 0
      %p269 = por %p267, %p268
      %p270 = scmp.ne.s32.totalorder %s256, %s257
      %p271 = scmp.eq.s32.totalorder %s29, 1
      %p272 = por %p270, %p271
      %p274 = scmp.ne.s32.totalorder %s257, %s273
      %p275 = scmp.eq.s32.totalorder %s29, 0
      %p276 = por %p274, %p275
      %p277 = scmp.le.s32.totalorder 1, %s23
      %p278 = scmp.lt.s32.totalorder %s23, 3
      %p279 = pnand %p277, %p278
      %p280 = pneg %p279
      // Predicated region
      $region9: #{deep_encoder_forward.1} parent=5 // pred_check
        _
      $region10: #{deep_encoder_forward.1} parent=5 // pred_check_branch
        %282 = sbr.rel (%p279) target = $region12
      $region11: #{deep_encoder_forward.1} parent=5 // pred_region
        %s283 = ssub.s32 %s23, 1
        // Predicated region
        $region13: #{deep_encoder_forward.1} parent=11 // pred_check
          %p284 = pneg %p70
        $region14: #{deep_encoder_forward.1} parent=11 // pred_check_branch
          %286 = sbr.rel (%p284) target = $region16
        $region15: #{deep_encoder_forward.1} parent=11 // pred_region
          _
        $region16: #{deep_encoder_forward.1} parent=11 // pred_fallthru
          _
        // Predicated region
        $region17: #{deep_encoder_forward.1} parent=11 // pred_check
          %p287 = pneg %p91
        $region18: #{deep_encoder_forward.1} parent=11 // pred_check_branch
          %289 = sbr.rel (%p287) target = $region20
        $region19: #{deep_encoder_forward.1} parent=11 // pred_region
          _
        $region20: #{deep_encoder_forward.1} parent=11 // pred_fallthru
          _
        // Predicated region
        $region21: #{deep_encoder_forward.1} parent=11 // pred_check
          %p290 = pneg %p112
        $region22: #{deep_encoder_forward.1} parent=11 // pred_check_branch
          %292 = sbr.rel (%p290) target = $region24
        $region23: #{deep_encoder_forward.1} parent=11 // pred_region
          _
        $region24: #{deep_encoder_forward.1} parent=11 // pred_fallthru
          _
        // Predicated region
        $region25: #{deep_encoder_forward.1} parent=11 // pred_check
          %p293 = pneg %p133
        $region26: #{deep_encoder_forward.1} parent=11 // pred_check_branch
          %295 = sbr.rel (%p293) target = $region28
        $region27: #{deep_encoder_forward.1} parent=11 // pred_region
          _
        $region28: #{deep_encoder_forward.1} parent=11 // pred_fallthru
          _
        // Predicated region
        $region29: #{deep_encoder_forward.1} parent=11 // pred_check
          %p296 = pneg %p154
        $region30: #{deep_encoder_forward.1} parent=11 // pred_check_branch
          %298 = sbr.rel (%p296) target = $region32
        $region31: #{deep_encoder_forward.1} parent=11 // pred_region
          _
        $region32: #{deep_encoder_forward.1} parent=11 // pred_fallthru
          _
        // Predicated region
        $region33: #{deep_encoder_forward.1} parent=11 // pred_check
          %p299 = pneg %p175
        $region34: #{deep_encoder_forward.1} parent=11 // pred_check_branch
          %301 = sbr.rel (%p299) target = $region36
        $region35: #{deep_encoder_forward.1} parent=11 // pred_region
          _
        $region36: #{deep_encoder_forward.1} parent=11 // pred_fallthru
          _
        // Predicated region
        $region37: #{deep_encoder_forward.1} parent=11 // pred_check
          %p302 = pneg %p196
        $region38: #{deep_encoder_forward.1} parent=11 // pred_check_branch
          %304 = sbr.rel (%p302) target = $region40
        $region39: #{deep_encoder_forward.1} parent=11 // pred_region
          _
        $region40: #{deep_encoder_forward.1} parent=11 // pred_fallthru
          _
        // Predicated region
        $region41: #{deep_encoder_forward.1} parent=11 // pred_check
          %p305 = pneg %p217
        $region42: #{deep_encoder_forward.1} parent=11 // pred_check_branch
          %307 = sbr.rel (%p305) target = $region44
        $region43: #{deep_encoder_forward.1} parent=11 // pred_region
          _
        $region44: #{deep_encoder_forward.1} parent=11 // pred_fallthru
          _
      $region12: #{deep_encoder_forward.1} parent=5 // pred_fallthru
        _
      %p308 = scmp.lt.s32.totalorder %s23, 2
      // Predicated region
      $region45: #{deep_encoder_forward.1} parent=5 // pred_check
        %p309 = pneg %p308
      $region46: #{deep_encoder_forward.1} parent=5 // pred_check_branch
        %311 = sbr.rel (%p309) target = $region48
      $region47: #{deep_encoder_forward.1} parent=5 // pred_region
        // Predicated region
        $region49: #{deep_encoder_forward.1} parent=47 // pred_check
          %p312 = pneg %p43
        $region50: #{deep_encoder_forward.1} parent=47 // pred_check_branch
          %314 = sbr.rel (%p312) target = $region52
        $region51: #{deep_encoder_forward.1} parent=47 // pred_region
          %p315 = scmp.lt.s32.totalorder %s23, 1
          %s316 = scalar_select %p315, %s23, 1
          %s317 = smul.addr %s316, 16
          %s318 = smul.addr %s317, 4
          %s319 = scalar_lea.vmem %s0, %s318
        $region52: #{deep_encoder_forward.1} parent=47 // pred_fallthru
          _
      $region48: #{deep_encoder_forward.1} parent=5 // pred_fallthru
        _
      %p320 = scmp.le.s32.totalorder 1, %s23
      %p321 = scmp.lt.s32.totalorder %s23, 3
      %p322 = pnand %p320, %p321
      %p323 = pneg %p322
      // Predicated region
      $region53: #{deep_encoder_forward.1} parent=5 // pred_check
        _
      $region54: #{deep_encoder_forward.1} parent=5 // pred_check_branch
        %325 = sbr.rel (%p322) target = $region56
      $region55: #{deep_encoder_forward.1} parent=5 // pred_region
        %s326 = ssub.s32 %s23, 1
        %p327 = scmp.lt.s32.totalorder %s28, 1
        %s328 = scalar_select %p327, %s28, 1
        %s329 = smul.addr %s328, 16
        %s330 = smul.addr %s329, 4
        %s331 = scalar_lea.vmem %s0, %s330
        %p332 = pneg %p49
        %p333 = pneg %p46
        %p334 = pneg %p70
        %p335 = pneg %p67
        %p336 = pneg %p91
        %p337 = pneg %p88
        %p338 = pneg %p112
        %p339 = pneg %p109
        %p340 = pneg %p133
        %p341 = pneg %p130
        %p342 = pneg %p154
        %p343 = pneg %p151
        %p344 = pneg %p175
        %p345 = pneg %p172
        %p346 = pneg %p196
        %p347 = pneg %p193
        %p348 = pneg %p217
        %p349 = pneg %p214
        %p350 = pneg %p243
        %p351 = pneg %p240
        %s352 = sand.u32 %s230, 1
        %s353 = scalar_lea.sflag [#allocation6], %s352
        %s354 = sand.u32 %s230, 1
        %s355 = smul.addr %s354, 64
        %s356 = scalar_lea.vmem [#allocation5], %s355
        %p357 = pneg %p269
        %p358 = pneg %p266
        %s359 = sand.u32 %s256, 1
        %s360 = scalar_lea.sflag [#allocation8], %s359
        %s361 = sand.u32 %s256, 1
        %s362 = smul.addr %s361, 8
        %s363 = scalar_lea.vmem [#allocation7], %s362
        %p364 = scmp.lt.s32.totalorder %s28, 1
        %s365 = scalar_select %p364, %s28, 1
        %s366 = smul.addr %s365, 16
        %s367 = smul.addr %s366, 4
        %s368 = scalar_lea.vmem %s0, %s367
        %vm370 = vcmask 130048
        %371 = vst.msk [vmem:[#allocation2] sm:$0xff] %vm370, 0.0
        %372 = vst.msk [vmem:[#allocation2 + $0x8] sm:$0xff] %vm370, 0.0
        %373 = vst.msk [vmem:[#allocation2 + $0x10] sm:$0xff] %vm370, 0.0
        %374 = vst.msk [vmem:[#allocation2 + $0x58] sm:$0xff] %vm370, 0.0
        %375 = vst.msk [vmem:[#allocation2 + $0x60] sm:$0xff] %vm370, 0.0
        %376 = vst.msk [vmem:[#allocation2 + $0x68] sm:$0xff] %vm370, 0.0
        %vm377 = vcmask 261120
        %378 = vst.msk [vmem:[#allocation3] sm:$0xff] %vm377, 0.0
        %379 = vst.msk [vmem:[#allocation3 + $0x10] sm:$0xff] %vm377, 0.0
        %v380 = vld [vmem:[%s368] sm:$0xff]
        %v381 = vld [vmem:[%s368 + $0x8] sm:$0xff]
        %v382 = vld [vmem:[%s368 + $0x10] sm:$0xff]
        %v383 = vld [vmem:[%s368 + $0x18] sm:$0xff]
        %v384 = vld [vmem:[%s368 + $0x20] sm:$0xff]
        %v385 = vld [vmem:[%s368 + $0x28] sm:$0xff]
        %v386 = vld [vmem:[%s368 + $0x30] sm:$0xff]
        %v387 = vld [vmem:[%s368 + $0x38] sm:$0xff]
        %v388 = vld [vmem:[%s1] sm:$0xf]
        %v389 = vld [vmem:[%s1 + $0x4] sm:$0xf]
        %v390 = vld [vmem:[%s1 + $0x8] sm:$0xf]
        %v391 = vld [vmem:[%s1 + $0xc] sm:$0xf]
        %v392 = vld [vmem:[%s1 + $0x10] sm:$0xf]
        %v393 = vld [vmem:[%s1 + $0x14] sm:$0xf]
        %v394 = vld [vmem:[%s1 + $0x18] sm:$0xf]
        %v395 = vld [vmem:[%s1 + $0x1c] sm:$0xf]
        %v396 = vld [vmem:[%s1 + $0x20] sm:$0xf]
        %v397 = vld [vmem:[%s1 + $0x24] sm:$0xf]
        %v398 = vld [vmem:[%s1 + $0x28] sm:$0xf]
        %v399 = vld [vmem:[%s1 + $0x2c] sm:$0xf]
        %v400 = vld [vmem:[%s1 + $0x30] sm:$0xf]
        %v401 = vld [vmem:[%s1 + $0x34] sm:$0xf]
        %v402 = vld [vmem:[%s1 + $0x38] sm:$0xf]
        %v403 = vld [vmem:[%s1 + $0x3c] sm:$0xf]
        %v404 = vld [vmem:[%s1 + $0x40] sm:$0xf]
        %v405 = vld [vmem:[%s1 + $0x44] sm:$0xf]
        %v406 = vld [vmem:[%s1 + $0x48] sm:$0xf]
        %v407 = vld [vmem:[%s1 + $0x4c] sm:$0xf]
        %v408 = vld [vmem:[%s1 + $0x50] sm:$0xf]
        %v409 = vld [vmem:[%s1 + $0x54] sm:$0xf]
        %v410 = vld [vmem:[%s1 + $0x58] sm:$0xf]
        %v411 = vld [vmem:[%s1 + $0x5c] sm:$0xf]
        %v412 = vld [vmem:[%s1 + $0x60] sm:$0xf]
        %v413 = vld [vmem:[%s1 + $0x64] sm:$0xf]
        %v414 = vld [vmem:[%s1 + $0x68] sm:$0xf]
        %v423 = vunpack.c.l.b16 %v380
        %v424 = vunpack.c.h.b16 %v380
        %v425 = vunpack.c.l.b16 %v381
        %v426 = vunpack.c.h.b16 %v381
        %v427 = vunpack.c.l.b16 %v382
        %v428 = vunpack.c.h.b16 %v382
        %v429 = vunpack.c.l.b16 %v383
        %v430 = vunpack.c.h.b16 %v383
        %v431 = vunpack.c.l.b16 %v384
        %v432 = vunpack.c.h.b16 %v384
        %v433 = vunpack.c.l.b16 %v385
        %v434 = vunpack.c.h.b16 %v385
        %v435 = vunpack.c.l.b16 %v386
        %v436 = vunpack.c.h.b16 %v386
        %v437 = vunpack.c.l.b16 %v387
        %v438 = vunpack.c.h.b16 %v387
        %v439 = vpack.c.b16 %v425, %v423
        %v440 = vpack.c.b16 %v426, %v424
        %v441 = vpack.c.b16 %v429, %v427
        %v442 = vpack.c.b16 %v430, %v428
        %v443 = vpack.c.b16 %v433, %v431
        %v444 = vpack.c.b16 %v434, %v432
        %v445 = vpack.c.b16 %v437, %v435
        %v446 = vpack.c.b16 %v438, %v436
        %v478 = vunpack.c.l.b16 %v388
        %v479 = vunpack.c.l.b16 %v389
        %v480 = vunpack.c.l.b16 %v390
        %v481 = vunpack.c.l.b16 %v391
        %v482 = vunpack.c.l.b16 %v392
        %v483 = vunpack.c.l.b16 %v393
        %v484 = vunpack.c.l.b16 %v394
        %v485 = vunpack.c.l.b16 %v395
        %v486 = vunpack.c.l.b16 %v396
        %v487 = vunpack.c.l.b16 %v397
        %v488 = vunpack.c.l.b16 %v398
        %v489 = vunpack.c.l.b16 %v399
        %v490 = vunpack.c.l.b16 %v400
        %v491 = vunpack.c.l.b16 %v401
        %v492 = vunpack.c.l.b16 %v402
        %v493 = vunpack.c.l.b16 %v403
        %v494 = vunpack.c.l.b16 %v404
        %v495 = vunpack.c.l.b16 %v405
        %v496 = vunpack.c.l.b16 %v406
        %v497 = vunpack.c.l.b16 %v407
        %v498 = vunpack.c.l.b16 %v408
        %v499 = vunpack.c.l.b16 %v409
        %v500 = vunpack.c.l.b16 %v410
        %v501 = vunpack.c.l.b16 %v411
        %v502 = vunpack.c.l.b16 %v412
        %v503 = vunpack.c.l.b16 %v413
        %v504 = vunpack.c.l.b16 %v414
        %v505 = vpack.c.b16 %v479, %v478
        %v506 = vpack.c.b16 %v481, %v480
        %v507 = vpack.c.b16 %v483, %v482
        %v508 = vpack.c.b16 %v485, %v484
        %v509 = vpack.c.b16 %v487, %v486
        %v510 = vpack.c.b16 %v489, %v488
        %v511 = vpack.c.b16 %v491, %v490
        %v512 = vpack.c.b16 %v493, %v492
        %v513 = vpack.c.b16 %v495, %v494
        %v514 = vpack.c.b16 %v497, %v496
        %v515 = vpack.c.b16 %v499, %v498
        %v516 = vpack.c.b16 %v501, %v500
        %v517 = vpack.c.b16 %v503, %v502
        %v518 = vpack.c.b16 %v504, %v504
        %vm532 = vcmask 719872
        %v534 = vsel %vm532, %v440, 0
        %v537 = vsel %vm532, %v442, 0
        %v540 = vsel %vm532, %v444, 0
        %v543 = vsel %vm532, %v446, 0
        %vm545 = vcmask 1043456
        %v547 = vsel %vm545, %v518, 0
        %549 = vmatpush.bf16.msra.mxu0 %v512
        %550 = vmatpush.bf16.msra.mxu0 %v511
        %551 = vmatpush.bf16.msra.mxu0 %v510
        %552 = vmatpush.bf16.msra.mxu0 %v509
        %553 = vmatpush.bf16.msra.mxu0 %v508
        %554 = vmatpush.bf16.msra.mxu0 %v507
        %555 = vmatpush.bf16.msra.mxu0 %v506
        %556 = vmatpush.bf16.msra.mxu0 %v505
        %557 = vmatmul.bf16.gmra.mxu0 %v439
        %v558 = vpop.f32.mrf.mxu0
        %v559 = vadd.f32 0.0, %v558
        %v560 = vpop.f32.mrf.mxu0
        %v561 = vadd.f32 0.0, %v560
        %562 = vmatmul.bf16.gmra.mxu0 %v441
        %v563 = vpop.f32.mrf.mxu0
        %v564 = vadd.f32 0.0, %v563
        %v565 = vpop.f32.mrf.mxu0
        %v566 = vadd.f32 0.0, %v565
        %567 = vmatmul.bf16.gmra.mxu0 %v443
        %v568 = vpop.f32.mrf.mxu0
        %v569 = vadd.f32 0.0, %v568
        %v570 = vpop.f32.mrf.mxu0
        %v571 = vadd.f32 0.0, %v570
        %572 = vmatmul.bf16.gmra.mxu0 %v445
        %v573 = vpop.f32.mrf.mxu0
        %v574 = vadd.f32 0.0, %v573
        %v575 = vpop.f32.mrf.mxu0
        %v576 = vadd.f32 0.0, %v575
        %577 = vdwg.mxu0
        %578 = vmatpush.bf16.msra.mxu0 0
        %579 = vmatpush.bf16.msra.mxu0 0
        %580 = vmatpush.bf16.msra.mxu0 %v547
        %581 = vmatpush.bf16.msra.mxu0 %v517
        %582 = vmatpush.bf16.msra.mxu0 %v516
        %583 = vmatpush.bf16.msra.mxu0 %v515
        %584 = vmatpush.bf16.msra.mxu0 %v514
        %585 = vmatpush.bf16.msra.mxu0 %v513
        %586 = vmatmul.bf16.gmra.mxu0 %v534
        %v587 = vpop.f32.mrf.mxu0
        %v588 = vadd.f32 %v559, %v587
        %v589 = vpop.f32.mrf.mxu0
        %v590 = vadd.f32 %v561, %v589
        %591 = vmatmul.bf16.gmra.mxu0 %v537
        %v592 = vpop.f32.mrf.mxu0
        %v593 = vadd.f32 %v564, %v592
        %v594 = vpop.f32.mrf.mxu0
        %v595 = vadd.f32 %v566, %v594
        %596 = vmatmul.bf16.gmra.mxu0 %v540
        %v597 = vpop.f32.mrf.mxu0
        %v598 = vadd.f32 %v569, %v597
        %v599 = vpop.f32.mrf.mxu0
        %v600 = vadd.f32 %v571, %v599
        %601 = vmatmul.bf16.gmra.mxu0 %v543
        %v602 = vpop.f32.mrf.mxu0
        %v603 = vadd.f32 %v574, %v602
        %v604 = vpop.f32.mrf.mxu0
        %v605 = vadd.f32 %v576, %v604
        %606 = vdwg.mxu0
        %v607 = vld [vmem:[%s5] sm:$0x1]
        %v608 = vld [vmem:[%s5 + $0x1] sm:$0x1]
        %v609 = vsel %vm370, %v588, 0.0
        %v610 = vsel %vm370, %v590, 0.0
        %v611 = vadd.f32 %v609, %v610
        %v612 = vsel %vm370, %v593, 0.0
        %v613 = vadd.f32 %v611, %v612
        %v614 = vsel %vm370, %v595, 0.0
        %v615 = vadd.f32 %v613, %v614
        %v616 = vsel %vm370, %v598, 0.0
        %v617 = vadd.f32 %v615, %v616
        %v618 = vsel %vm370, %v600, 0.0
        %v619 = vadd.f32 %v617, %v618
        %v620 = vsel %vm370, %v603, 0.0
        %v621 = vadd.f32 %v619, %v620
        %v622 = vsel %vm370, %v605, 0.0
        %v623 = vadd.f32 %v621, %v622
        %v624 = vrot.slane %v623, 4
        %v625 = vadd.f32 %v623, %v624
        %v626 = vrot.slane %v625, 2
        %v627 = vadd.f32 %v625, %v626
        %v628 = vrot.slane %v627, 1
        %v629 = vadd.f32 %v627, %v628
        %v630 = vrcp.pop 64.0
        %v631 = vmul.f32 64.0, %v630
        %v632 = vsub.f32 1.0, %v631
        %v633 = vmul.f32 %v630, %v632
        %v634 = vadd.f32 %v630, %v633
        %vm635 = vweird.f32 %v630
        %v636 = vsel %vm635, %v630, %v634
        %v637 = vmul.f32 %v629, %v636
        %v638 = vsub.f32 %v588, %v637
        %v639 = vsub.f32 %v590, %v637
        %v640 = vsub.f32 %v593, %v637
        %v641 = vsub.f32 %v595, %v637
        %v642 = vsub.f32 %v598, %v637
        %v643 = vsub.f32 %v600, %v637
        %v644 = vsub.f32 %v603, %v637
        %v645 = vsub.f32 %v605, %v637
        %v646 = vmul.f32 %v638, %v638
        %v647 = vmul.f32 %v639, %v639
        %v648 = vmul.f32 %v640, %v640
        %v649 = vmul.f32 %v641, %v641
        %v650 = vmul.f32 %v642, %v642
        %v651 = vmul.f32 %v643, %v643
        %v652 = vmul.f32 %v644, %v644
        %v653 = vmul.f32 %v645, %v645
        %v654 = vsel %vm370, %v646, 0.0
        %v655 = vsel %vm370, %v647, 0.0
        %v656 = vadd.f32 %v654, %v655
        %v657 = vsel %vm370, %v648, 0.0
        %v658 = vadd.f32 %v656, %v657
        %v659 = vsel %vm370, %v649, 0.0
        %v660 = vadd.f32 %v658, %v659
        %v661 = vsel %vm370, %v650, 0.0
        %v662 = vadd.f32 %v660, %v661
        %v663 = vsel %vm370, %v651, 0.0
        %v664 = vadd.f32 %v662, %v663
        %v665 = vsel %vm370, %v652, 0.0
        %v666 = vadd.f32 %v664, %v665
        %v667 = vsel %vm370, %v653, 0.0
        %v668 = vadd.f32 %v666, %v667
        %v669 = vrot.slane %v668, 4
        %v670 = vadd.f32 %v668, %v669
        %v671 = vrot.slane %v670, 2
        %v672 = vadd.f32 %v670, %v671
        %v673 = vrot.slane %v672, 1
        %v674 = vadd.f32 %v672, %v673
        %v675 = vmul.f32 %v674, %v636
        %v676 = vadd.f32 %v675, 1e-05
        %v677 = vrsqrt.pop %v676
        %v678 = vmul.f32 %v677, %v676
        %v679 = vmul.f32 %v678, %v677
        %v680 = vmul.f32 0.5, %v679
        %v681 = vsub.f32 1.5, %v680
        %v682 = vmul.f32 %v677, %v681
        %vm683 = vweird.f32 %v676
        %vm684 = vweird.f32 %v677
        %vm685 = vmor %vm683, %vm684
        %v686 = vsel %vm685, %v677, %v682
        %v687 = vmul.f32 %v607, %v686
        %v688 = vmul.f32 %v637, %v687
        %v689 = vsub.f32 %v608, %v688
        %v690 = vperm.slane %v687, 0
        %v691 = vmul.f32 %v588, %v690
        %v692 = vmul.f32 %v590, %v690
        %v693 = vmul.f32 %v593, %v690
        %v694 = vmul.f32 %v595, %v690
        %v695 = vmul.f32 %v598, %v690
        %v696 = vmul.f32 %v600, %v690
        %v697 = vmul.f32 %v603, %v690
        %v698 = vmul.f32 %v605, %v690
        %v699 = vperm.slane %v689, 0
        %v700 = vadd.f32 %v691, %v699
        %v701 = vadd.f32 %v692, %v699
        %v702 = vadd.f32 %v693, %v699
        %v703 = vadd.f32 %v694, %v699
        %v704 = vadd.f32 %v695, %v699
        %v705 = vadd.f32 %v696, %v699
        %v706 = vadd.f32 %v697, %v699
        %v707 = vadd.f32 %v698, %v699
        %vm708 = vcmp.ge.f32.partialorder %v700, 0.0
        %vm709 = vcmp.ge.f32.partialorder %v701, 0.0
        %vm710 = vcmp.ge.f32.partialorder %v702, 0.0
        %vm711 = vcmp.ge.f32.partialorder %v703, 0.0
        %vm712 = vcmp.ge.f32.partialorder %v704, 0.0
        %vm713 = vcmp.ge.f32.partialorder %v705, 0.0
        %vm714 = vcmp.ge.f32.partialorder %v706, 0.0
        %vm715 = vcmp.ge.f32.partialorder %v707, 0.0
        %v716 = vmul.f32 %v700, 0.1
        %v717 = vmul.f32 %v701, 0.1
        %v718 = vmul.f32 %v702, 0.1
        %v719 = vmul.f32 %v703, 0.1
        %v720 = vmul.f32 %v704, 0.1
        %v721 = vmul.f32 %v705, 0.1
        %v722 = vmul.f32 %v706, 0.1
        %v723 = vmul.f32 %v707, 0.1
        %v724 = vsel %vm708, %v700, %v716
        %v725 = vsel %vm709, %v701, %v717
        %v726 = vsel %vm710, %v702, %v718
        %v727 = vsel %vm711, %v703, %v719
        %v728 = vsel %vm712, %v704, %v720
        %v729 = vsel %vm713, %v705, %v721
        %v730 = vsel %vm714, %v706, %v722
        %v731 = vsel %vm715, %v707, %v723
        %732 = vst.msk [vmem:[#allocation2 + $0x18] sm:$0xff] %vm370, %v724
        %733 = vst.msk [vmem:[#allocation2 + $0x20] sm:$0xff] %vm370, %v725
        %734 = vst.msk [vmem:[#allocation2 + $0x28] sm:$0xff] %vm370, %v726
        %735 = vst.msk [vmem:[#allocation2 + $0x30] sm:$0xff] %vm370, %v727
        %736 = vst.msk [vmem:[#allocation2 + $0x38] sm:$0xff] %vm370, %v728
        %737 = vst.msk [vmem:[#allocation2 + $0x40] sm:$0xff] %vm370, %v729
        %738 = vst.msk [vmem:[#allocation2 + $0x48] sm:$0xff] %vm370, %v730
        %739 = vst.msk [vmem:[#allocation2 + $0x50] sm:$0xff] %vm370, %v731
        %v740 = vld [vmem:[#allocation2 + $0x3] sm:$0xff]
        %v741 = vld [vmem:[#allocation2 + $0xb] sm:$0xff]
        %v742 = vld [vmem:[#allocation2 + $0x13] sm:$0xff]
        %v743 = vld [vmem:[#allocation2 + $0x1b] sm:$0xff]
        %v744 = vld [vmem:[#allocation2 + $0x23] sm:$0xff]
        %v745 = vld [vmem:[#allocation2 + $0x2b] sm:$0xff]
        %v746 = vld [vmem:[#allocation2 + $0x33] sm:$0xff]
        %v747 = vld [vmem:[#allocation2 + $0x3b] sm:$0xff]
        %v748 = vld [vmem:[#allocation2 + $0x4] sm:$0xff]
        %v749 = vld [vmem:[#allocation2 + $0xc] sm:$0xff]
        %v750 = vld [vmem:[#allocation2 + $0x14] sm:$0xff]
        %v751 = vld [vmem:[#allocation2 + $0x1c] sm:$0xff]
        %v752 = vld [vmem:[#allocation2 + $0x24] sm:$0xff]
        %v753 = vld [vmem:[#allocation2 + $0x2c] sm:$0xff]
        %v754 = vld [vmem:[#allocation2 + $0x34] sm:$0xff]
        %v755 = vld [vmem:[#allocation2 + $0x3c] sm:$0xff]
        %v756 = vld [vmem:[#allocation2 + $0x5] sm:$0xff]
        %v757 = vld [vmem:[#allocation2 + $0xd] sm:$0xff]
        %v758 = vld [vmem:[#allocation2 + $0x15] sm:$0xff]
        %v759 = vld [vmem:[#allocation2 + $0x1d] sm:$0xff]
        %v760 = vld [vmem:[#allocation2 + $0x25] sm:$0xff]
        %v761 = vld [vmem:[#allocation2 + $0x2d] sm:$0xff]
        %v762 = vld [vmem:[#allocation2 + $0x35] sm:$0xff]
        %v763 = vld [vmem:[#allocation2 + $0x3d] sm:$0xff]
        %v764 = vld [vmem:[#allocation2 + $0x7] sm:$0xff]
        %v765 = vld [vmem:[#allocation2 + $0xf] sm:$0xff]
        %v766 = vld [vmem:[#allocation2 + $0x17] sm:$0xff]
        %v767 = vld [vmem:[#allocation2 + $0x1f] sm:$0xff]
        %v768 = vld [vmem:[#allocation2 + $0x27] sm:$0xff]
        %v769 = vld [vmem:[#allocation2 + $0x2f] sm:$0xff]
        %v770 = vld [vmem:[#allocation2 + $0x37] sm:$0xff]
        %v771 = vld [vmem:[#allocation2 + $0x3f] sm:$0xff]
        %v772 = vld [vmem:[#allocation2 + $0x8] sm:$0xff]
        %v773 = vld [vmem:[#allocation2 + $0x10] sm:$0xff]
        %v774 = vld [vmem:[#allocation2 + $0x18] sm:$0xff]
        %v775 = vld [vmem:[#allocation2 + $0x20] sm:$0xff]
        %v776 = vld [vmem:[#allocation2 + $0x28] sm:$0xff]
        %v777 = vld [vmem:[#allocation2 + $0x30] sm:$0xff]
        %v778 = vld [vmem:[#allocation2 + $0x38] sm:$0xff]
        %v779 = vld [vmem:[#allocation2 + $0x40] sm:$0xff]
        %v780 = vld [vmem:[#allocation2 + $0x9] sm:$0xff]
        %v781 = vld [vmem:[#allocation2 + $0x11] sm:$0xff]
        %v782 = vld [vmem:[#allocation2 + $0x19] sm:$0xff]
        %v783 = vld [vmem:[#allocation2 + $0x21] sm:$0xff]
        %v784 = vld [vmem:[#allocation2 + $0x29] sm:$0xff]
        %v785 = vld [vmem:[#allocation2 + $0x31] sm:$0xff]
        %v786 = vld [vmem:[#allocation2 + $0x39] sm:$0xff]
        %v787 = vld [vmem:[#allocation2 + $0x41] sm:$0xff]
        %v788 = vld [vmem:[#allocation2 + $0x43] sm:$0xff]
        %v789 = vld [vmem:[#allocation2 + $0x44] sm:$0xff]
        %798 = vrot.lane.b32.xlu0 %v748, 16
        %v799 = vpop.permute.xlu0 %798
        %800 = vrot.lane.b32.xlu0 %v749, 16
        %v801 = vpop.permute.xlu0 %800
        %802 = vrot.lane.b32.xlu0 %v750, 16
        %v803 = vpop.permute.xlu0 %802
        %804 = vrot.lane.b32.xlu0 %v751, 16
        %v805 = vpop.permute.xlu0 %804
        %806 = vrot.lane.b32.xlu0 %v752, 16
        %v807 = vpop.permute.xlu0 %806
        %808 = vrot.lane.b32.xlu0 %v753, 16
        %v809 = vpop.permute.xlu0 %808
        %810 = vrot.lane.b32.xlu0 %v754, 16
        %v811 = vpop.permute.xlu0 %810
        %812 = vrot.lane.b32.xlu0 %v755, 16
        %v813 = vpop.permute.xlu0 %812
        %830 = vrot.lane.b32.xlu0 %v756, 32
        %v831 = vpop.permute.xlu0 %830
        %832 = vrot.lane.b32.xlu0 %v757, 32
        %v833 = vpop.permute.xlu0 %832
        %834 = vrot.lane.b32.xlu0 %v758, 32
        %v835 = vpop.permute.xlu0 %834
        %836 = vrot.lane.b32.xlu0 %v759, 32
        %v837 = vpop.permute.xlu0 %836
        %838 = vrot.lane.b32.xlu0 %v760, 32
        %v839 = vpop.permute.xlu0 %838
        %840 = vrot.lane.b32.xlu0 %v761, 32
        %v841 = vpop.permute.xlu0 %840
        %842 = vrot.lane.b32.xlu0 %v762, 32
        %v843 = vpop.permute.xlu0 %842
        %844 = vrot.lane.b32.xlu0 %v763, 32
        %v845 = vpop.permute.xlu0 %844
        %862 = vrot.lane.b32.xlu0 %v764, 48
        %v863 = vpop.permute.xlu0 %862
        %864 = vrot.lane.b32.xlu0 %v765, 48
        %v865 = vpop.permute.xlu0 %864
        %866 = vrot.lane.b32.xlu0 %v766, 48
        %v867 = vpop.permute.xlu0 %866
        %868 = vrot.lane.b32.xlu0 %v767, 48
        %v869 = vpop.permute.xlu0 %868
        %870 = vrot.lane.b32.xlu0 %v768, 48
        %v871 = vpop.permute.xlu0 %870
        %872 = vrot.lane.b32.xlu0 %v769, 48
        %v873 = vpop.permute.xlu0 %872
        %874 = vrot.lane.b32.xlu0 %v770, 48
        %v875 = vpop.permute.xlu0 %874
        %876 = vrot.lane.b32.xlu0 %v771, 48
        %v877 = vpop.permute.xlu0 %876
        %894 = vrot.lane.b32.xlu0 %v772, 64
        %v895 = vpop.permute.xlu0 %894
        %896 = vrot.lane.b32.xlu0 %v773, 64
        %v897 = vpop.permute.xlu0 %896
        %898 = vrot.lane.b32.xlu0 %v774, 64
        %v899 = vpop.permute.xlu0 %898
        %900 = vrot.lane.b32.xlu0 %v775, 64
        %v901 = vpop.permute.xlu0 %900
        %902 = vrot.lane.b32.xlu0 %v776, 64
        %v903 = vpop.permute.xlu0 %902
        %904 = vrot.lane.b32.xlu0 %v777, 64
        %v905 = vpop.permute.xlu0 %904
        %906 = vrot.lane.b32.xlu0 %v778, 64
        %v907 = vpop.permute.xlu0 %906
        %908 = vrot.lane.b32.xlu0 %v779, 64
        %v909 = vpop.permute.xlu0 %908
        %926 = vrot.lane.b32.xlu0 %v780, 80
        %v927 = vpop.permute.xlu0 %926
        %928 = vrot.lane.b32.xlu0 %v781, 80
        %v929 = vpop.permute.xlu0 %928
        %930 = vrot.lane.b32.xlu0 %v782, 80
        %v931 = vpop.permute.xlu0 %930
        %932 = vrot.lane.b32.xlu0 %v783, 80
        %v933 = vpop.permute.xlu0 %932
        %934 = vrot.lane.b32.xlu0 %v784, 80
        %v935 = vpop.permute.xlu0 %934
        %936 = vrot.lane.b32.xlu0 %v785, 80
        %v937 = vpop.permute.xlu0 %936
        %938 = vrot.lane.b32.xlu0 %v786, 80
        %v939 = vpop.permute.xlu0 %938
        %940 = vrot.lane.b32.xlu0 %v787, 80
        %v941 = vpop.permute.xlu0 %940
        %958 = vrot.lane.b32.xlu0 %v741, 96
        %v959 = vpop.permute.xlu0 %958
        %960 = vrot.lane.b32.xlu0 %v742, 96
        %v961 = vpop.permute.xlu0 %960
        %962 = vrot.lane.b32.xlu0 %v743, 96
        %v963 = vpop.permute.xlu0 %962
        %964 = vrot.lane.b32.xlu0 %v744, 96
        %v965 = vpop.permute.xlu0 %964
        %966 = vrot.lane.b32.xlu0 %v745, 96
        %v967 = vpop.permute.xlu0 %966
        %968 = vrot.lane.b32.xlu0 %v746, 96
        %v969 = vpop.permute.xlu0 %968
        %970 = vrot.lane.b32.xlu0 %v747, 96
        %v971 = vpop.permute.xlu0 %970
        %972 = vrot.lane.b32.xlu0 %v788, 96
        %v973 = vpop.permute.xlu0 %972
        %983 = vrot.lane.b32.xlu0 %v749, 112
        %v984 = vpop.permute.xlu0 %983
        %985 = vrot.lane.b32.xlu0 %v750, 112
        %v986 = vpop.permute.xlu0 %985
        %987 = vrot.lane.b32.xlu0 %v751, 112
        %v988 = vpop.permute.xlu0 %987
        %989 = vrot.lane.b32.xlu0 %v752, 112
        %v990 = vpop.permute.xlu0 %989
        %991 = vrot.lane.b32.xlu0 %v753, 112
        %v992 = vpop.permute.xlu0 %991
        %993 = vrot.lane.b32.xlu0 %v754, 112
        %v994 = vpop.permute.xlu0 %993
        %995 = vrot.lane.b32.xlu0 %v755, 112
        %v996 = vpop.permute.xlu0 %995
        %997 = vrot.lane.b32.xlu0 %v789, 112
        %v998 = vpop.permute.xlu0 %997
        %v1007 = vsel %vm370, %v740, %v799
        %v1008 = vsel %vm370, %v741, %v801
        %v1009 = vsel %vm370, %v742, %v803
        %v1010 = vsel %vm370, %v743, %v805
        %v1011 = vsel %vm370, %v744, %v807
        %v1012 = vsel %vm370, %v745, %v809
        %v1013 = vsel %vm370, %v746, %v811
        %v1014 = vsel %vm370, %v747, %v813
        %v1015 = vsel %vm377, %v1007, %v831
        %v1016 = vsel %vm377, %v1008, %v833
        %v1017 = vsel %vm377, %v1009, %v835
        %v1018 = vsel %vm377, %v1010, %v837
        %v1019 = vsel %vm377, %v1011, %v839
        %v1020 = vsel %vm377, %v1012, %v841
        %v1021 = vsel %vm377, %v1013, %v843
        %v1022 = vsel %vm377, %v1014, %v845
        %vm1023 = vcmask 392192
        %v1024 = vsel %vm1023, %v1015, %v863
        %v1025 = vsel %vm1023, %v1016, %v865
        %v1026 = vsel %vm1023, %v1017, %v867
        %v1027 = vsel %vm1023, %v1018, %v869
        %v1028 = vsel %vm1023, %v1019, %v871
        %v1029 = vsel %vm1023, %v1020, %v873
        %v1030 = vsel %vm1023, %v1021, %v875
        %v1031 = vsel %vm1023, %v1022, %v877
        %vm1032 = vcmask 523264
        %v1033 = vsel %vm1032, %v1024, %v895
        %v1034 = vsel %vm1032, %v1025, %v897
        %v1035 = vsel %vm1032, %v1026, %v899
        %v1036 = vsel %vm1032, %v1027, %v901
        %v1037 = vsel %vm1032, %v1028, %v903
        %v1038 = vsel %vm1032, %v1029, %v905
        %v1039 = vsel %vm1032, %v1030, %v907
        %v1040 = vsel %vm1032, %v1031, %v909
        %vm1041 = vcmask 654336
        %v1042 = vsel %vm1041, %v1033, %v927
        %v1043 = vsel %vm1041, %v1034, %v929
        %v1044 = vsel %vm1041, %v1035, %v931
        %v1045 = vsel %vm1041, %v1036, %v933
        %v1046 = vsel %vm1041, %v1037, %v935
        %v1047 = vsel %vm1041, %v1038, %v937
        %v1048 = vsel %vm1041, %v1039, %v939
        %v1049 = vsel %vm1041, %v1040, %v941
        %vm1050 = vcmask 785408
        %v1051 = vsel %vm1050, %v1042, %v959
        %v1052 = vsel %vm1050, %v1043, %v961
        %v1053 = vsel %vm1050, %v1044, %v963
        %v1054 = vsel %vm1050, %v1045, %v965
        %v1055 = vsel %vm1050, %v1046, %v967
        %v1056 = vsel %vm1050, %v1047, %v969
        %v1057 = vsel %vm1050, %v1048, %v971
        %v1058 = vsel %vm1050, %v1049, %v973
        %vm1059 = vcmask 916480
        %v1060 = vsel %vm1059, %v1051, %v984
        %v1061 = vsel %vm1059, %v1052, %v986
        %v1062 = vsel %vm1059, %v1053, %v988
        %v1063 = vsel %vm1059, %v1054, %v990
        %v1064 = vsel %vm1059, %v1055, %v992
        %v1065 = vsel %vm1059, %v1056, %v994
        %v1066 = vsel %vm1059, %v1057, %v996
        %v1067 = vsel %vm1059, %v1058, %v998
        %v1068 = vld [vmem:[%s6] sm:$0xff]
        %v1069 = vld [vmem:[%s6 + $0x20] sm:$0xff]
        %v1070 = vld [vmem:[%s6 + $0x40] sm:$0xff]
        %v1071 = vld [vmem:[%s6 + $0x60] sm:$0xff]
        %v1072 = vld [vmem:[%s6 + $0x80] sm:$0xff]
        %v1073 = vld [vmem:[%s6 + $0xa0] sm:$0xff]
        %v1074 = vld [vmem:[%s6 + $0xc0] sm:$0xff]
        %v1075 = vld [vmem:[%s6 + $0xe0] sm:$0xff]
        %v1076 = vmul.f32 %v1060, %v1068
        %v1077 = vmul.f32 %v1061, %v1069
        %v1078 = vmul.f32 %v1062, %v1070
        %v1079 = vmul.f32 %v1063, %v1071
        %v1080 = vmul.f32 %v1064, %v1072
        %v1081 = vmul.f32 %v1065, %v1073
        %v1082 = vmul.f32 %v1066, %v1074
        %v1083 = vmul.f32 %v1067, %v1075
        %v1084 = vpack.c.bf16 %v1076, %v1076
        %v1085 = vpack.c.bf16 %v1077, %v1077
        %v1086 = vpack.c.bf16 %v1078, %v1078
        %v1087 = vpack.c.bf16 %v1079, %v1079
        %v1088 = vpack.c.bf16 %v1080, %v1080
        %v1089 = vpack.c.bf16 %v1081, %v1081
        %v1090 = vpack.c.bf16 %v1082, %v1082
        %v1091 = vpack.c.bf16 %v1083, %v1083
        %1092 = vst [vmem:[#allocation4] sm:$0xf] %v1084
        %1093 = vst [vmem:[#allocation4 + $0x1c] sm:$0xf] %v1085
        %1094 = vst [vmem:[#allocation4 + $0x38] sm:$0xf] %v1086
        %1095 = vst [vmem:[#allocation4 + $0x54] sm:$0xf] %v1087
        %1096 = vst [vmem:[#allocation4 + $0x70] sm:$0xf] %v1088
        %1097 = vst [vmem:[#allocation4 + $0x8c] sm:$0xf] %v1089
        %1098 = vst [vmem:[#allocation4 + $0xa8] sm:$0xf] %v1090
        %1099 = vst [vmem:[#allocation4 + $0xc4] sm:$0xf] %v1091
        %v1100 = vld [vmem:[#allocation2 + $0xd] sm:$0xff]
        %v1101 = vld [vmem:[#allocation2 + $0x15] sm:$0xff]
        %v1102 = vld [vmem:[#allocation2 + $0x1d] sm:$0xff]
        %v1103 = vld [vmem:[#allocation2 + $0x25] sm:$0xff]
        %v1104 = vld [vmem:[#allocation2 + $0x2d] sm:$0xff]
        %v1105 = vld [vmem:[#allocation2 + $0x35] sm:$0xff]
        %v1106 = vld [vmem:[#allocation2 + $0x3d] sm:$0xff]
        %v1107 = vld [vmem:[#allocation2 + $0x45] sm:$0xff]
        %v1108 = vld [vmem:[#allocation2 + $0x13] sm:$0xff]
        %v1109 = vld [vmem:[#allocation2 + $0x1b] sm:$0xff]
        %v1110 = vld [vmem:[#allocation2 + $0x23] sm:$0xff]
        %v1111 = vld [vmem:[#allocation2 + $0x2b] sm:$0xff]
        %v1112 = vld [vmem:[#allocation2 + $0x33] sm:$0xff]
        %v1113 = vld [vmem:[#allocation2 + $0x3b] sm:$0xff]
        %v1114 = vld [vmem:[#allocation2 + $0x43] sm:$0xff]
        %v1115 = vld [vmem:[#allocation2 + $0x4b] sm:$0xff]
        %v1116 = vld [vmem:[#allocation2 + $0x14] sm:$0xff]
        %v1117 = vld [vmem:[#allocation2 + $0x1c] sm:$0xff]
        %v1118 = vld [vmem:[#allocation2 + $0x24] sm:$0xff]
        %v1119 = vld [vmem:[#allocation2 + $0x2c] sm:$0xff]
        %v1120 = vld [vmem:[#allocation2 + $0x34] sm:$0xff]
        %v1121 = vld [vmem:[#allocation2 + $0x3c] sm:$0xff]
        %v1122 = vld [vmem:[#allocation2 + $0x44] sm:$0xff]
        %v1123 = vld [vmem:[#allocation2 + $0x4c] sm:$0xff]
        %v1124 = vld [vmem:[#allocation2 + $0x4d] sm:$0xff]
        %v1125 = vld [vmem:[#allocation2 + $0x17] sm:$0xff]
        %v1126 = vld [vmem:[#allocation2 + $0x1f] sm:$0xff]
        %v1127 = vld [vmem:[#allocation2 + $0x27] sm:$0xff]
        %v1128 = vld [vmem:[#allocation2 + $0x2f] sm:$0xff]
        %v1129 = vld [vmem:[#allocation2 + $0x37] sm:$0xff]
        %v1130 = vld [vmem:[#allocation2 + $0x3f] sm:$0xff]
        %v1131 = vld [vmem:[#allocation2 + $0x47] sm:$0xff]
        %v1132 = vld [vmem:[#allocation2 + $0x4f] sm:$0xff]
        %v1133 = vld [vmem:[#allocation2 + $0x18] sm:$0xff]
        %v1134 = vld [vmem:[#allocation2 + $0x20] sm:$0xff]
        %v1135 = vld [vmem:[#allocation2 + $0x28] sm:$0xff]
        %v1136 = vld [vmem:[#allocation2 + $0x30] sm:$0xff]
        %v1137 = vld [vmem:[#allocation2 + $0x38] sm:$0xff]
        %v1138 = vld [vmem:[#allocation2 + $0x40] sm:$0xff]
        %v1139 = vld [vmem:[#allocation2 + $0x48] sm:$0xff]
        %v1140 = vld [vmem:[#allocation2 + $0x50] sm:$0xff]
        %v1141 = vld [vmem:[#allocation2 + $0x19] sm:$0xff]
        %v1142 = vld [vmem:[#allocation2 + $0x21] sm:$0xff]
        %v1143 = vld [vmem:[#allocation2 + $0x29] sm:$0xff]
        %v1144 = vld [vmem:[#allocation2 + $0x31] sm:$0xff]
        %v1145 = vld [vmem:[#allocation2 + $0x39] sm:$0xff]
        %v1146 = vld [vmem:[#allocation2 + $0x41] sm:$0xff]
        %v1147 = vld [vmem:[#allocation2 + $0x49] sm:$0xff]
        %v1148 = vld [vmem:[#allocation2 + $0x51] sm:$0xff]
        %v1149 = vld [vmem:[#allocation2 + $0x53] sm:$0xff]
        %1158 = vrot.lane.b32.xlu0 %v1108, 16
        %v1159 = vpop.permute.xlu0 %1158
        %1160 = vrot.lane.b32.xlu0 %v1109, 16
        %v1161 = vpop.permute.xlu0 %1160
        %1162 = vrot.lane.b32.xlu0 %v1110, 16
        %v1163 = vpop.permute.xlu0 %1162
        %1164 = vrot.lane.b32.xlu0 %v1111, 16
        %v1165 = vpop.permute.xlu0 %1164
        %1166 = vrot.lane.b32.xlu0 %v1112, 16
        %v1167 = vpop.permute.xlu0 %1166
        %1168 = vrot.lane.b32.xlu0 %v1113, 16
        %v1169 = vpop.permute.xlu0 %1168
        %1170 = vrot.lane.b32.xlu0 %v1114, 16
        %v1171 = vpop.permute.xlu0 %1170
        %1172 = vrot.lane.b32.xlu0 %v1115, 16
        %v1173 = vpop.permute.xlu0 %1172
        %1190 = vrot.lane.b32.xlu0 %v1116, 32
        %v1191 = vpop.permute.xlu0 %1190
        %1192 = vrot.lane.b32.xlu0 %v1117, 32
        %v1193 = vpop.permute.xlu0 %1192
        %1194 = vrot.lane.b32.xlu0 %v1118, 32
        %v1195 = vpop.permute.xlu0 %1194
        %1196 = vrot.lane.b32.xlu0 %v1119, 32
        %v1197 = vpop.permute.xlu0 %1196
        %1198 = vrot.lane.b32.xlu0 %v1120, 32
        %v1199 = vpop.permute.xlu0 %1198
        %1200 = vrot.lane.b32.xlu0 %v1121, 32
        %v1201 = vpop.permute.xlu0 %1200
        %1202 = vrot.lane.b32.xlu0 %v1122, 32
        %v1203 = vpop.permute.xlu0 %1202
        %1204 = vrot.lane.b32.xlu0 %v1123, 32
        %v1205 = vpop.permute.xlu0 %1204
        %1222 = vrot.lane.b32.xlu0 %v1101, 48
        %v1223 = vpop.permute.xlu0 %1222
        %1224 = vrot.lane.b32.xlu0 %v1102, 48
        %v1225 = vpop.permute.xlu0 %1224
        %1226 = vrot.lane.b32.xlu0 %v1103, 48
        %v1227 = vpop.permute.xlu0 %1226
        %1228 = vrot.lane.b32.xlu0 %v1104, 48
        %v1229 = vpop.permute.xlu0 %1228
        %1230 = vrot.lane.b32.xlu0 %v1105, 48
        %v1231 = vpop.permute.xlu0 %1230
        %1232 = vrot.lane.b32.xlu0 %v1106, 48
        %v1233 = vpop.permute.xlu0 %1232
        %1234 = vrot.lane.b32.xlu0 %v1107, 48
        %v1235 = vpop.permute.xlu0 %1234
        %1236 = vrot.lane.b32.xlu0 %v1124, 48
        %v1237 = vpop.permute.xlu0 %1236
        %1254 = vrot.lane.b32.xlu0 %v1125, 64
        %v1255 = vpop.permute.xlu0 %1254
        %1256 = vrot.lane.b32.xlu0 %v1126, 64
        %v1257 = vpop.permute.xlu0 %1256
        %1258 = vrot.lane.b32.xlu0 %v1127, 64
        %v1259 = vpop.permute.xlu0 %1258
        %1260 = vrot.lane.b32.xlu0 %v1128, 64
        %v1261 = vpop.permute.xlu0 %1260
        %1262 = vrot.lane.b32.xlu0 %v1129, 64
        %v1263 = vpop.permute.xlu0 %1262
        %1264 = vrot.lane.b32.xlu0 %v1130, 64
        %v1265 = vpop.permute.xlu0 %1264
        %1266 = vrot.lane.b32.xlu0 %v1131, 64
        %v1267 = vpop.permute.xlu0 %1266
        %1268 = vrot.lane.b32.xlu0 %v1132, 64
        %v1269 = vpop.permute.xlu0 %1268
        %1286 = vrot.lane.b32.xlu0 %v1133, 80
        %v1287 = vpop.permute.xlu0 %1286
        %1288 = vrot.lane.b32.xlu0 %v1134, 80
        %v1289 = vpop.permute.xlu0 %1288
        %1290 = vrot.lane.b32.xlu0 %v1135, 80
        %v1291 = vpop.permute.xlu0 %1290
        %1292 = vrot.lane.b32.xlu0 %v1136, 80
        %v1293 = vpop.permute.xlu0 %1292
        %1294 = vrot.lane.b32.xlu0 %v1137, 80
        %v1295 = vpop.permute.xlu0 %1294
        %1296 = vrot.lane.b32.xlu0 %v1138, 80
        %v1297 = vpop.permute.xlu0 %1296
        %1298 = vrot.lane.b32.xlu0 %v1139, 80
        %v1299 = vpop.permute.xlu0 %1298
        %1300 = vrot.lane.b32.xlu0 %v1140, 80
        %v1301 = vpop.permute.xlu0 %1300
        %1318 = vrot.lane.b32.xlu0 %v1141, 96
        %v1319 = vpop.permute.xlu0 %1318
        %1320 = vrot.lane.b32.xlu0 %v1142, 96
        %v1321 = vpop.permute.xlu0 %1320
        %1322 = vrot.lane.b32.xlu0 %v1143, 96
        %v1323 = vpop.permute.xlu0 %1322
        %1324 = vrot.lane.b32.xlu0 %v1144, 96
        %v1325 = vpop.permute.xlu0 %1324
        %1326 = vrot.lane.b32.xlu0 %v1145, 96
        %v1327 = vpop.permute.xlu0 %1326
        %1328 = vrot.lane.b32.xlu0 %v1146, 96
        %v1329 = vpop.permute.xlu0 %1328
        %1330 = vrot.lane.b32.xlu0 %v1147, 96
        %v1331 = vpop.permute.xlu0 %1330
        %1332 = vrot.lane.b32.xlu0 %v1148, 96
        %v1333 = vpop.permute.xlu0 %1332
        %1343 = vrot.lane.b32.xlu0 %v1109, 112
        %v1344 = vpop.permute.xlu0 %1343
        %1345 = vrot.lane.b32.xlu0 %v1110, 112
        %v1346 = vpop.permute.xlu0 %1345
        %1347 = vrot.lane.b32.xlu0 %v1111, 112
        %v1348 = vpop.permute.xlu0 %1347
        %1349 = vrot.lane.b32.xlu0 %v1112, 112
        %v1350 = vpop.permute.xlu0 %1349
        %1351 = vrot.lane.b32.xlu0 %v1113, 112
        %v1352 = vpop.permute.xlu0 %1351
        %1353 = vrot.lane.b32.xlu0 %v1114, 112
        %v1354 = vpop.permute.xlu0 %1353
        %1355 = vrot.lane.b32.xlu0 %v1115, 112
        %v1356 = vpop.permute.xlu0 %1355
        %1357 = vrot.lane.b32.xlu0 %v1149, 112
        %v1358 = vpop.permute.xlu0 %1357
        %v1367 = vsel %vm370, %v1100, %v1159
        %v1368 = vsel %vm370, %v1101, %v1161
        %v1369 = vsel %vm370, %v1102, %v1163
        %v1370 = vsel %vm370, %v1103, %v1165
        %v1371 = vsel %vm370, %v1104, %v1167
        %v1372 = vsel %vm370, %v1105, %v1169
        %v1373 = vsel %vm370, %v1106, %v1171
        %v1374 = vsel %vm370, %v1107, %v1173
        %v1375 = vsel %vm377, %v1367, %v1191
        %v1376 = vsel %vm377, %v1368, %v1193
        %v1377 = vsel %vm377, %v1369, %v1195
        %v1378 = vsel %vm377, %v1370, %v1197
        %v1379 = vsel %vm377, %v1371, %v1199
        %v1380 = vsel %vm377, %v1372, %v1201
        %v1381 = vsel %vm377, %v1373, %v1203
        %v1382 = vsel %vm377, %v1374, %v1205
        %v1383 = vsel %vm1023, %v1375, %v1223
        %v1384 = vsel %vm1023, %v1376, %v1225
        %v1385 = vsel %vm1023, %v1377, %v1227
        %v1386 = vsel %vm1023, %v1378, %v1229
        %v1387 = vsel %vm1023, %v1379, %v1231
        %v1388 = vsel %vm1023, %v1380, %v1233
        %v1389 = vsel %vm1023, %v1381, %v1235
        %v1390 = vsel %vm1023, %v1382, %v1237
        %v1391 = vsel %vm1032, %v1383, %v1255
        %v1392 = vsel %vm1032, %v1384, %v1257
        %v1393 = vsel %vm1032, %v1385, %v1259
        %v1394 = vsel %vm1032, %v1386, %v1261
        %v1395 = vsel %vm1032, %v1387, %v1263
        %v1396 = vsel %vm1032, %v1388, %v1265
        %v1397 = vsel %vm1032, %v1389, %v1267
        %v1398 = vsel %vm1032, %v1390, %v1269
        %v1399 = vsel %vm1041, %v1391, %v1287
        %v1400 = vsel %vm1041, %v1392, %v1289
        %v1401 = vsel %vm1041, %v1393, %v1291
        %v1402 = vsel %vm1041, %v1394, %v1293
        %v1403 = vsel %vm1041, %v1395, %v1295
        %v1404 = vsel %vm1041, %v1396, %v1297
        %v1405 = vsel %vm1041, %v1397, %v1299
        %v1406 = vsel %vm1041, %v1398, %v1301
        %v1407 = vsel %vm1050, %v1399, %v1319
        %v1408 = vsel %vm1050, %v1400, %v1321
        %v1409 = vsel %vm1050, %v1401, %v1323
        %v1410 = vsel %vm1050, %v1402, %v1325
        %v1411 = vsel %vm1050, %v1403, %v1327
        %v1412 = vsel %vm1050, %v1404, %v1329
        %v1413 = vsel %vm1050, %v1405, %v1331
        %v1414 = vsel %vm1050, %v1406, %v1333
        %v1415 = vsel %vm1059, %v1407, %v1344
        %v1416 = vsel %vm1059, %v1408, %v1346
        %v1417 = vsel %vm1059, %v1409, %v1348
        %v1418 = vsel %vm1059, %v1410, %v1350
        %v1419 = vsel %vm1059, %v1411, %v1352
        %v1420 = vsel %vm1059, %v1412, %v1354
        %v1421 = vsel %vm1059, %v1413, %v1356
        %v1422 = vsel %vm1059, %v1414, %v1358
        %v1423 = vld [vmem:[%s6 + $0x8] sm:$0xff]
        %v1424 = vld [vmem:[%s6 + $0x28] sm:$0xff]
        %v1425 = vld [vmem:[%s6 + $0x48] sm:$0xff]
        %v1426 = vld [vmem:[%s6 + $0x68] sm:$0xff]
        %v1427 = vld [vmem:[%s6 + $0x88] sm:$0xff]
        %v1428 = vld [vmem:[%s6 + $0xa8] sm:$0xff]
        %v1429 = vld [vmem:[%s6 + $0xc8] sm:$0xff]
        %v1430 = vld [vmem:[%s6 + $0xe8] sm:$0xff]
        %v1431 = vmul.f32 %v1415, %v1423
        %v1432 = vmul.f32 %v1416, %v1424
        %v1433 = vmul.f32 %v1417, %v1425
        %v1434 = vmul.f32 %v1418, %v1426
        %v1435 = vmul.f32 %v1419, %v1427
        %v1436 = vmul.f32 %v1420, %v1428
        %v1437 = vmul.f32 %v1421, %v1429
        %v1438 = vmul.f32 %v1422, %v1430
        %v1439 = vpack.c.bf16 %v1431, %v1431
        %v1440 = vpack.c.bf16 %v1432, %v1432
        %v1441 = vpack.c.bf16 %v1433, %v1433
        %v1442 = vpack.c.bf16 %v1434, %v1434
        %v1443 = vpack.c.bf16 %v1435, %v1435
        %v1444 = vpack.c.bf16 %v1436, %v1436
        %v1445 = vpack.c.bf16 %v1437, %v1437
        %v1446 = vpack.c.bf16 %v1438, %v1438
        %1447 = vst [vmem:[#allocation4 + $0x4] sm:$0xf] %v1439
        %1448 = vst [vmem:[#allocation4 + $0x20] sm:$0xf] %v1440
        %1449 = vst [vmem:[#allocation4 + $0x3c] sm:$0xf] %v1441
        %1450 = vst [vmem:[#allocation4 + $0x58] sm:$0xf] %v1442
        %1451 = vst [vmem:[#allocation4 + $0x74] sm:$0xf] %v1443
        %1452 = vst [vmem:[#allocation4 + $0x90] sm:$0xf] %v1444
        %1453 = vst [vmem:[#allocation4 + $0xac] sm:$0xf] %v1445
        %1454 = vst [vmem:[#allocation4 + $0xc8] sm:$0xf] %v1446
        %v1455 = vld [vmem:[#allocation2 + $0x1c] sm:$0xff]
        %v1456 = vld [vmem:[#allocation2 + $0x24] sm:$0xff]
        %v1457 = vld [vmem:[#allocation2 + $0x2c] sm:$0xff]
        %v1458 = vld [vmem:[#allocation2 + $0x34] sm:$0xff]
        %v1459 = vld [vmem:[#allocation2 + $0x3c] sm:$0xff]
        %v1460 = vld [vmem:[#allocation2 + $0x44] sm:$0xff]
        %v1461 = vld [vmem:[#allocation2 + $0x4c] sm:$0xff]
        %v1462 = vld [vmem:[#allocation2 + $0x54] sm:$0xff]
        %v1463 = vld [vmem:[#allocation2 + $0x1d] sm:$0xff]
        %v1464 = vld [vmem:[#allocation2 + $0x25] sm:$0xff]
        %v1465 = vld [vmem:[#allocation2 + $0x2d] sm:$0xff]
        %v1466 = vld [vmem:[#allocation2 + $0x35] sm:$0xff]
        %v1467 = vld [vmem:[#allocation2 + $0x3d] sm:$0xff]
        %v1468 = vld [vmem:[#allocation2 + $0x45] sm:$0xff]
        %v1469 = vld [vmem:[#allocation2 + $0x4d] sm:$0xff]
        %v1470 = vld [vmem:[#allocation2 + $0x55] sm:$0xff]
        %v1471 = vld [vmem:[#allocation2 + $0x23] sm:$0xff]
        %v1472 = vld [vmem:[#allocation2 + $0x2b] sm:$0xff]
        %v1473 = vld [vmem:[#allocation2 + $0x33] sm:$0xff]
        %v1474 = vld [vmem:[#allocation2 + $0x3b] sm:$0xff]
        %v1475 = vld [vmem:[#allocation2 + $0x43] sm:$0xff]
        %v1476 = vld [vmem:[#allocation2 + $0x4b] sm:$0xff]
        %v1477 = vld [vmem:[#allocation2 + $0x53] sm:$0xff]
        %v1478 = vld [vmem:[#allocation2 + $0x5b] sm:$0xff]
        %v1479 = vld [vmem:[#allocation2 + $0x5c] sm:$0xff]
        %v1480 = vld [vmem:[#allocation2 + $0x5d] sm:$0xff]
        %v1481 = vld [vmem:[#allocation2 + $0x27] sm:$0xff]
        %v1482 = vld [vmem:[#allocation2 + $0x2f] sm:$0xff]
        %v1483 = vld [vmem:[#allocation2 + $0x37] sm:$0xff]
        %v1484 = vld [vmem:[#allocation2 + $0x3f] sm:$0xff]
        %v1485 = vld [vmem:[#allocation2 + $0x47] sm:$0xff]
        %v1486 = vld [vmem:[#allocation2 + $0x4f] sm:$0xff]
        %v1487 = vld [vmem:[#allocation2 + $0x57] sm:$0xff]
        %v1488 = vld [vmem:[#allocation2 + $0x5f] sm:$0xff]
        %v1489 = vld [vmem:[#allocation2 + $0x28] sm:$0xff]
        %v1490 = vld [vmem:[#allocation2 + $0x30] sm:$0xff]
        %v1491 = vld [vmem:[#allocation2 + $0x38] sm:$0xff]
        %v1492 = vld [vmem:[#allocation2 + $0x40] sm:$0xff]
        %v1493 = vld [vmem:[#allocation2 + $0x48] sm:$0xff]
        %v1494 = vld [vmem:[#allocation2 + $0x50] sm:$0xff]
        %v1495 = vld [vmem:[#allocation2 + $0x58] sm:$0xff]
        %v1496 = vld [vmem:[#allocation2 + $0x60] sm:$0xff]
        %v1497 = vld [vmem:[#allocation2 + $0x29] sm:$0xff]
        %v1498 = vld [vmem:[#allocation2 + $0x31] sm:$0xff]
        %v1499 = vld [vmem:[#allocation2 + $0x39] sm:$0xff]
        %v1500 = vld [vmem:[#allocation2 + $0x41] sm:$0xff]
        %v1501 = vld [vmem:[#allocation2 + $0x49] sm:$0xff]
        %v1502 = vld [vmem:[#allocation2 + $0x51] sm:$0xff]
        %v1503 = vld [vmem:[#allocation2 + $0x59] sm:$0xff]
        %v1504 = vld [vmem:[#allocation2 + $0x61] sm:$0xff]
        %1513 = vrot.lane.b32.xlu0 %v1463, 16
        %v1514 = vpop.permute.xlu0 %1513
        %1515 = vrot.lane.b32.xlu0 %v1464, 16
        %v1516 = vpop.permute.xlu0 %1515
        %1517 = vrot.lane.b32.xlu0 %v1465, 16
        %v1518 = vpop.permute.xlu0 %1517
        %1519 = vrot.lane.b32.xlu0 %v1466, 16
        %v1520 = vpop.permute.xlu0 %1519
        %1521 = vrot.lane.b32.xlu0 %v1467, 16
        %v1522 = vpop.permute.xlu0 %1521
        %1523 = vrot.lane.b32.xlu0 %v1468, 16
        %v1524 = vpop.permute.xlu0 %1523
        %1525 = vrot.lane.b32.xlu0 %v1469, 16
        %v1526 = vpop.permute.xlu0 %1525
        %1527 = vrot.lane.b32.xlu0 %v1470, 16
        %v1528 = vpop.permute.xlu0 %1527
        %1545 = vrot.lane.b32.xlu0 %v1471, 32
        %v1546 = vpop.permute.xlu0 %1545
        %1547 = vrot.lane.b32.xlu0 %v1472, 32
        %v1548 = vpop.permute.xlu0 %1547
        %1549 = vrot.lane.b32.xlu0 %v1473, 32
        %v1550 = vpop.permute.xlu0 %1549
        %1551 = vrot.lane.b32.xlu0 %v1474, 32
        %v1552 = vpop.permute.xlu0 %1551
        %1553 = vrot.lane.b32.xlu0 %v1475, 32
        %v1554 = vpop.permute.xlu0 %1553
        %1555 = vrot.lane.b32.xlu0 %v1476, 32
        %v1556 = vpop.permute.xlu0 %1555
        %1557 = vrot.lane.b32.xlu0 %v1477, 32
        %v1558 = vpop.permute.xlu0 %1557
        %1559 = vrot.lane.b32.xlu0 %v1478, 32
        %v1560 = vpop.permute.xlu0 %1559
        %1577 = vrot.lane.b32.xlu0 %v1456, 48
        %v1578 = vpop.permute.xlu0 %1577
        %1579 = vrot.lane.b32.xlu0 %v1457, 48
        %v1580 = vpop.permute.xlu0 %1579
        %1581 = vrot.lane.b32.xlu0 %v1458, 48
        %v1582 = vpop.permute.xlu0 %1581
        %1583 = vrot.lane.b32.xlu0 %v1459, 48
        %v1584 = vpop.permute.xlu0 %1583
        %1585 = vrot.lane.b32.xlu0 %v1460, 48
        %v1586 = vpop.permute.xlu0 %1585
        %1587 = vrot.lane.b32.xlu0 %v1461, 48
        %v1588 = vpop.permute.xlu0 %1587
        %1589 = vrot.lane.b32.xlu0 %v1462, 48
        %v1590 = vpop.permute.xlu0 %1589
        %1591 = vrot.lane.b32.xlu0 %v1479, 48
        %v1592 = vpop.permute.xlu0 %1591
        %1602 = vrot.lane.b32.xlu0 %v1464, 64
        %v1603 = vpop.permute.xlu0 %1602
        %1604 = vrot.lane.b32.xlu0 %v1465, 64
        %v1605 = vpop.permute.xlu0 %1604
        %1606 = vrot.lane.b32.xlu0 %v1466, 64
        %v1607 = vpop.permute.xlu0 %1606
        %1608 = vrot.lane.b32.xlu0 %v1467, 64
        %v1609 = vpop.permute.xlu0 %1608
        %1610 = vrot.lane.b32.xlu0 %v1468, 64
        %v1611 = vpop.permute.xlu0 %1610
        %1612 = vrot.lane.b32.xlu0 %v1469, 64
        %v1613 = vpop.permute.xlu0 %1612
        %1614 = vrot.lane.b32.xlu0 %v1470, 64
        %v1615 = vpop.permute.xlu0 %1614
        %1616 = vrot.lane.b32.xlu0 %v1480, 64
        %v1617 = vpop.permute.xlu0 %1616
        %1634 = vrot.lane.b32.xlu0 %v1481, 80
        %v1635 = vpop.permute.xlu0 %1634
        %1636 = vrot.lane.b32.xlu0 %v1482, 80
        %v1637 = vpop.permute.xlu0 %1636
        %1638 = vrot.lane.b32.xlu0 %v1483, 80
        %v1639 = vpop.permute.xlu0 %1638
        %1640 = vrot.lane.b32.xlu0 %v1484, 80
        %v1641 = vpop.permute.xlu0 %1640
        %1642 = vrot.lane.b32.xlu0 %v1485, 80
        %v1643 = vpop.permute.xlu0 %1642
        %1644 = vrot.lane.b32.xlu0 %v1486, 80
        %v1645 = vpop.permute.xlu0 %1644
        %1646 = vrot.lane.b32.xlu0 %v1487, 80
        %v1647 = vpop.permute.xlu0 %1646
        %1648 = vrot.lane.b32.xlu0 %v1488, 80
        %v1649 = vpop.permute.xlu0 %1648
        %1666 = vrot.lane.b32.xlu0 %v1489, 96
        %v1667 = vpop.permute.xlu0 %1666
        %1668 = vrot.lane.b32.xlu0 %v1490, 96
        %v1669 = vpop.permute.xlu0 %1668
        %1670 = vrot.lane.b32.xlu0 %v1491, 96
        %v1671 = vpop.permute.xlu0 %1670
        %1672 = vrot.lane.b32.xlu0 %v1492, 96
        %v1673 = vpop.permute.xlu0 %1672
        %1674 = vrot.lane.b32.xlu0 %v1493, 96
        %v1675 = vpop.permute.xlu0 %1674
        %1676 = vrot.lane.b32.xlu0 %v1494, 96
        %v1677 = vpop.permute.xlu0 %1676
        %1678 = vrot.lane.b32.xlu0 %v1495, 96
        %v1679 = vpop.permute.xlu0 %1678
        %1680 = vrot.lane.b32.xlu0 %v1496, 96
        %v1681 = vpop.permute.xlu0 %1680
        %1698 = vrot.lane.b32.xlu0 %v1497, 112
        %v1699 = vpop.permute.xlu0 %1698
        %1700 = vrot.lane.b32.xlu0 %v1498, 112
        %v1701 = vpop.permute.xlu0 %1700
        %1702 = vrot.lane.b32.xlu0 %v1499, 112
        %v1703 = vpop.permute.xlu0 %1702
        %1704 = vrot.lane.b32.xlu0 %v1500, 112
        %v1705 = vpop.permute.xlu0 %1704
        %1706 = vrot.lane.b32.xlu0 %v1501, 112
        %v1707 = vpop.permute.xlu0 %1706
        %1708 = vrot.lane.b32.xlu0 %v1502, 112
        %v1709 = vpop.permute.xlu0 %1708
        %1710 = vrot.lane.b32.xlu0 %v1503, 112
        %v1711 = vpop.permute.xlu0 %1710
        %1712 = vrot.lane.b32.xlu0 %v1504, 112
        %v1713 = vpop.permute.xlu0 %1712
        %v1722 = vsel %vm370, %v1455, %v1514
        %v1723 = vsel %vm370, %v1456, %v1516
        %v1724 = vsel %vm370, %v1457, %v1518
        %v1725 = vsel %vm370, %v1458, %v1520
        %v1726 = vsel %vm370, %v1459, %v1522
        %v1727 = vsel %vm370, %v1460, %v1524
        %v1728 = vsel %vm370, %v1461, %v1526
        %v1729 = vsel %vm370, %v1462, %v1528
        %v1730 = vsel %vm377, %v1722, %v1546
        %v1731 = vsel %vm377, %v1723, %v1548
        %v1732 = vsel %vm377, %v1724, %v1550
        %v1733 = vsel %vm377, %v1725, %v1552
        %v1734 = vsel %vm377, %v1726, %v1554
        %v1735 = vsel %vm377, %v1727, %v1556
        %v1736 = vsel %vm377, %v1728, %v1558
        %v1737 = vsel %vm377, %v1729, %v1560
        %v1738 = vsel %vm1023, %v1730, %v1578
        %v1739 = vsel %vm1023, %v1731, %v1580
        %v1740 = vsel %vm1023, %v1732, %v1582
        %v1741 = vsel %vm1023, %v1733, %v1584
        %v1742 = vsel %vm1023, %v1734, %v1586
        %v1743 = vsel %vm1023, %v1735, %v1588
        %v1744 = vsel %vm1023, %v1736, %v1590
        %v1745 = vsel %vm1023, %v1737, %v1592
        %v1746 = vsel %vm1032, %v1738, %v1603
        %v1747 = vsel %vm1032, %v1739, %v1605
        %v1748 = vsel %vm1032, %v1740, %v1607
        %v1749 = vsel %vm1032, %v1741, %v1609
        %v1750 = vsel %vm1032, %v1742, %v1611
        %v1751 = vsel %vm1032, %v1743, %v1613
        %v1752 = vsel %vm1032, %v1744, %v1615
        %v1753 = vsel %vm1032, %v1745, %v1617
        %v1754 = vsel %vm1041, %v1746, %v1635
        %v1755 = vsel %vm1041, %v1747, %v1637
        %v1756 = vsel %vm1041, %v1748, %v1639
        %v1757 = vsel %vm1041, %v1749, %v1641
        %v1758 = vsel %vm1041, %v1750, %v1643
        %v1759 = vsel %vm1041, %v1751, %v1645
        %v1760 = vsel %vm1041, %v1752, %v1647
        %v1761 = vsel %vm1041, %v1753, %v1649
        %v1762 = vsel %vm1050, %v1754, %v1667
        %v1763 = vsel %vm1050, %v1755, %v1669
        %v1764 = vsel %vm1050, %v1756, %v1671
        %v1765 = vsel %vm1050, %v1757, %v1673
        %v1766 = vsel %vm1050, %v1758, %v1675
        %v1767 = vsel %vm1050, %v1759, %v1677
        %v1768 = vsel %vm1050, %v1760, %v1679
        %v1769 = vsel %vm1050, %v1761, %v1681
        %v1770 = vsel %vm1059, %v1762, %v1699
        %v1771 = vsel %vm1059, %v1763, %v1701
        %v1772 = vsel %vm1059, %v1764, %v1703
        %v1773 = vsel %vm1059, %v1765, %v1705
        %v1774 = vsel %vm1059, %v1766, %v1707
        %v1775 = vsel %vm1059, %v1767, %v1709
        %v1776 = vsel %vm1059, %v1768, %v1711
        %v1777 = vsel %vm1059, %v1769, %v1713
        %v1778 = vld [vmem:[%s6 + $0x10] sm:$0xff]
        %v1779 = vld [vmem:[%s6 + $0x30] sm:$0xff]
        %v1780 = vld [vmem:[%s6 + $0x50] sm:$0xff]
        %v1781 = vld [vmem:[%s6 + $0x70] sm:$0xff]
        %v1782 = vld [vmem:[%s6 + $0x90] sm:$0xff]
        %v1783 = vld [vmem:[%s6 + $0xb0] sm:$0xff]
        %v1784 = vld [vmem:[%s6 + $0xd0] sm:$0xff]
        %v1785 = vld [vmem:[%s6 + $0xf0] sm:$0xff]
        %v1786 = vmul.f32 %v1770, %v1778
        %v1787 = vmul.f32 %v1771, %v1779
        %v1788 = vmul.f32 %v1772, %v1780
        %v1789 = vmul.f32 %v1773, %v1781
        %v1790 = vmul.f32 %v1774, %v1782
        %v1791 = vmul.f32 %v1775, %v1783
        %v1792 = vmul.f32 %v1776, %v1784
        %v1793 = vmul.f32 %v1777, %v1785
        %v1794 = vpack.c.bf16 %v1786, %v1786
        %v1795 = vpack.c.bf16 %v1787, %v1787
        %v1796 = vpack.c.bf16 %v1788, %v1788
        %v1797 = vpack.c.bf16 %v1789, %v1789
        %v1798 = vpack.c.bf16 %v1790, %v1790
        %v1799 = vpack.c.bf16 %v1791, %v1791
        %v1800 = vpack.c.bf16 %v1792, %v1792
        %v1801 = vpack.c.bf16 %v1793, %v1793
        %1802 = vst [vmem:[#allocation4 + $0x8] sm:$0xf] %v1794
        %1803 = vst [vmem:[#allocation4 + $0x24] sm:$0xf] %v1795
        %1804 = vst [vmem:[#allocation4 + $0x40] sm:$0xf] %v1796
        %1805 = vst [vmem:[#allocation4 + $0x5c] sm:$0xf] %v1797
        %1806 = vst [vmem:[#allocation4 + $0x78] sm:$0xf] %v1798
        %1807 = vst [vmem:[#allocation4 + $0x94] sm:$0xf] %v1799
        %1808 = vst [vmem:[#allocation4 + $0xb0] sm:$0xf] %v1800
        %1809 = vst [vmem:[#allocation4 + $0xcc] sm:$0xf] %v1801
        %v1810 = vld [vmem:[#allocation2 + $0x2b] sm:$0xff]
        %v1811 = vld [vmem:[#allocation2 + $0x33] sm:$0xff]
        %v1812 = vld [vmem:[#allocation2 + $0x3b] sm:$0xff]
        %v1813 = vld [vmem:[#allocation2 + $0x43] sm:$0xff]
        %v1814 = vld [vmem:[#allocation2 + $0x4b] sm:$0xff]
        %v1815 = vld [vmem:[#allocation2 + $0x53] sm:$0xff]
        %v1816 = vld [vmem:[#allocation2 + $0x5b] sm:$0xff]
        %v1817 = vld [vmem:[#allocation2 + $0x63] sm:$0xff]
        %v1818 = vld [vmem:[#allocation2 + $0x2c] sm:$0xff]
        %v1819 = vld [vmem:[#allocation2 + $0x34] sm:$0xff]
        %v1820 = vld [vmem:[#allocation2 + $0x3c] sm:$0xff]
        %v1821 = vld [vmem:[#allocation2 + $0x44] sm:$0xff]
        %v1822 = vld [vmem:[#allocation2 + $0x4c] sm:$0xff]
        %v1823 = vld [vmem:[#allocation2 + $0x54] sm:$0xff]
        %v1824 = vld [vmem:[#allocation2 + $0x5c] sm:$0xff]
        %v1825 = vld [vmem:[#allocation2 + $0x64] sm:$0xff]
        %v1826 = vld [vmem:[#allocation2 + $0x2d] sm:$0xff]
        %v1827 = vld [vmem:[#allocation2 + $0x35] sm:$0xff]
        %v1828 = vld [vmem:[#allocation2 + $0x3d] sm:$0xff]
        %v1829 = vld [vmem:[#allocation2 + $0x45] sm:$0xff]
        %v1830 = vld [vmem:[#allocation2 + $0x4d] sm:$0xff]
        %v1831 = vld [vmem:[#allocation2 + $0x55] sm:$0xff]
        %v1832 = vld [vmem:[#allocation2 + $0x5d] sm:$0xff]
        %v1833 = vld [vmem:[#allocation2 + $0x65] sm:$0xff]
        %1842 = vrot.lane.b32.xlu0 %v1818, 16
        %v1843 = vpop.permute.xlu0 %1842
        %1844 = vrot.lane.b32.xlu0 %v1819, 16
        %v1845 = vpop.permute.xlu0 %1844
        %1846 = vrot.lane.b32.xlu0 %v1820, 16
        %v1847 = vpop.permute.xlu0 %1846
        %1848 = vrot.lane.b32.xlu0 %v1821, 16
        %v1849 = vpop.permute.xlu0 %1848
        %1850 = vrot.lane.b32.xlu0 %v1822, 16
        %v1851 = vpop.permute.xlu0 %1850
        %1852 = vrot.lane.b32.xlu0 %v1823, 16
        %v1853 = vpop.permute.xlu0 %1852
        %1854 = vrot.lane.b32.xlu0 %v1824, 16
        %v1855 = vpop.permute.xlu0 %1854
        %1856 = vrot.lane.b32.xlu0 %v1825, 16
        %v1857 = vpop.permute.xlu0 %1856
        %1874 = vrot.lane.b32.xlu0 %v1826, 32
        %v1875 = vpop.permute.xlu0 %1874
        %1876 = vrot.lane.b32.xlu0 %v1827, 32
        %v1877 = vpop.permute.xlu0 %1876
        %1878 = vrot.lane.b32.xlu0 %v1828, 32
        %v1879 = vpop.permute.xlu0 %1878
        %1880 = vrot.lane.b32.xlu0 %v1829, 32
        %v1881 = vpop.permute.xlu0 %1880
        %1882 = vrot.lane.b32.xlu0 %v1830, 32
        %v1883 = vpop.permute.xlu0 %1882
        %1884 = vrot.lane.b32.xlu0 %v1831, 32
        %v1885 = vpop.permute.xlu0 %1884
        %1886 = vrot.lane.b32.xlu0 %v1832, 32
        %v1887 = vpop.permute.xlu0 %1886
        %1888 = vrot.lane.b32.xlu0 %v1833, 32
        %v1889 = vpop.permute.xlu0 %1888
        %v1898 = vsel %vm370, %v1810, %v1843
        %v1899 = vsel %vm370, %v1811, %v1845
        %v1900 = vsel %vm370, %v1812, %v1847
        %v1901 = vsel %vm370, %v1813, %v1849
        %v1902 = vsel %vm370, %v1814, %v1851
        %v1903 = vsel %vm370, %v1815, %v1853
        %v1904 = vsel %vm370, %v1816, %v1855
        %v1905 = vsel %vm370, %v1817, %v1857
        %v1906 = vsel %vm377, %v1898, %v1875
        %v1907 = vsel %vm377, %v1899, %v1877
        %v1908 = vsel %vm377, %v1900, %v1879
        %v1909 = vsel %vm377, %v1901, %v1881
        %v1910 = vsel %vm377, %v1902, %v1883
        %v1911 = vsel %vm377, %v1903, %v1885
        %v1912 = vsel %vm377, %v1904, %v1887
        %v1913 = vsel %vm377, %v1905, %v1889
        %v1914 = vld [vmem:[%s6 + $0x18] sm:$0xff]
        %v1915 = vld [vmem:[%s6 + $0x38] sm:$0xff]
        %v1916 = vld [vmem:[%s6 + $0x58] sm:$0xff]
        %v1917 = vld [vmem:[%s6 + $0x78] sm:$0xff]
        %v1918 = vld [vmem:[%s6 + $0x98] sm:$0xff]
        %v1919 = vld [vmem:[%s6 + $0xb8] sm:$0xff]
        %v1920 = vld [vmem:[%s6 + $0xd8] sm:$0xff]
        %v1921 = vld [vmem:[%s6 + $0xf8] sm:$0xff]
        %v1922 = vmul.f32 %v1906, %v1914
        %v1923 = vmul.f32 %v1907, %v1915
        %v1924 = vmul.f32 %v1908, %v1916
        %v1925 = vmul.f32 %v1909, %v1917
        %v1926 = vmul.f32 %v1910, %v1918
        %v1927 = vmul.f32 %v1911, %v1919
        %v1928 = vmul.f32 %v1912, %v1920
        %v1929 = vmul.f32 %v1913, %v1921
        %v1930 = vpack.c.bf16 %v1922, %v1922
        %v1931 = vpack.c.bf16 %v1923, %v1923
        %v1932 = vpack.c.bf16 %v1924, %v1924
        %v1933 = vpack.c.bf16 %v1925, %v1925
        %v1934 = vpack.c.bf16 %v1926, %v1926
        %v1935 = vpack.c.bf16 %v1927, %v1927
        %v1936 = vpack.c.bf16 %v1928, %v1928
        %v1937 = vpack.c.bf16 %v1929, %v1929
        %vm1938 = vcmask 388096
        %1939 = vst.msk [vmem:[#allocation4 + $0xc] sm:$0xf] %vm1938, %v1930
        %1940 = vst.msk [vmem:[#allocation4 + $0x28] sm:$0xf] %vm1938, %v1931
        %1941 = vst.msk [vmem:[#allocation4 + $0x44] sm:$0xf] %vm1938, %v1932
        %1942 = vst.msk [vmem:[#allocation4 + $0x60] sm:$0xf] %vm1938, %v1933
        %1943 = vst.msk [vmem:[#allocation4 + $0x7c] sm:$0xf] %vm1938, %v1934
        %1944 = vst.msk [vmem:[#allocation4 + $0x98] sm:$0xf] %vm1938, %v1935
        %1945 = vst.msk [vmem:[#allocation4 + $0xb4] sm:$0xf] %vm1938, %v1936
        %1946 = vst.msk [vmem:[#allocation4 + $0xd0] sm:$0xf] %vm1938, %v1937
        %v1947 = vld [vmem:[#allocation4] sm:$0xff]
        %v1948 = vld [vmem:[#allocation4 + $0x8] sm:$0xff]
        %v1949 = vld [vmem:[#allocation4 + $0x1c] sm:$0xff]
        %v1950 = vld [vmem:[#allocation4 + $0x24] sm:$0xff]
        %v1951 = vld [vmem:[#allocation4 + $0x38] sm:$0xff]
        %v1952 = vld [vmem:[#allocation4 + $0x40] sm:$0xff]
        %v1953 = vld [vmem:[#allocation4 + $0x54] sm:$0xff]
        %v1954 = vld [vmem:[#allocation4 + $0x5c] sm:$0xff]
        %v1955 = vld [vmem:[#allocation4 + $0x70] sm:$0xff]
        %v1956 = vld [vmem:[#allocation4 + $0x78] sm:$0xff]
        %v1957 = vld [vmem:[#allocation4 + $0x8c] sm:$0xff]
        %v1958 = vld [vmem:[#allocation4 + $0x94] sm:$0xff]
        %v1959 = vld [vmem:[#allocation4 + $0xa8] sm:$0xff]
        %v1960 = vld [vmem:[#allocation4 + $0xb0] sm:$0xff]
        %v1961 = vld [vmem:[#allocation4 + $0xc4] sm:$0xff]
        %v1962 = vld [vmem:[#allocation4 + $0xcc] sm:$0xff]
        %v1963 = vld [vmem:[%s2] sm:$0xf]
        %v1964 = vld [vmem:[%s2 + $0x4] sm:$0xf]
        %v1965 = vld [vmem:[%s2 + $0x8] sm:$0xf]
        %v1966 = vld [vmem:[%s2 + $0xc] sm:$0xf]
        %v1967 = vld [vmem:[%s2 + $0x10] sm:$0xf]
        %v1968 = vld [vmem:[%s2 + $0x14] sm:$0xf]
        %v1969 = vld [vmem:[%s2 + $0x18] sm:$0xf]
        %v1970 = vld [vmem:[%s2 + $0x1c] sm:$0xf]
        %v1971 = vld [vmem:[%s2 + $0x20] sm:$0xf]
        %v1972 = vld [vmem:[%s2 + $0x24] sm:$0xf]
        %v1973 = vld [vmem:[%s2 + $0x28] sm:$0xf]
        %v1974 = vld [vmem:[%s2 + $0x2c] sm:$0xf]
        %v1975 = vld [vmem:[%s2 + $0x30] sm:$0xf]
        %v1976 = vld [vmem:[%s2 + $0x34] sm:$0xf]
        %v1977 = vld [vmem:[%s2 + $0x38] sm:$0xf]
        %v1978 = vld [vmem:[%s2 + $0x3c] sm:$0xf]
        %v1979 = vld [vmem:[%s2 + $0x40] sm:$0xf]
        %v1980 = vld [vmem:[%s2 + $0x44] sm:$0xf]
        %v1981 = vld [vmem:[%s2 + $0x48] sm:$0xf]
        %v1982 = vld [vmem:[%s2 + $0x4c] sm:$0xf]
        %v1983 = vld [vmem:[%s2 + $0x50] sm:$0xf]
        %v1984 = vld [vmem:[%s2 + $0x54] sm:$0xf]
        %v1985 = vld [vmem:[%s2 + $0x58] sm:$0xf]
        %v1986 = vld [vmem:[%s2 + $0x5c] sm:$0xf]
        %v1987 = vld [vmem:[%s2 + $0x60] sm:$0xf]
        %v1988 = vld [vmem:[%s2 + $0x64] sm:$0xf]
        %v1989 = vld [vmem:[%s2 + $0x68] sm:$0xf]
        %v1990 = vld [vmem:[%s2 + $0x6c] sm:$0xf]
        %v1991 = vld [vmem:[%s2 + $0x70] sm:$0xf]
        %v1992 = vld [vmem:[%s2 + $0x74] sm:$0xf]
        %v1993 = vld [vmem:[%s2 + $0x78] sm:$0xf]
        %v1994 = vld [vmem:[%s2 + $0x7c] sm:$0xf]
        %v1995 = vld [vmem:[%s2 + $0x80] sm:$0xf]
        %v1996 = vld [vmem:[%s2 + $0x84] sm:$0xf]
        %v1997 = vld [vmem:[%s2 + $0x88] sm:$0xf]
        %v1998 = vld [vmem:[%s2 + $0x8c] sm:$0xf]
        %v1999 = vld [vmem:[%s2 + $0x90] sm:$0xf]
        %v2000 = vld [vmem:[%s2 + $0x94] sm:$0xf]
        %v2001 = vld [vmem:[%s2 + $0x98] sm:$0xf]
        %v2002 = vld [vmem:[%s2 + $0x9c] sm:$0xf]
        %v2003 = vld [vmem:[%s2 + $0xa0] sm:$0xf]
        %v2004 = vld [vmem:[%s2 + $0xa4] sm:$0xf]
        %v2005 = vld [vmem:[%s2 + $0xa8] sm:$0xf]
        %v2006 = vld [vmem:[%s2 + $0xac] sm:$0xf]
        %v2007 = vld [vmem:[%s2 + $0xb0] sm:$0xf]
        %v2008 = vld [vmem:[%s2 + $0xb4] sm:$0xf]
        %v2009 = vld [vmem:[%s2 + $0xb8] sm:$0xf]
        %v2010 = vld [vmem:[%s2 + $0xbc] sm:$0xf]
        %v2011 = vld [vmem:[%s2 + $0xc0] sm:$0xf]
        %v2012 = vld [vmem:[%s2 + $0xc4] sm:$0xf]
        %v2013 = vld [vmem:[%s2 + $0xc8] sm:$0xf]
        %v2014 = vld [vmem:[%s2 + $0xcc] sm:$0xf]
        %v2015 = vld [vmem:[%s2 + $0xd0] sm:$0xf]
        %v2016 = vld [vmem:[%s2 + $0xd4] sm:$0xf]
        %v2033 = vunpack.c.l.b16 %v1947
        %v2034 = vunpack.c.h.b16 %v1947
        %v2035 = vunpack.c.l.b16 %v1948
        %v2036 = vunpack.c.h.b16 %v1948
        %v2037 = vunpack.c.l.b16 %v1949
        %v2038 = vunpack.c.h.b16 %v1949
        %v2039 = vunpack.c.l.b16 %v1950
        %v2040 = vunpack.c.h.b16 %v1950
        %v2041 = vunpack.c.l.b16 %v1951
        %v2042 = vunpack.c.h.b16 %v1951
        %v2043 = vunpack.c.l.b16 %v1952
        %v2044 = vunpack.c.h.b16 %v1952
        %v2045 = vunpack.c.l.b16 %v1953
        %v2046 = vunpack.c.h.b16 %v1953
        %v2047 = vunpack.c.l.b16 %v1954
        %v2048 = vunpack.c.h.b16 %v1954
        %v2049 = vunpack.c.l.b16 %v1955
        %v2050 = vunpack.c.h.b16 %v1955
        %v2051 = vunpack.c.l.b16 %v1956
        %v2052 = vunpack.c.h.b16 %v1956
        %v2053 = vunpack.c.l.b16 %v1957
        %v2054 = vunpack.c.h.b16 %v1957
        %v2055 = vunpack.c.l.b16 %v1958
        %v2056 = vunpack.c.h.b16 %v1958
        %v2057 = vunpack.c.l.b16 %v1959
        %v2058 = vunpack.c.h.b16 %v1959
        %v2059 = vunpack.c.l.b16 %v1960
        %v2060 = vunpack.c.h.b16 %v1960
        %v2061 = vunpack.c.l.b16 %v1961
        %v2062 = vunpack.c.h.b16 %v1961
        %v2063 = vunpack.c.l.b16 %v1962
        %v2064 = vunpack.c.h.b16 %v1962
        %v2065 = vpack.c.b16 %v2037, %v2033
        %v2066 = vpack.c.b16 %v2038, %v2034
        %v2067 = vpack.c.b16 %v2039, %v2035
        %v2068 = vpack.c.b16 %v2040, %v2036
        %v2069 = vpack.c.b16 %v2045, %v2041
        %v2070 = vpack.c.b16 %v2046, %v2042
        %v2071 = vpack.c.b16 %v2047, %v2043
        %v2072 = vpack.c.b16 %v2048, %v2044
        %v2073 = vpack.c.b16 %v2053, %v2049
        %v2074 = vpack.c.b16 %v2054, %v2050
        %v2075 = vpack.c.b16 %v2055, %v2051
        %v2076 = vpack.c.b16 %v2056, %v2052
        %v2077 = vpack.c.b16 %v2061, %v2057
        %v2078 = vpack.c.b16 %v2062, %v2058
        %v2079 = vpack.c.b16 %v2063, %v2059
        %v2080 = vpack.c.b16 %v2064, %v2060
        %v2147 = vunpack.c.l.b16 %v1963
        %v2148 = vunpack.c.l.b16 %v1964
        %v2149 = vunpack.c.l.b16 %v1965
        %v2150 = vunpack.c.l.b16 %v1966
        %v2151 = vunpack.c.l.b16 %v1967
        %v2152 = vunpack.c.l.b16 %v1968
        %v2153 = vunpack.c.l.b16 %v1969
        %v2154 = vunpack.c.l.b16 %v1970
        %v2155 = vunpack.c.l.b16 %v1971
        %v2156 = vunpack.c.l.b16 %v1972
        %v2157 = vunpack.c.l.b16 %v1973
        %v2158 = vunpack.c.l.b16 %v1974
        %v2159 = vunpack.c.l.b16 %v1975
        %v2160 = vunpack.c.l.b16 %v1976
        %v2161 = vunpack.c.l.b16 %v1977
        %v2162 = vunpack.c.l.b16 %v1978
        %v2163 = vunpack.c.l.b16 %v1979
        %v2164 = vunpack.c.l.b16 %v1980
        %v2165 = vunpack.c.l.b16 %v1981
        %v2166 = vunpack.c.l.b16 %v1982
        %v2167 = vunpack.c.l.b16 %v1983
        %v2168 = vunpack.c.l.b16 %v1984
        %v2169 = vunpack.c.l.b16 %v1985
        %v2170 = vunpack.c.l.b16 %v1986
        %v2171 = vunpack.c.l.b16 %v1987
        %v2172 = vunpack.c.l.b16 %v1988
        %v2173 = vunpack.c.l.b16 %v1989
        %v2174 = vunpack.c.l.b16 %v1990
        %v2175 = vunpack.c.l.b16 %v1991
        %v2176 = vunpack.c.l.b16 %v1992
        %v2177 = vunpack.c.l.b16 %v1993
        %v2178 = vunpack.c.l.b16 %v1994
        %v2179 = vunpack.c.l.b16 %v1995
        %v2180 = vunpack.c.l.b16 %v1996
        %v2181 = vunpack.c.l.b16 %v1997
        %v2182 = vunpack.c.l.b16 %v1998
        %v2183 = vunpack.c.l.b16 %v1999
        %v2184 = vunpack.c.l.b16 %v2000
        %v2185 = vunpack.c.l.b16 %v2001
        %v2186 = vunpack.c.l.b16 %v2002
        %v2187 = vunpack.c.l.b16 %v2003
        %v2188 = vunpack.c.l.b16 %v2004
        %v2189 = vunpack.c.l.b16 %v2005
        %v2190 = vunpack.c.l.b16 %v2006
        %v2191 = vunpack.c.l.b16 %v2007
        %v2192 = vunpack.c.l.b16 %v2008
        %v2193 = vunpack.c.l.b16 %v2009
        %v2194 = vunpack.c.l.b16 %v2010
        %v2195 = vunpack.c.l.b16 %v2011
        %v2196 = vunpack.c.l.b16 %v2012
        %v2197 = vunpack.c.l.b16 %v2013
        %v2198 = vunpack.c.l.b16 %v2014
        %v2199 = vunpack.c.l.b16 %v2015
        %v2200 = vunpack.c.l.b16 %v2016
        %v2201 = vpack.c.b16 %v2148, %v2147
        %v2202 = vpack.c.b16 %v2150, %v2149
        %v2203 = vpack.c.b16 %v2152, %v2151
        %v2204 = vpack.c.b16 %v2154, %v2153
        %v2205 = vpack.c.b16 %v2156, %v2155
        %v2206 = vpack.c.b16 %v2158, %v2157
        %v2207 = vpack.c.b16 %v2160, %v2159
        %v2208 = vpack.c.b16 %v2162, %v2161
        %v2209 = vpack.c.b16 %v2164, %v2163
        %v2210 = vpack.c.b16 %v2166, %v2165
        %v2211 = vpack.c.b16 %v2168, %v2167
        %v2212 = vpack.c.b16 %v2170, %v2169
        %v2213 = vpack.c.b16 %v2172, %v2171
        %v2214 = vpack.c.b16 %v2174, %v2173
        %v2215 = vpack.c.b16 %v2176, %v2175
        %v2216 = vpack.c.b16 %v2178, %v2177
        %v2217 = vpack.c.b16 %v2180, %v2179
        %v2218 = vpack.c.b16 %v2182, %v2181
        %v2219 = vpack.c.b16 %v2184, %v2183
        %v2220 = vpack.c.b16 %v2186, %v2185
        %v2221 = vpack.c.b16 %v2188, %v2187
        %v2222 = vpack.c.b16 %v2190, %v2189
        %v2223 = vpack.c.b16 %v2192, %v2191
        %v2224 = vpack.c.b16 %v2194, %v2193
        %v2225 = vpack.c.b16 %v2196, %v2195
        %v2226 = vpack.c.b16 %v2198, %v2197
        %v2227 = vpack.c.b16 %v2200, %v2199
        %v2256 = vsel %vm1023, %v2068, 0
        %v2259 = vsel %vm1023, %v2072, 0
        %v2262 = vsel %vm1023, %v2076, 0
        %v2265 = vsel %vm1023, %v2080, 0
        %2267 = vmatpush.bf16.msra.mxu0 %v2208
        %2268 = vmatpush.bf16.msra.mxu0 %v2207
        %2269 = vmatpush.bf16.msra.mxu0 %v2206
        %2270 = vmatpush.bf16.msra.mxu0 %v2205
        %2271 = vmatpush.bf16.msra.mxu0 %v2204
        %2272 = vmatpush.bf16.msra.mxu0 %v2203
        %2273 = vmatpush.bf16.msra.mxu0 %v2202
        %2274 = vmatpush.bf16.msra.mxu0 %v2201
        %2275 = vmatmul.bf16.gmra.mxu0 %v2065
        %v2276 = vpop.f32.mrf.mxu0
        %v2277 = vadd.f32 0.0, %v2276
        %v2278 = vpop.f32.mrf.mxu0
        %v2279 = vadd.f32 0.0, %v2278
        %2280 = vmatmul.bf16.gmra.mxu0 %v2069
        %v2281 = vpop.f32.mrf.mxu0
        %v2282 = vadd.f32 0.0, %v2281
        %v2283 = vpop.f32.mrf.mxu0
        %v2284 = vadd.f32 0.0, %v2283
        %2285 = vmatmul.bf16.gmra.mxu0 %v2073
        %v2286 = vpop.f32.mrf.mxu0
        %v2287 = vadd.f32 0.0, %v2286
        %v2288 = vpop.f32.mrf.mxu0
        %v2289 = vadd.f32 0.0, %v2288
        %2290 = vmatmul.bf16.gmra.mxu0 %v2077
        %v2291 = vpop.f32.mrf.mxu0
        %v2292 = vadd.f32 0.0, %v2291
        %v2293 = vpop.f32.mrf.mxu0
        %v2294 = vadd.f32 0.0, %v2293
        %2295 = vdwg.mxu0
        %2296 = vmatpush.bf16.msra.mxu0 %v2216
        %2297 = vmatpush.bf16.msra.mxu0 %v2215
        %2298 = vmatpush.bf16.msra.mxu0 %v2214
        %2299 = vmatpush.bf16.msra.mxu0 %v2213
        %2300 = vmatpush.bf16.msra.mxu0 %v2212
        %2301 = vmatpush.bf16.msra.mxu0 %v2211
        %2302 = vmatpush.bf16.msra.mxu0 %v2210
        %2303 = vmatpush.bf16.msra.mxu0 %v2209
        %2304 = vmatmul.bf16.gmra.mxu0 %v2066
        %v2305 = vpop.f32.mrf.mxu0
        %v2306 = vadd.f32 %v2277, %v2305
        %v2307 = vpop.f32.mrf.mxu0
        %v2308 = vadd.f32 %v2279, %v2307
        %2309 = vmatmul.bf16.gmra.mxu0 %v2070
        %v2310 = vpop.f32.mrf.mxu0
        %v2311 = vadd.f32 %v2282, %v2310
        %v2312 = vpop.f32.mrf.mxu0
        %v2313 = vadd.f32 %v2284, %v2312
        %2314 = vmatmul.bf16.gmra.mxu0 %v2074
        %v2315 = vpop.f32.mrf.mxu0
        %v2316 = vadd.f32 %v2287, %v2315
        %v2317 = vpop.f32.mrf.mxu0
        %v2318 = vadd.f32 %v2289, %v2317
        %2319 = vmatmul.bf16.gmra.mxu0 %v2078
        %v2320 = vpop.f32.mrf.mxu0
        %v2321 = vadd.f32 %v2292, %v2320
        %v2322 = vpop.f32.mrf.mxu0
        %v2323 = vadd.f32 %v2294, %v2322
        %2324 = vdwg.mxu0
        %2325 = vmatpush.bf16.msra.mxu0 %v2224
        %2326 = vmatpush.bf16.msra.mxu0 %v2223
        %2327 = vmatpush.bf16.msra.mxu0 %v2222
        %2328 = vmatpush.bf16.msra.mxu0 %v2221
        %2329 = vmatpush.bf16.msra.mxu0 %v2220
        %2330 = vmatpush.bf16.msra.mxu0 %v2219
        %2331 = vmatpush.bf16.msra.mxu0 %v2218
        %2332 = vmatpush.bf16.msra.mxu0 %v2217
        %2333 = vmatmul.bf16.gmra.mxu0 %v2067
        %v2334 = vpop.f32.mrf.mxu0
        %v2335 = vadd.f32 %v2306, %v2334
        %v2336 = vpop.f32.mrf.mxu0
        %v2337 = vadd.f32 %v2308, %v2336
        %2338 = vmatmul.bf16.gmra.mxu0 %v2071
        %v2339 = vpop.f32.mrf.mxu0
        %v2340 = vadd.f32 %v2311, %v2339
        %v2341 = vpop.f32.mrf.mxu0
        %v2342 = vadd.f32 %v2313, %v2341
        %2343 = vmatmul.bf16.gmra.mxu0 %v2075
        %v2344 = vpop.f32.mrf.mxu0
        %v2345 = vadd.f32 %v2316, %v2344
        %v2346 = vpop.f32.mrf.mxu0
        %v2347 = vadd.f32 %v2318, %v2346
        %2348 = vmatmul.bf16.gmra.mxu0 %v2079
        %v2349 = vpop.f32.mrf.mxu0
        %v2350 = vadd.f32 %v2321, %v2349
        %v2351 = vpop.f32.mrf.mxu0
        %v2352 = vadd.f32 %v2323, %v2351
        %2353 = vdwg.mxu0
        %2354 = vmatpush.bf16.msra.mxu0 0
        %2355 = vmatpush.bf16.msra.mxu0 0
        %2356 = vmatpush.bf16.msra.mxu0 0
        %2357 = vmatpush.bf16.msra.mxu0 0
        %2358 = vmatpush.bf16.msra.mxu0 0
        %2359 = vmatpush.bf16.msra.mxu0 %v2227
        %2360 = vmatpush.bf16.msra.mxu0 %v2226
        %2361 = vmatpush.bf16.msra.mxu0 %v2225
        %2362 = vmatmul.bf16.gmra.mxu0 %v2256
        %v2363 = vpop.f32.mrf.mxu0
        %v2364 = vadd.f32 %v2335, %v2363
        %v2365 = vpop.f32.mrf.mxu0
        %v2366 = vadd.f32 %v2337, %v2365
        %2367 = vmatmul.bf16.gmra.mxu0 %v2259
        %v2368 = vpop.f32.mrf.mxu0
        %v2369 = vadd.f32 %v2340, %v2368
        %v2370 = vpop.f32.mrf.mxu0
        %v2371 = vadd.f32 %v2342, %v2370
        %2372 = vmatmul.bf16.gmra.mxu0 %v2262
        %v2373 = vpop.f32.mrf.mxu0
        %v2374 = vadd.f32 %v2345, %v2373
        %v2375 = vpop.f32.mrf.mxu0
        %v2376 = vadd.f32 %v2347, %v2375
        %2377 = vmatmul.bf16.gmra.mxu0 %v2265
        %v2378 = vpop.f32.mrf.mxu0
        %v2379 = vadd.f32 %v2350, %v2378
        %v2380 = vpop.f32.mrf.mxu0
        %v2381 = vadd.f32 %v2352, %v2380
        %2382 = vdwg.mxu0
        %v2383 = vld [vmem:[%s5 + $0x2] sm:$0x1]
        %v2384 = vld [vmem:[%s5 + $0x3] sm:$0x1]
        %v2385 = vsel %vm370, %v2364, 0.0
        %v2386 = vsel %vm370, %v2366, 0.0
        %v2387 = vadd.f32 %v2385, %v2386
        %v2388 = vsel %vm370, %v2369, 0.0
        %v2389 = vadd.f32 %v2387, %v2388
        %v2390 = vsel %vm370, %v2371, 0.0
        %v2391 = vadd.f32 %v2389, %v2390
        %v2392 = vsel %vm370, %v2374, 0.0
        %v2393 = vadd.f32 %v2391, %v2392
        %v2394 = vsel %vm370, %v2376, 0.0
        %v2395 = vadd.f32 %v2393, %v2394
        %v2396 = vsel %vm370, %v2379, 0.0
        %v2397 = vadd.f32 %v2395, %v2396
        %v2398 = vsel %vm370, %v2381, 0.0
        %v2399 = vadd.f32 %v2397, %v2398
        %v2400 = vrot.slane %v2399, 4
        %v2401 = vadd.f32 %v2399, %v2400
        %v2402 = vrot.slane %v2401, 2
        %v2403 = vadd.f32 %v2401, %v2402
        %v2404 = vrot.slane %v2403, 1
        %v2405 = vadd.f32 %v2403, %v2404
        %v2406 = vmul.f32 %v2405, %v636
        %v2407 = vsub.f32 %v2364, %v2406
        %v2408 = vsub.f32 %v2366, %v2406
        %v2409 = vsub.f32 %v2369, %v2406
        %v2410 = vsub.f32 %v2371, %v2406
        %v2411 = vsub.f32 %v2374, %v2406
        %v2412 = vsub.f32 %v2376, %v2406
        %v2413 = vsub.f32 %v2379, %v2406
        %v2414 = vsub.f32 %v2381, %v2406
        %v2415 = vmul.f32 %v2407, %v2407
        %v2416 = vmul.f32 %v2408, %v2408
        %v2417 = vmul.f32 %v2409, %v2409
        %v2418 = vmul.f32 %v2410, %v2410
        %v2419 = vmul.f32 %v2411, %v2411
        %v2420 = vmul.f32 %v2412, %v2412
        %v2421 = vmul.f32 %v2413, %v2413
        %v2422 = vmul.f32 %v2414, %v2414
        %v2423 = vsel %vm370, %v2415, 0.0
        %v2424 = vsel %vm370, %v2416, 0.0
        %v2425 = vadd.f32 %v2423, %v2424
        %v2426 = vsel %vm370, %v2417, 0.0
        %v2427 = vadd.f32 %v2425, %v2426
        %v2428 = vsel %vm370, %v2418, 0.0
        %v2429 = vadd.f32 %v2427, %v2428
        %v2430 = vsel %vm370, %v2419, 0.0
        %v2431 = vadd.f32 %v2429, %v2430
        %v2432 = vsel %vm370, %v2420, 0.0
        %v2433 = vadd.f32 %v2431, %v2432
        %v2434 = vsel %vm370, %v2421, 0.0
        %v2435 = vadd.f32 %v2433, %v2434
        %v2436 = vsel %vm370, %v2422, 0.0
        %v2437 = vadd.f32 %v2435, %v2436
        %v2438 = vrot.slane %v2437, 4
        %v2439 = vadd.f32 %v2437, %v2438
        %v2440 = vrot.slane %v2439, 2
        %v2441 = vadd.f32 %v2439, %v2440
        %v2442 = vrot.slane %v2441, 1
        %v2443 = vadd.f32 %v2441, %v2442
        %v2444 = vmul.f32 %v2443, %v636
        %v2445 = vadd.f32 %v2444, 1e-05
        %v2446 = vrsqrt.pop %v2445
        %v2447 = vmul.f32 %v2446, %v2445
        %v2448 = vmul.f32 %v2447, %v2446
        %v2449 = vmul.f32 0.5, %v2448
        %v2450 = vsub.f32 1.5, %v2449
        %v2451 = vmul.f32 %v2446, %v2450
        %vm2452 = vweird.f32 %v2445
        %vm2453 = vweird.f32 %v2446
        %vm2454 = vmor %vm2452, %vm2453
        %v2455 = vsel %vm2454, %v2446, %v2451
        %v2456 = vmul.f32 %v2383, %v2455
        %v2457 = vmul.f32 %v2406, %v2456
        %v2458 = vsub.f32 %v2384, %v2457
        %v2459 = vperm.slane %v2456, 0
        %v2460 = vmul.f32 %v2364, %v2459
        %v2461 = vmul.f32 %v2366, %v2459
        %v2462 = vmul.f32 %v2369, %v2459
        %v2463 = vmul.f32 %v2371, %v2459
        %v2464 = vmul.f32 %v2374, %v2459
        %v2465 = vmul.f32 %v2376, %v2459
        %v2466 = vmul.f32 %v2379, %v2459
        %v2467 = vmul.f32 %v2381, %v2459
        %v2468 = vperm.slane %v2458, 0
        %v2469 = vadd.f32 %v2460, %v2468
        %v2470 = vadd.f32 %v2461, %v2468
        %v2471 = vadd.f32 %v2462, %v2468
        %v2472 = vadd.f32 %v2463, %v2468
        %v2473 = vadd.f32 %v2464, %v2468
        %v2474 = vadd.f32 %v2465, %v2468
        %v2475 = vadd.f32 %v2466, %v2468
        %v2476 = vadd.f32 %v2467, %v2468
        %vm2477 = vcmp.ge.f32.partialorder %v2469, 0.0
        %vm2478 = vcmp.ge.f32.partialorder %v2470, 0.0
        %vm2479 = vcmp.ge.f32.partialorder %v2471, 0.0
        %vm2480 = vcmp.ge.f32.partialorder %v2472, 0.0
        %vm2481 = vcmp.ge.f32.partialorder %v2473, 0.0
        %vm2482 = vcmp.ge.f32.partialorder %v2474, 0.0
        %vm2483 = vcmp.ge.f32.partialorder %v2475, 0.0
        %vm2484 = vcmp.ge.f32.partialorder %v2476, 0.0
        %v2485 = vmul.f32 %v2469, 0.1
        %v2486 = vmul.f32 %v2470, 0.1
        %v2487 = vmul.f32 %v2471, 0.1
        %v2488 = vmul.f32 %v2472, 0.1
        %v2489 = vmul.f32 %v2473, 0.1
        %v2490 = vmul.f32 %v2474, 0.1
        %v2491 = vmul.f32 %v2475, 0.1
        %v2492 = vmul.f32 %v2476, 0.1
        %v2493 = vsel %vm2477, %v2469, %v2485
        %v2494 = vsel %vm2478, %v2470, %v2486
        %v2495 = vsel %vm2479, %v2471, %v2487
        %v2496 = vsel %vm2480, %v2472, %v2488
        %v2497 = vsel %vm2481, %v2473, %v2489
        %v2498 = vsel %vm2482, %v2474, %v2490
        %v2499 = vsel %vm2483, %v2475, %v2491
        %v2500 = vsel %vm2484, %v2476, %v2492
        %2501 = vst.msk [vmem:[%s356] sm:$0xff] %vm370, %v2493
        %2502 = vst.msk [vmem:[%s356 + $0x8] sm:$0xff] %vm370, %v2494
        %2503 = vst.msk [vmem:[%s356 + $0x10] sm:$0xff] %vm370, %v2495
        %2504 = vst.msk [vmem:[%s356 + $0x18] sm:$0xff] %vm370, %v2496
        %2505 = vst.msk [vmem:[%s356 + $0x20] sm:$0xff] %vm370, %v2497
        %2506 = vst.msk [vmem:[%s356 + $0x28] sm:$0xff] %vm370, %v2498
        %2507 = vst.msk [vmem:[%s356 + $0x30] sm:$0xff] %vm370, %v2499
        %2508 = vst.msk [vmem:[%s356 + $0x38] sm:$0xff] %vm370, %v2500
        %2509 = vst.msk [vmem:[#allocation2 + $0x18] sm:$0xff] %vm370, %v2493
        %2510 = vst.msk [vmem:[#allocation2 + $0x20] sm:$0xff] %vm370, %v2494
        %2511 = vst.msk [vmem:[#allocation2 + $0x28] sm:$0xff] %vm370, %v2495
        %2512 = vst.msk [vmem:[#allocation2 + $0x30] sm:$0xff] %vm370, %v2496
        %2513 = vst.msk [vmem:[#allocation2 + $0x38] sm:$0xff] %vm370, %v2497
        %2514 = vst.msk [vmem:[#allocation2 + $0x40] sm:$0xff] %vm370, %v2498
        %2515 = vst.msk [vmem:[#allocation2 + $0x48] sm:$0xff] %vm370, %v2499
        %2516 = vst.msk [vmem:[#allocation2 + $0x50] sm:$0xff] %vm370, %v2500
        %v2517 = vld [vmem:[#allocation2 + $0x3] sm:$0xff]
        %v2518 = vld [vmem:[#allocation2 + $0xb] sm:$0xff]
        %v2519 = vld [vmem:[#allocation2 + $0x13] sm:$0xff]
        %v2520 = vld [vmem:[#allocation2 + $0x1b] sm:$0xff]
        %v2521 = vld [vmem:[#allocation2 + $0x23] sm:$0xff]
        %v2522 = vld [vmem:[#allocation2 + $0x2b] sm:$0xff]
        %v2523 = vld [vmem:[#allocation2 + $0x33] sm:$0xff]
        %v2524 = vld [vmem:[#allocation2 + $0x3b] sm:$0xff]
        %v2525 = vld [vmem:[#allocation2 + $0x4] sm:$0xff]
        %v2526 = vld [vmem:[#allocation2 + $0xc] sm:$0xff]
        %v2527 = vld [vmem:[#allocation2 + $0x14] sm:$0xff]
        %v2528 = vld [vmem:[#allocation2 + $0x1c] sm:$0xff]
        %v2529 = vld [vmem:[#allocation2 + $0x24] sm:$0xff]
        %v2530 = vld [vmem:[#allocation2 + $0x2c] sm:$0xff]
        %v2531 = vld [vmem:[#allocation2 + $0x34] sm:$0xff]
        %v2532 = vld [vmem:[#allocation2 + $0x3c] sm:$0xff]
        %v2533 = vld [vmem:[#allocation2 + $0x5] sm:$0xff]
        %v2534 = vld [vmem:[#allocation2 + $0xd] sm:$0xff]
        %v2535 = vld [vmem:[#allocation2 + $0x15] sm:$0xff]
        %v2536 = vld [vmem:[#allocation2 + $0x1d] sm:$0xff]
        %v2537 = vld [vmem:[#allocation2 + $0x25] sm:$0xff]
        %v2538 = vld [vmem:[#allocation2 + $0x2d] sm:$0xff]
        %v2539 = vld [vmem:[#allocation2 + $0x35] sm:$0xff]
        %v2540 = vld [vmem:[#allocation2 + $0x3d] sm:$0xff]
        %v2541 = vld [vmem:[#allocation2 + $0x7] sm:$0xff]
        %v2542 = vld [vmem:[#allocation2 + $0xf] sm:$0xff]
        %v2543 = vld [vmem:[#allocation2 + $0x17] sm:$0xff]
        %v2544 = vld [vmem:[#allocation2 + $0x1f] sm:$0xff]
        %v2545 = vld [vmem:[#allocation2 + $0x27] sm:$0xff]
        %v2546 = vld [vmem:[#allocation2 + $0x2f] sm:$0xff]
        %v2547 = vld [vmem:[#allocation2 + $0x37] sm:$0xff]
        %v2548 = vld [vmem:[#allocation2 + $0x3f] sm:$0xff]
        %v2549 = vld [vmem:[#allocation2 + $0x8] sm:$0xff]
        %v2550 = vld [vmem:[#allocation2 + $0x10] sm:$0xff]
        %v2551 = vld [vmem:[#allocation2 + $0x18] sm:$0xff]
        %v2552 = vld [vmem:[#allocation2 + $0x20] sm:$0xff]
        %v2553 = vld [vmem:[#allocation2 + $0x28] sm:$0xff]
        %v2554 = vld [vmem:[#allocation2 + $0x30] sm:$0xff]
        %v2555 = vld [vmem:[#allocation2 + $0x38] sm:$0xff]
        %v2556 = vld [vmem:[#allocation2 + $0x40] sm:$0xff]
        %v2557 = vld [vmem:[#allocation2 + $0x9] sm:$0xff]
        %v2558 = vld [vmem:[#allocation2 + $0x11] sm:$0xff]
        %v2559 = vld [vmem:[#allocation2 + $0x19] sm:$0xff]
        %v2560 = vld [vmem:[#allocation2 + $0x21] sm:$0xff]
        %v2561 = vld [vmem:[#allocation2 + $0x29] sm:$0xff]
        %v2562 = vld [vmem:[#allocation2 + $0x31] sm:$0xff]
        %v2563 = vld [vmem:[#allocation2 + $0x39] sm:$0xff]
        %v2564 = vld [vmem:[#allocation2 + $0x41] sm:$0xff]
        %v2565 = vld [vmem:[#allocation2 + $0x43] sm:$0xff]
        %v2566 = vld [vmem:[#allocation2 + $0x44] sm:$0xff]
        %2575 = vrot.lane.b32.xlu0 %v2525, 16
        %v2576 = vpop.permute.xlu0 %2575
        %2577 = vrot.lane.b32.xlu0 %v2526, 16
        %v2578 = vpop.permute.xlu0 %2577
        %2579 = vrot.lane.b32.xlu0 %v2527, 16
        %v2580 = vpop.permute.xlu0 %2579
        %2581 = vrot.lane.b32.xlu0 %v2528, 16
        %v2582 = vpop.permute.xlu0 %2581
        %2583 = vrot.lane.b32.xlu0 %v2529, 16
        %v2584 = vpop.permute.xlu0 %2583
        %2585 = vrot.lane.b32.xlu0 %v2530, 16
        %v2586 = vpop.permute.xlu0 %2585
        %2587 = vrot.lane.b32.xlu0 %v2531, 16
        %v2588 = vpop.permute.xlu0 %2587
        %2589 = vrot.lane.b32.xlu0 %v2532, 16
        %v2590 = vpop.permute.xlu0 %2589
        %2607 = vrot.lane.b32.xlu0 %v2533, 32
        %v2608 = vpop.permute.xlu0 %2607
        %2609 = vrot.lane.b32.xlu0 %v2534, 32
        %v2610 = vpop.permute.xlu0 %2609
        %2611 = vrot.lane.b32.xlu0 %v2535, 32
        %v2612 = vpop.permute.xlu0 %2611
        %2613 = vrot.lane.b32.xlu0 %v2536, 32
        %v2614 = vpop.permute.xlu0 %2613
        %2615 = vrot.lane.b32.xlu0 %v2537, 32
        %v2616 = vpop.permute.xlu0 %2615
        %2617 = vrot.lane.b32.xlu0 %v2538, 32
        %v2618 = vpop.permute.xlu0 %2617
        %2619 = vrot.lane.b32.xlu0 %v2539, 32
        %v2620 = vpop.permute.xlu0 %2619
        %2621 = vrot.lane.b32.xlu0 %v2540, 32
        %v2622 = vpop.permute.xlu0 %2621
        %2639 = vrot.lane.b32.xlu0 %v2541, 48
        %v2640 = vpop.permute.xlu0 %2639
        %2641 = vrot.lane.b32.xlu0 %v2542, 48
        %v2642 = vpop.permute.xlu0 %2641
        %2643 = vrot.lane.b32.xlu0 %v2543, 48
        %v2644 = vpop.permute.xlu0 %2643
        %2645 = vrot.lane.b32.xlu0 %v2544, 48
        %v2646 = vpop.permute.xlu0 %2645
        %2647 = vrot.lane.b32.xlu0 %v2545, 48
        %v2648 = vpop.permute.xlu0 %2647
        %2649 = vrot.lane.b32.xlu0 %v2546, 48
        %v2650 = vpop.permute.xlu0 %2649
        %2651 = vrot.lane.b32.xlu0 %v2547, 48
        %v2652 = vpop.permute.xlu0 %2651
        %2653 = vrot.lane.b32.xlu0 %v2548, 48
        %v2654 = vpop.permute.xlu0 %2653
        %2671 = vrot.lane.b32.xlu0 %v2549, 64
        %v2672 = vpop.permute.xlu0 %2671
        %2673 = vrot.lane.b32.xlu0 %v2550, 64
        %v2674 = vpop.permute.xlu0 %2673
        %2675 = vrot.lane.b32.xlu0 %v2551, 64
        %v2676 = vpop.permute.xlu0 %2675
        %2677 = vrot.lane.b32.xlu0 %v2552, 64
        %v2678 = vpop.permute.xlu0 %2677
        %2679 = vrot.lane.b32.xlu0 %v2553, 64
        %v2680 = vpop.permute.xlu0 %2679
        %2681 = vrot.lane.b32.xlu0 %v2554, 64
        %v2682 = vpop.permute.xlu0 %2681
        %2683 = vrot.lane.b32.xlu0 %v2555, 64
        %v2684 = vpop.permute.xlu0 %2683
        %2685 = vrot.lane.b32.xlu0 %v2556, 64
        %v2686 = vpop.permute.xlu0 %2685
        %2703 = vrot.lane.b32.xlu0 %v2557, 80
        %v2704 = vpop.permute.xlu0 %2703
        %2705 = vrot.lane.b32.xlu0 %v2558, 80
        %v2706 = vpop.permute.xlu0 %2705
        %2707 = vrot.lane.b32.xlu0 %v2559, 80
        %v2708 = vpop.permute.xlu0 %2707
        %2709 = vrot.lane.b32.xlu0 %v2560, 80
        %v2710 = vpop.permute.xlu0 %2709
        %2711 = vrot.lane.b32.xlu0 %v2561, 80
        %v2712 = vpop.permute.xlu0 %2711
        %2713 = vrot.lane.b32.xlu0 %v2562, 80
        %v2714 = vpop.permute.xlu0 %2713
        %2715 = vrot.lane.b32.xlu0 %v2563, 80
        %v2716 = vpop.permute.xlu0 %2715
        %2717 = vrot.lane.b32.xlu0 %v2564, 80
        %v2718 = vpop.permute.xlu0 %2717
        %2735 = vrot.lane.b32.xlu0 %v2518, 96
        %v2736 = vpop.permute.xlu0 %2735
        %2737 = vrot.lane.b32.xlu0 %v2519, 96
        %v2738 = vpop.permute.xlu0 %2737
        %2739 = vrot.lane.b32.xlu0 %v2520, 96
        %v2740 = vpop.permute.xlu0 %2739
        %2741 = vrot.lane.b32.xlu0 %v2521, 96
        %v2742 = vpop.permute.xlu0 %2741
        %2743 = vrot.lane.b32.xlu0 %v2522, 96
        %v2744 = vpop.permute.xlu0 %2743
        %2745 = vrot.lane.b32.xlu0 %v2523, 96
        %v2746 = vpop.permute.xlu0 %2745
        %2747 = vrot.lane.b32.xlu0 %v2524, 96
        %v2748 = vpop.permute.xlu0 %2747
        %2749 = vrot.lane.b32.xlu0 %v2565, 96
        %v2750 = vpop.permute.xlu0 %2749
        %2760 = vrot.lane.b32.xlu0 %v2526, 112
        %v2761 = vpop.permute.xlu0 %2760
        %2762 = vrot.lane.b32.xlu0 %v2527, 112
        %v2763 = vpop.permute.xlu0 %2762
        %2764 = vrot.lane.b32.xlu0 %v2528, 112
        %v2765 = vpop.permute.xlu0 %2764
        %2766 = vrot.lane.b32.xlu0 %v2529, 112
        %v2767 = vpop.permute.xlu0 %2766
        %2768 = vrot.lane.b32.xlu0 %v2530, 112
        %v2769 = vpop.permute.xlu0 %2768
        %2770 = vrot.lane.b32.xlu0 %v2531, 112
        %v2771 = vpop.permute.xlu0 %2770
        %2772 = vrot.lane.b32.xlu0 %v2532, 112
        %v2773 = vpop.permute.xlu0 %2772
        %2774 = vrot.lane.b32.xlu0 %v2566, 112
        %v2775 = vpop.permute.xlu0 %2774
        %v2784 = vsel %vm370, %v2517, %v2576
        %v2785 = vsel %vm370, %v2518, %v2578
        %v2786 = vsel %vm370, %v2519, %v2580
        %v2787 = vsel %vm370, %v2520, %v2582
        %v2788 = vsel %vm370, %v2521, %v2584
        %v2789 = vsel %vm370, %v2522, %v2586
        %v2790 = vsel %vm370, %v2523, %v2588
        %v2791 = vsel %vm370, %v2524, %v2590
        %v2792 = vsel %vm377, %v2784, %v2608
        %v2793 = vsel %vm377, %v2785, %v2610
        %v2794 = vsel %vm377, %v2786, %v2612
        %v2795 = vsel %vm377, %v2787, %v2614
        %v2796 = vsel %vm377, %v2788, %v2616
        %v2797 = vsel %vm377, %v2789, %v2618
        %v2798 = vsel %vm377, %v2790, %v2620
        %v2799 = vsel %vm377, %v2791, %v2622
        %v2800 = vsel %vm1023, %v2792, %v2640
        %v2801 = vsel %vm1023, %v2793, %v2642
        %v2802 = vsel %vm1023, %v2794, %v2644
        %v2803 = vsel %vm1023, %v2795, %v2646
        %v2804 = vsel %vm1023, %v2796, %v2648
        %v2805 = vsel %vm1023, %v2797, %v2650
        %v2806 = vsel %vm1023, %v2798, %v2652
        %v2807 = vsel %vm1023, %v2799, %v2654
        %v2808 = vsel %vm1032, %v2800, %v2672
        %v2809 = vsel %vm1032, %v2801, %v2674
        %v2810 = vsel %vm1032, %v2802, %v2676
        %v2811 = vsel %vm1032, %v2803, %v2678
        %v2812 = vsel %vm1032, %v2804, %v2680
        %v2813 = vsel %vm1032, %v2805, %v2682
        %v2814 = vsel %vm1032, %v2806, %v2684
        %v2815 = vsel %vm1032, %v2807, %v2686
        %v2816 = vsel %vm1041, %v2808, %v2704
        %v2817 = vsel %vm1041, %v2809, %v2706
        %v2818 = vsel %vm1041, %v2810, %v2708
        %v2819 = vsel %vm1041, %v2811, %v2710
        %v2820 = vsel %vm1041, %v2812, %v2712
        %v2821 = vsel %vm1041, %v2813, %v2714
        %v2822 = vsel %vm1041, %v2814, %v2716
        %v2823 = vsel %vm1041, %v2815, %v2718
        %v2824 = vsel %vm1050, %v2816, %v2736
        %v2825 = vsel %vm1050, %v2817, %v2738
        %v2826 = vsel %vm1050, %v2818, %v2740
        %v2827 = vsel %vm1050, %v2819, %v2742
        %v2828 = vsel %vm1050, %v2820, %v2744
        %v2829 = vsel %vm1050, %v2821, %v2746
        %v2830 = vsel %vm1050, %v2822, %v2748
        %v2831 = vsel %vm1050, %v2823, %v2750
        %v2832 = vsel %vm1059, %v2824, %v2761
        %v2833 = vsel %vm1059, %v2825, %v2763
        %v2834 = vsel %vm1059, %v2826, %v2765
        %v2835 = vsel %vm1059, %v2827, %v2767
        %v2836 = vsel %vm1059, %v2828, %v2769
        %v2837 = vsel %vm1059, %v2829, %v2771
        %v2838 = vsel %vm1059, %v2830, %v2773
        %v2839 = vsel %vm1059, %v2831, %v2775
        %v2840 = vld [vmem:[%s6] sm:$0xff]
        %v2841 = vld [vmem:[%s6 + $0x20] sm:$0xff]
        %v2842 = vld [vmem:[%s6 + $0x40] sm:$0xff]
        %v2843 = vld [vmem:[%s6 + $0x60] sm:$0xff]
        %v2844 = vld [vmem:[%s6 + $0x80] sm:$0xff]
        %v2845 = vld [vmem:[%s6 + $0xa0] sm:$0xff]
        %v2846 = vld [vmem:[%s6 + $0xc0] sm:$0xff]
        %v2847 = vld [vmem:[%s6 + $0xe0] sm:$0xff]
        %v2848 = vmul.f32 %v2832, %v2840
        %v2849 = vmul.f32 %v2833, %v2841
        %v2850 = vmul.f32 %v2834, %v2842
        %v2851 = vmul.f32 %v2835, %v2843
        %v2852 = vmul.f32 %v2836, %v2844
        %v2853 = vmul.f32 %v2837, %v2845
        %v2854 = vmul.f32 %v2838, %v2846
        %v2855 = vmul.f32 %v2839, %v2847
        %v2856 = vpack.c.bf16 %v2848, %v2848
        %v2857 = vpack.c.bf16 %v2849, %v2849
        %v2858 = vpack.c.bf16 %v2850, %v2850
        %v2859 = vpack.c.bf16 %v2851, %v2851
        %v2860 = vpack.c.bf16 %v2852, %v2852
        %v2861 = vpack.c.bf16 %v2853, %v2853
        %v2862 = vpack.c.bf16 %v2854, %v2854
        %v2863 = vpack.c.bf16 %v2855, %v2855
        %2864 = vst [vmem:[#allocation4] sm:$0xf] %v2856
        %2865 = vst [vmem:[#allocation4 + $0x1c] sm:$0xf] %v2857
        %2866 = vst [vmem:[#allocation4 + $0x38] sm:$0xf] %v2858
        %2867 = vst [vmem:[#allocation4 + $0x54] sm:$0xf] %v2859
        %2868 = vst [vmem:[#allocation4 + $0x70] sm:$0xf] %v2860
        %2869 = vst [vmem:[#allocation4 + $0x8c] sm:$0xf] %v2861
        %2870 = vst [vmem:[#allocation4 + $0xa8] sm:$0xf] %v2862
        %2871 = vst [vmem:[#allocation4 + $0xc4] sm:$0xf] %v2863
        %v2872 = vld [vmem:[#allocation2 + $0xd] sm:$0xff]
        %v2873 = vld [vmem:[#allocation2 + $0x15] sm:$0xff]
        %v2874 = vld [vmem:[#allocation2 + $0x1d] sm:$0xff]
        %v2875 = vld [vmem:[#allocation2 + $0x25] sm:$0xff]
        %v2876 = vld [vmem:[#allocation2 + $0x2d] sm:$0xff]
        %v2877 = vld [vmem:[#allocation2 + $0x35] sm:$0xff]
        %v2878 = vld [vmem:[#allocation2 + $0x3d] sm:$0xff]
        %v2879 = vld [vmem:[#allocation2 + $0x45] sm:$0xff]
        %v2880 = vld [vmem:[#allocation2 + $0x13] sm:$0xff]
        %v2881 = vld [vmem:[#allocation2 + $0x1b] sm:$0xff]
        %v2882 = vld [vmem:[#allocation2 + $0x23] sm:$0xff]
        %v2883 = vld [vmem:[#allocation2 + $0x2b] sm:$0xff]
        %v2884 = vld [vmem:[#allocation2 + $0x33] sm:$0xff]
        %v2885 = vld [vmem:[#allocation2 + $0x3b] sm:$0xff]
        %v2886 = vld [vmem:[#allocation2 + $0x43] sm:$0xff]
        %v2887 = vld [vmem:[#allocation2 + $0x4b] sm:$0xff]
        %v2888 = vld [vmem:[#allocation2 + $0x14] sm:$0xff]
        %v2889 = vld [vmem:[#allocation2 + $0x1c] sm:$0xff]
        %v2890 = vld [vmem:[#allocation2 + $0x24] sm:$0xff]
        %v2891 = vld [vmem:[#allocation2 + $0x2c] sm:$0xff]
        %v2892 = vld [vmem:[#allocation2 + $0x34] sm:$0xff]
        %v2893 = vld [vmem:[#allocation2 + $0x3c] sm:$0xff]
        %v2894 = vld [vmem:[#allocation2 + $0x44] sm:$0xff]
        %v2895 = vld [vmem:[#allocation2 + $0x4c] sm:$0xff]
        %v2896 = vld [vmem:[#allocation2 + $0x4d] sm:$0xff]
        %v2897 = vld [vmem:[#allocation2 + $0x17] sm:$0xff]
        %v2898 = vld [vmem:[#allocation2 + $0x1f] sm:$0xff]
        %v2899 = vld [vmem:[#allocation2 + $0x27] sm:$0xff]
        %v2900 = vld [vmem:[#allocation2 + $0x2f] sm:$0xff]
        %v2901 = vld [vmem:[#allocation2 + $0x37] sm:$0xff]
        %v2902 = vld [vmem:[#allocation2 + $0x3f] sm:$0xff]
        %v2903 = vld [vmem:[#allocation2 + $0x47] sm:$0xff]
        %v2904 = vld [vmem:[#allocation2 + $0x4f] sm:$0xff]
        %v2905 = vld [vmem:[#allocation2 + $0x18] sm:$0xff]
        %v2906 = vld [vmem:[#allocation2 + $0x20] sm:$0xff]
        %v2907 = vld [vmem:[#allocation2 + $0x28] sm:$0xff]
        %v2908 = vld [vmem:[#allocation2 + $0x30] sm:$0xff]
        %v2909 = vld [vmem:[#allocation2 + $0x38] sm:$0xff]
        %v2910 = vld [vmem:[#allocation2 + $0x40] sm:$0xff]
        %v2911 = vld [vmem:[#allocation2 + $0x48] sm:$0xff]
        %v2912 = vld [vmem:[#allocation2 + $0x50] sm:$0xff]
        %v2913 = vld [vmem:[#allocation2 + $0x19] sm:$0xff]
        %v2914 = vld [vmem:[#allocation2 + $0x21] sm:$0xff]
        %v2915 = vld [vmem:[#allocation2 + $0x29] sm:$0xff]
        %v2916 = vld [vmem:[#allocation2 + $0x31] sm:$0xff]
        %v2917 = vld [vmem:[#allocation2 + $0x39] sm:$0xff]
        %v2918 = vld [vmem:[#allocation2 + $0x41] sm:$0xff]
        %v2919 = vld [vmem:[#allocation2 + $0x49] sm:$0xff]
        %v2920 = vld [vmem:[#allocation2 + $0x51] sm:$0xff]
        %v2921 = vld [vmem:[#allocation2 + $0x53] sm:$0xff]
        %2930 = vrot.lane.b32.xlu0 %v2880, 16
        %v2931 = vpop.permute.xlu0 %2930
        %2932 = vrot.lane.b32.xlu0 %v2881, 16
        %v2933 = vpop.permute.xlu0 %2932
        %2934 = vrot.lane.b32.xlu0 %v2882, 16
        %v2935 = vpop.permute.xlu0 %2934
        %2936 = vrot.lane.b32.xlu0 %v2883, 16
        %v2937 = vpop.permute.xlu0 %2936
        %2938 = vrot.lane.b32.xlu0 %v2884, 16
        %v2939 = vpop.permute.xlu0 %2938
        %2940 = vrot.lane.b32.xlu0 %v2885, 16
        %v2941 = vpop.permute.xlu0 %2940
        %2942 = vrot.lane.b32.xlu0 %v2886, 16
        %v2943 = vpop.permute.xlu0 %2942
        %2944 = vrot.lane.b32.xlu0 %v2887, 16
        %v2945 = vpop.permute.xlu0 %2944
        %2962 = vrot.lane.b32.xlu0 %v2888, 32
        %v2963 = vpop.permute.xlu0 %2962
        %2964 = vrot.lane.b32.xlu0 %v2889, 32
        %v2965 = vpop.permute.xlu0 %2964
        %2966 = vrot.lane.b32.xlu0 %v2890, 32
        %v2967 = vpop.permute.xlu0 %2966
        %2968 = vrot.lane.b32.xlu0 %v2891, 32
        %v2969 = vpop.permute.xlu0 %2968
        %2970 = vrot.lane.b32.xlu0 %v2892, 32
        %v2971 = vpop.permute.xlu0 %2970
        %2972 = vrot.lane.b32.xlu0 %v2893, 32
        %v2973 = vpop.permute.xlu0 %2972
        %2974 = vrot.lane.b32.xlu0 %v2894, 32
        %v2975 = vpop.permute.xlu0 %2974
        %2976 = vrot.lane.b32.xlu0 %v2895, 32
        %v2977 = vpop.permute.xlu0 %2976
        %2994 = vrot.lane.b32.xlu0 %v2873, 48
        %v2995 = vpop.permute.xlu0 %2994
        %2996 = vrot.lane.b32.xlu0 %v2874, 48
        %v2997 = vpop.permute.xlu0 %2996
        %2998 = vrot.lane.b32.xlu0 %v2875, 48
        %v2999 = vpop.permute.xlu0 %2998
        %3000 = vrot.lane.b32.xlu0 %v2876, 48
        %v3001 = vpop.permute.xlu0 %3000
        %3002 = vrot.lane.b32.xlu0 %v2877, 48
        %v3003 = vpop.permute.xlu0 %3002
        %3004 = vrot.lane.b32.xlu0 %v2878, 48
        %v3005 = vpop.permute.xlu0 %3004
        %3006 = vrot.lane.b32.xlu0 %v2879, 48
        %v3007 = vpop.permute.xlu0 %3006
        %3008 = vrot.lane.b32.xlu0 %v2896, 48
        %v3009 = vpop.permute.xlu0 %3008
        %3026 = vrot.lane.b32.xlu0 %v2897, 64
        %v3027 = vpop.permute.xlu0 %3026
        %3028 = vrot.lane.b32.xlu0 %v2898, 64
        %v3029 = vpop.permute.xlu0 %3028
        %3030 = vrot.lane.b32.xlu0 %v2899, 64
        %v3031 = vpop.permute.xlu0 %3030
        %3032 = vrot.lane.b32.xlu0 %v2900, 64
        %v3033 = vpop.permute.xlu0 %3032
        %3034 = vrot.lane.b32.xlu0 %v2901, 64
        %v3035 = vpop.permute.xlu0 %3034
        %3036 = vrot.lane.b32.xlu0 %v2902, 64
        %v3037 = vpop.permute.xlu0 %3036
        %3038 = vrot.lane.b32.xlu0 %v2903, 64
        %v3039 = vpop.permute.xlu0 %3038
        %3040 = vrot.lane.b32.xlu0 %v2904, 64
        %v3041 = vpop.permute.xlu0 %3040
        %3058 = vrot.lane.b32.xlu0 %v2905, 80
        %v3059 = vpop.permute.xlu0 %3058
        %3060 = vrot.lane.b32.xlu0 %v2906, 80
        %v3061 = vpop.permute.xlu0 %3060
        %3062 = vrot.lane.b32.xlu0 %v2907, 80
        %v3063 = vpop.permute.xlu0 %3062
        %3064 = vrot.lane.b32.xlu0 %v2908, 80
        %v3065 = vpop.permute.xlu0 %3064
        %3066 = vrot.lane.b32.xlu0 %v2909, 80
        %v3067 = vpop.permute.xlu0 %3066
        %3068 = vrot.lane.b32.xlu0 %v2910, 80
        %v3069 = vpop.permute.xlu0 %3068
        %3070 = vrot.lane.b32.xlu0 %v2911, 80
        %v3071 = vpop.permute.xlu0 %3070
        %3072 = vrot.lane.b32.xlu0 %v2912, 80
        %v3073 = vpop.permute.xlu0 %3072
        %3090 = vrot.lane.b32.xlu0 %v2913, 96
        %v3091 = vpop.permute.xlu0 %3090
        %3092 = vrot.lane.b32.xlu0 %v2914, 96
        %v3093 = vpop.permute.xlu0 %3092
        %3094 = vrot.lane.b32.xlu0 %v2915, 96
        %v3095 = vpop.permute.xlu0 %3094
        %3096 = vrot.lane.b32.xlu0 %v2916, 96
        %v3097 = vpop.permute.xlu0 %3096
        %3098 = vrot.lane.b32.xlu0 %v2917, 96
        %v3099 = vpop.permute.xlu0 %3098
        %3100 = vrot.lane.b32.xlu0 %v2918, 96
        %v3101 = vpop.permute.xlu0 %3100
        %3102 = vrot.lane.b32.xlu0 %v2919, 96
        %v3103 = vpop.permute.xlu0 %3102
        %3104 = vrot.lane.b32.xlu0 %v2920, 96
        %v3105 = vpop.permute.xlu0 %3104
        %3115 = vrot.lane.b32.xlu0 %v2881, 112
        %v3116 = vpop.permute.xlu0 %3115
        %3117 = vrot.lane.b32.xlu0 %v2882, 112
        %v3118 = vpop.permute.xlu0 %3117
        %3119 = vrot.lane.b32.xlu0 %v2883, 112
        %v3120 = vpop.permute.xlu0 %3119
        %3121 = vrot.lane.b32.xlu0 %v2884, 112
        %v3122 = vpop.permute.xlu0 %3121
        %3123 = vrot.lane.b32.xlu0 %v2885, 112
        %v3124 = vpop.permute.xlu0 %3123
        %3125 = vrot.lane.b32.xlu0 %v2886, 112
        %v3126 = vpop.permute.xlu0 %3125
        %3127 = vrot.lane.b32.xlu0 %v2887, 112
        %v3128 = vpop.permute.xlu0 %3127
        %3129 = vrot.lane.b32.xlu0 %v2921, 112
        %v3130 = vpop.permute.xlu0 %3129
        %v3139 = vsel %vm370, %v2872, %v2931
        %v3140 = vsel %vm370, %v2873, %v2933
        %v3141 = vsel %vm370, %v2874, %v2935
        %v3142 = vsel %vm370, %v2875, %v2937
        %v3143 = vsel %vm370, %v2876, %v2939
        %v3144 = vsel %vm370, %v2877, %v2941
        %v3145 = vsel %vm370, %v2878, %v2943
        %v3146 = vsel %vm370, %v2879, %v2945
        %v3147 = vsel %vm377, %v3139, %v2963
        %v3148 = vsel %vm377, %v3140, %v2965
        %v3149 = vsel %vm377, %v3141, %v2967
        %v3150 = vsel %vm377, %v3142, %v2969
        %v3151 = vsel %vm377, %v3143, %v2971
        %v3152 = vsel %vm377, %v3144, %v2973
        %v3153 = vsel %vm377, %v3145, %v2975
        %v3154 = vsel %vm377, %v3146, %v2977
        %v3155 = vsel %vm1023, %v3147, %v2995
        %v3156 = vsel %vm1023, %v3148, %v2997
        %v3157 = vsel %vm1023, %v3149, %v2999
        %v3158 = vsel %vm1023, %v3150, %v3001
        %v3159 = vsel %vm1023, %v3151, %v3003
        %v3160 = vsel %vm1023, %v3152, %v3005
        %v3161 = vsel %vm1023, %v3153, %v3007
        %v3162 = vsel %vm1023, %v3154, %v3009
        %v3163 = vsel %vm1032, %v3155, %v3027
        %v3164 = vsel %vm1032, %v3156, %v3029
        %v3165 = vsel %vm1032, %v3157, %v3031
        %v3166 = vsel %vm1032, %v3158, %v3033
        %v3167 = vsel %vm1032, %v3159, %v3035
        %v3168 = vsel %vm1032, %v3160, %v3037
        %v3169 = vsel %vm1032, %v3161, %v3039
        %v3170 = vsel %vm1032, %v3162, %v3041
        %v3171 = vsel %vm1041, %v3163, %v3059
        %v3172 = vsel %vm1041, %v3164, %v3061
        %v3173 = vsel %vm1041, %v3165, %v3063
        %v3174 = vsel %vm1041, %v3166, %v3065
        %v3175 = vsel %vm1041, %v3167, %v3067
        %v3176 = vsel %vm1041, %v3168, %v3069
        %v3177 = vsel %vm1041, %v3169, %v3071
        %v3178 = vsel %vm1041, %v3170, %v3073
        %v3179 = vsel %vm1050, %v3171, %v3091
        %v3180 = vsel %vm1050, %v3172, %v3093
        %v3181 = vsel %vm1050, %v3173, %v3095
        %v3182 = vsel %vm1050, %v3174, %v3097
        %v3183 = vsel %vm1050, %v3175, %v3099
        %v3184 = vsel %vm1050, %v3176, %v3101
        %v3185 = vsel %vm1050, %v3177, %v3103
        %v3186 = vsel %vm1050, %v3178, %v3105
        %v3187 = vsel %vm1059, %v3179, %v3116
        %v3188 = vsel %vm1059, %v3180, %v3118
        %v3189 = vsel %vm1059, %v3181, %v3120
        %v3190 = vsel %vm1059, %v3182, %v3122
        %v3191 = vsel %vm1059, %v3183, %v3124
        %v3192 = vsel %vm1059, %v3184, %v3126
        %v3193 = vsel %vm1059, %v3185, %v3128
        %v3194 = vsel %vm1059, %v3186, %v3130
        %v3195 = vld [vmem:[%s6 + $0x8] sm:$0xff]
        %v3196 = vld [vmem:[%s6 + $0x28] sm:$0xff]
        %v3197 = vld [vmem:[%s6 + $0x48] sm:$0xff]
        %v3198 = vld [vmem:[%s6 + $0x68] sm:$0xff]
        %v3199 = vld [vmem:[%s6 + $0x88] sm:$0xff]
        %v3200 = vld [vmem:[%s6 + $0xa8] sm:$0xff]
        %v3201 = vld [vmem:[%s6 + $0xc8] sm:$0xff]
        %v3202 = vld [vmem:[%s6 + $0xe8] sm:$0xff]
        %v3203 = vmul.f32 %v3187, %v3195
        %v3204 = vmul.f32 %v3188, %v3196
        %v3205 = vmul.f32 %v3189, %v3197
        %v3206 = vmul.f32 %v3190, %v3198
        %v3207 = vmul.f32 %v3191, %v3199
        %v3208 = vmul.f32 %v3192, %v3200
        %v3209 = vmul.f32 %v3193, %v3201
        %v3210 = vmul.f32 %v3194, %v3202
        %v3211 = vpack.c.bf16 %v3203, %v3203
        %v3212 = vpack.c.bf16 %v3204, %v3204
        %v3213 = vpack.c.bf16 %v3205, %v3205
        %v3214 = vpack.c.bf16 %v3206, %v3206
        %v3215 = vpack.c.bf16 %v3207, %v3207
        %v3216 = vpack.c.bf16 %v3208, %v3208
        %v3217 = vpack.c.bf16 %v3209, %v3209
        %v3218 = vpack.c.bf16 %v3210, %v3210
        %3219 = vst [vmem:[#allocation4 + $0x4] sm:$0xf] %v3211
        %3220 = vst [vmem:[#allocation4 + $0x20] sm:$0xf] %v3212
        %3221 = vst [vmem:[#allocation4 + $0x3c] sm:$0xf] %v3213
        %3222 = vst [vmem:[#allocation4 + $0x58] sm:$0xf] %v3214
        %3223 = vst [vmem:[#allocation4 + $0x74] sm:$0xf] %v3215
        %3224 = vst [vmem:[#allocation4 + $0x90] sm:$0xf] %v3216
        %3225 = vst [vmem:[#allocation4 + $0xac] sm:$0xf] %v3217
        %3226 = vst [vmem:[#allocation4 + $0xc8] sm:$0xf] %v3218
        %v3227 = vld [vmem:[#allocation2 + $0x1c] sm:$0xff]
        %v3228 = vld [vmem:[#allocation2 + $0x24] sm:$0xff]
        %v3229 = vld [vmem:[#allocation2 + $0x2c] sm:$0xff]
        %v3230 = vld [vmem:[#allocation2 + $0x34] sm:$0xff]
        %v3231 = vld [vmem:[#allocation2 + $0x3c] sm:$0xff]
        %v3232 = vld [vmem:[#allocation2 + $0x44] sm:$0xff]
        %v3233 = vld [vmem:[#allocation2 + $0x4c] sm:$0xff]
        %v3234 = vld [vmem:[#allocation2 + $0x54] sm:$0xff]
        %v3235 = vld [vmem:[#allocation2 + $0x1d] sm:$0xff]
        %v3236 = vld [vmem:[#allocation2 + $0x25] sm:$0xff]
        %v3237 = vld [vmem:[#allocation2 + $0x2d] sm:$0xff]
        %v3238 = vld [vmem:[#allocation2 + $0x35] sm:$0xff]
        %v3239 = vld [vmem:[#allocation2 + $0x3d] sm:$0xff]
        %v3240 = vld [vmem:[#allocation2 + $0x45] sm:$0xff]
        %v3241 = vld [vmem:[#allocation2 + $0x4d] sm:$0xff]
        %v3242 = vld [vmem:[#allocation2 + $0x55] sm:$0xff]
        %v3243 = vld [vmem:[#allocation2 + $0x23] sm:$0xff]
        %v3244 = vld [vmem:[#allocation2 + $0x2b] sm:$0xff]
        %v3245 = vld [vmem:[#allocation2 + $0x33] sm:$0xff]
        %v3246 = vld [vmem:[#allocation2 + $0x3b] sm:$0xff]
        %v3247 = vld [vmem:[#allocation2 + $0x43] sm:$0xff]
        %v3248 = vld [vmem:[#allocation2 + $0x4b] sm:$0xff]
        %v3249 = vld [vmem:[#allocation2 + $0x53] sm:$0xff]
        %v3250 = vld [vmem:[#allocation2 + $0x5b] sm:$0xff]
        %v3251 = vld [vmem:[#allocation2 + $0x5c] sm:$0xff]
        %v3252 = vld [vmem:[#allocation2 + $0x5d] sm:$0xff]
        %v3253 = vld [vmem:[#allocation2 + $0x27] sm:$0xff]
        %v3254 = vld [vmem:[#allocation2 + $0x2f] sm:$0xff]
        %v3255 = vld [vmem:[#allocation2 + $0x37] sm:$0xff]
        %v3256 = vld [vmem:[#allocation2 + $0x3f] sm:$0xff]
        %v3257 = vld [vmem:[#allocation2 + $0x47] sm:$0xff]
        %v3258 = vld [vmem:[#allocation2 + $0x4f] sm:$0xff]
        %v3259 = vld [vmem:[#allocation2 + $0x57] sm:$0xff]
        %v3260 = vld [vmem:[#allocation2 + $0x5f] sm:$0xff]
        %v3261 = vld [vmem:[#allocation2 + $0x28] sm:$0xff]
        %v3262 = vld [vmem:[#allocation2 + $0x30] sm:$0xff]
        %v3263 = vld [vmem:[#allocation2 + $0x38] sm:$0xff]
        %v3264 = vld [vmem:[#allocation2 + $0x40] sm:$0xff]
        %v3265 = vld [vmem:[#allocation2 + $0x48] sm:$0xff]
        %v3266 = vld [vmem:[#allocation2 + $0x50] sm:$0xff]
        %v3267 = vld [vmem:[#allocation2 + $0x58] sm:$0xff]
        %v3268 = vld [vmem:[#allocation2 + $0x60] sm:$0xff]
        %v3269 = vld [vmem:[#allocation2 + $0x29] sm:$0xff]
        %v3270 = vld [vmem:[#allocation2 + $0x31] sm:$0xff]
        %v3271 = vld [vmem:[#allocation2 + $0x39] sm:$0xff]
        %v3272 = vld [vmem:[#allocation2 + $0x41] sm:$0xff]
        %v3273 = vld [vmem:[#allocation2 + $0x49] sm:$0xff]
        %v3274 = vld [vmem:[#allocation2 + $0x51] sm:$0xff]
        %v3275 = vld [vmem:[#allocation2 + $0x59] sm:$0xff]
        %v3276 = vld [vmem:[#allocation2 + $0x61] sm:$0xff]
        %3285 = vrot.lane.b32.xlu0 %v3235, 16
        %v3286 = vpop.permute.xlu0 %3285
        %3287 = vrot.lane.b32.xlu0 %v3236, 16
        %v3288 = vpop.permute.xlu0 %3287
        %3289 = vrot.lane.b32.xlu0 %v3237, 16
        %v3290 = vpop.permute.xlu0 %3289
        %3291 = vrot.lane.b32.xlu0 %v3238, 16
        %v3292 = vpop.permute.xlu0 %3291
        %3293 = vrot.lane.b32.xlu0 %v3239, 16
        %v3294 = vpop.permute.xlu0 %3293
        %3295 = vrot.lane.b32.xlu0 %v3240, 16
        %v3296 = vpop.permute.xlu0 %3295
        %3297 = vrot.lane.b32.xlu0 %v3241, 16
        %v3298 = vpop.permute.xlu0 %3297
        %3299 = vrot.lane.b32.xlu0 %v3242, 16
        %v3300 = vpop.permute.xlu0 %3299
        %3317 = vrot.lane.b32.xlu0 %v3243, 32
        %v3318 = vpop.permute.xlu0 %3317
        %3319 = vrot.lane.b32.xlu0 %v3244, 32
        %v3320 = vpop.permute.xlu0 %3319
        %3321 = vrot.lane.b32.xlu0 %v3245, 32
        %v3322 = vpop.permute.xlu0 %3321
        %3323 = vrot.lane.b32.xlu0 %v3246, 32
        %v3324 = vpop.permute.xlu0 %3323
        %3325 = vrot.lane.b32.xlu0 %v3247, 32
        %v3326 = vpop.permute.xlu0 %3325
        %3327 = vrot.lane.b32.xlu0 %v3248, 32
        %v3328 = vpop.permute.xlu0 %3327
        %3329 = vrot.lane.b32.xlu0 %v3249, 32
        %v3330 = vpop.permute.xlu0 %3329
        %3331 = vrot.lane.b32.xlu0 %v3250, 32
        %v3332 = vpop.permute.xlu0 %3331
        %3349 = vrot.lane.b32.xlu0 %v3228, 48
        %v3350 = vpop.permute.xlu0 %3349
        %3351 = vrot.lane.b32.xlu0 %v3229, 48
        %v3352 = vpop.permute.xlu0 %3351
        %3353 = vrot.lane.b32.xlu0 %v3230, 48
        %v3354 = vpop.permute.xlu0 %3353
        %3355 = vrot.lane.b32.xlu0 %v3231, 48
        %v3356 = vpop.permute.xlu0 %3355
        %3357 = vrot.lane.b32.xlu0 %v3232, 48
        %v3358 = vpop.permute.xlu0 %3357
        %3359 = vrot.lane.b32.xlu0 %v3233, 48
        %v3360 = vpop.permute.xlu0 %3359
        %3361 = vrot.lane.b32.xlu0 %v3234, 48
        %v3362 = vpop.permute.xlu0 %3361
        %3363 = vrot.lane.b32.xlu0 %v3251, 48
        %v3364 = vpop.permute.xlu0 %3363
        %3374 = vrot.lane.b32.xlu0 %v3236, 64
        %v3375 = vpop.permute.xlu0 %3374
        %3376 = vrot.lane.b32.xlu0 %v3237, 64
        %v3377 = vpop.permute.xlu0 %3376
        %3378 = vrot.lane.b32.xlu0 %v3238, 64
        %v3379 = vpop.permute.xlu0 %3378
        %3380 = vrot.lane.b32.xlu0 %v3239, 64
        %v3381 = vpop.permute.xlu0 %3380
        %3382 = vrot.lane.b32.xlu0 %v3240, 64
        %v3383 = vpop.permute.xlu0 %3382
        %3384 = vrot.lane.b32.xlu0 %v3241, 64
        %v3385 = vpop.permute.xlu0 %3384
        %3386 = vrot.lane.b32.xlu0 %v3242, 64
        %v3387 = vpop.permute.xlu0 %3386
        %3388 = vrot.lane.b32.xlu0 %v3252, 64
        %v3389 = vpop.permute.xlu0 %3388
        %3406 = vrot.lane.b32.xlu0 %v3253, 80
        %v3407 = vpop.permute.xlu0 %3406
        %3408 = vrot.lane.b32.xlu0 %v3254, 80
        %v3409 = vpop.permute.xlu0 %3408
        %3410 = vrot.lane.b32.xlu0 %v3255, 80
        %v3411 = vpop.permute.xlu0 %3410
        %3412 = vrot.lane.b32.xlu0 %v3256, 80
        %v3413 = vpop.permute.xlu0 %3412
        %3414 = vrot.lane.b32.xlu0 %v3257, 80
        %v3415 = vpop.permute.xlu0 %3414
        %3416 = vrot.lane.b32.xlu0 %v3258, 80
        %v3417 = vpop.permute.xlu0 %3416
        %3418 = vrot.lane.b32.xlu0 %v3259, 80
        %v3419 = vpop.permute.xlu0 %3418
        %3420 = vrot.lane.b32.xlu0 %v3260, 80
        %v3421 = vpop.permute.xlu0 %3420
        %3438 = vrot.lane.b32.xlu0 %v3261, 96
        %v3439 = vpop.permute.xlu0 %3438
        %3440 = vrot.lane.b32.xlu0 %v3262, 96
        %v3441 = vpop.permute.xlu0 %3440
        %3442 = vrot.lane.b32.xlu0 %v3263, 96
        %v3443 = vpop.permute.xlu0 %3442
        %3444 = vrot.lane.b32.xlu0 %v3264, 96
        %v3445 = vpop.permute.xlu0 %3444
        %3446 = vrot.lane.b32.xlu0 %v3265, 96
        %v3447 = vpop.permute.xlu0 %3446
        %3448 = vrot.lane.b32.xlu0 %v3266, 96
        %v3449 = vpop.permute.xlu0 %3448
        %3450 = vrot.lane.b32.xlu0 %v3267, 96
        %v3451 = vpop.permute.xlu0 %3450
        %3452 = vrot.lane.b32.xlu0 %v3268, 96
        %v3453 = vpop.permute.xlu0 %3452
        %3470 = vrot.lane.b32.xlu0 %v3269, 112
        %v3471 = vpop.permute.xlu0 %3470
        %3472 = vrot.lane.b32.xlu0 %v3270, 112
        %v3473 = vpop.permute.xlu0 %3472
        %3474 = vrot.lane.b32.xlu0 %v3271, 112
        %v3475 = vpop.permute.xlu0 %3474
        %3476 = vrot.lane.b32.xlu0 %v3272, 112
        %v3477 = vpop.permute.xlu0 %3476
        %3478 = vrot.lane.b32.xlu0 %v3273, 112
        %v3479 = vpop.permute.xlu0 %3478
        %3480 = vrot.lane.b32.xlu0 %v3274, 112
        %v3481 = vpop.permute.xlu0 %3480
        %3482 = vrot.lane.b32.xlu0 %v3275, 112
        %v3483 = vpop.permute.xlu0 %3482
        %3484 = vrot.lane.b32.xlu0 %v3276, 112
        %v3485 = vpop.permute.xlu0 %3484
        %v3494 = vsel %vm370, %v3227, %v3286
        %v3495 = vsel %vm370, %v3228, %v3288
        %v3496 = vsel %vm370, %v3229, %v3290
        %v3497 = vsel %vm370, %v3230, %v3292
        %v3498 = vsel %vm370, %v3231, %v3294
        %v3499 = vsel %vm370, %v3232, %v3296
        %v3500 = vsel %vm370, %v3233, %v3298
        %v3501 = vsel %vm370, %v3234, %v3300
        %v3502 = vsel %vm377, %v3494, %v3318
        %v3503 = vsel %vm377, %v3495, %v3320
        %v3504 = vsel %vm377, %v3496, %v3322
        %v3505 = vsel %vm377, %v3497, %v3324
        %v3506 = vsel %vm377, %v3498, %v3326
        %v3507 = vsel %vm377, %v3499, %v3328
        %v3508 = vsel %vm377, %v3500, %v3330
        %v3509 = vsel %vm377, %v3501, %v3332
        %v3510 = vsel %vm1023, %v3502, %v3350
        %v3511 = vsel %vm1023, %v3503, %v3352
        %v3512 = vsel %vm1023, %v3504, %v3354
        %v3513 = vsel %vm1023, %v3505, %v3356
        %v3514 = vsel %vm1023, %v3506, %v3358
        %v3515 = vsel %vm1023, %v3507, %v3360
        %v3516 = vsel %vm1023, %v3508, %v3362
        %v3517 = vsel %vm1023, %v3509, %v3364
        %v3518 = vsel %vm1032, %v3510, %v3375
        %v3519 = vsel %vm1032, %v3511, %v3377
        %v3520 = vsel %vm1032, %v3512, %v3379
        %v3521 = vsel %vm1032, %v3513, %v3381
        %v3522 = vsel %vm1032, %v3514, %v3383
        %v3523 = vsel %vm1032, %v3515, %v3385
        %v3524 = vsel %vm1032, %v3516, %v3387
        %v3525 = vsel %vm1032, %v3517, %v3389
        %v3526 = vsel %vm1041, %v3518, %v3407
        %v3527 = vsel %vm1041, %v3519, %v3409
        %v3528 = vsel %vm1041, %v3520, %v3411
        %v3529 = vsel %vm1041, %v3521, %v3413
        %v3530 = vsel %vm1041, %v3522, %v3415
        %v3531 = vsel %vm1041, %v3523, %v3417
        %v3532 = vsel %vm1041, %v3524, %v3419
        %v3533 = vsel %vm1041, %v3525, %v3421
        %v3534 = vsel %vm1050, %v3526, %v3439
        %v3535 = vsel %vm1050, %v3527, %v3441
        %v3536 = vsel %vm1050, %v3528, %v3443
        %v3537 = vsel %vm1050, %v3529, %v3445
        %v3538 = vsel %vm1050, %v3530, %v3447
        %v3539 = vsel %vm1050, %v3531, %v3449
        %v3540 = vsel %vm1050, %v3532, %v3451
        %v3541 = vsel %vm1050, %v3533, %v3453
        %v3542 = vsel %vm1059, %v3534, %v3471
        %v3543 = vsel %vm1059, %v3535, %v3473
        %v3544 = vsel %vm1059, %v3536, %v3475
        %v3545 = vsel %vm1059, %v3537, %v3477
        %v3546 = vsel %vm1059, %v3538, %v3479
        %v3547 = vsel %vm1059, %v3539, %v3481
        %v3548 = vsel %vm1059, %v3540, %v3483
        %v3549 = vsel %vm1059, %v3541, %v3485
        %v3550 = vld [vmem:[%s6 + $0x10] sm:$0xff]
        %v3551 = vld [vmem:[%s6 + $0x30] sm:$0xff]
        %v3552 = vld [vmem:[%s6 + $0x50] sm:$0xff]
        %v3553 = vld [vmem:[%s6 + $0x70] sm:$0xff]
        %v3554 = vld [vmem:[%s6 + $0x90] sm:$0xff]
        %v3555 = vld [vmem:[%s6 + $0xb0] sm:$0xff]
        %v3556 = vld [vmem:[%s6 + $0xd0] sm:$0xff]
        %v3557 = vld [vmem:[%s6 + $0xf0] sm:$0xff]
        %v3558 = vmul.f32 %v3542, %v3550
        %v3559 = vmul.f32 %v3543, %v3551
        %v3560 = vmul.f32 %v3544, %v3552
        %v3561 = vmul.f32 %v3545, %v3553
        %v3562 = vmul.f32 %v3546, %v3554
        %v3563 = vmul.f32 %v3547, %v3555
        %v3564 = vmul.f32 %v3548, %v3556
        %v3565 = vmul.f32 %v3549, %v3557
        %v3566 = vpack.c.bf16 %v3558, %v3558
        %v3567 = vpack.c.bf16 %v3559, %v3559
        %v3568 = vpack.c.bf16 %v3560, %v3560
        %v3569 = vpack.c.bf16 %v3561, %v3561
        %v3570 = vpack.c.bf16 %v3562, %v3562
        %v3571 = vpack.c.bf16 %v3563, %v3563
        %v3572 = vpack.c.bf16 %v3564, %v3564
        %v3573 = vpack.c.bf16 %v3565, %v3565
        %3574 = vst [vmem:[#allocation4 + $0x8] sm:$0xf] %v3566
        %3575 = vst [vmem:[#allocation4 + $0x24] sm:$0xf] %v3567
        %3576 = vst [vmem:[#allocation4 + $0x40] sm:$0xf] %v3568
        %3577 = vst [vmem:[#allocation4 + $0x5c] sm:$0xf] %v3569
        %3578 = vst [vmem:[#allocation4 + $0x78] sm:$0xf] %v3570
        %3579 = vst [vmem:[#allocation4 + $0x94] sm:$0xf] %v3571
        %3580 = vst [vmem:[#allocation4 + $0xb0] sm:$0xf] %v3572
        %3581 = vst [vmem:[#allocation4 + $0xcc] sm:$0xf] %v3573
        %v3582 = vld [vmem:[#allocation2 + $0x2b] sm:$0xff]
        %v3583 = vld [vmem:[#allocation2 + $0x33] sm:$0xff]
        %v3584 = vld [vmem:[#allocation2 + $0x3b] sm:$0xff]
        %v3585 = vld [vmem:[#allocation2 + $0x43] sm:$0xff]
        %v3586 = vld [vmem:[#allocation2 + $0x4b] sm:$0xff]
        %v3587 = vld [vmem:[#allocation2 + $0x53] sm:$0xff]
        %v3588 = vld [vmem:[#allocation2 + $0x5b] sm:$0xff]
        %v3589 = vld [vmem:[#allocation2 + $0x63] sm:$0xff]
        %v3590 = vld [vmem:[#allocation2 + $0x2c] sm:$0xff]
        %v3591 = vld [vmem:[#allocation2 + $0x34] sm:$0xff]
        %v3592 = vld [vmem:[#allocation2 + $0x3c] sm:$0xff]
        %v3593 = vld [vmem:[#allocation2 + $0x44] sm:$0xff]
        %v3594 = vld [vmem:[#allocation2 + $0x4c] sm:$0xff]
        %v3595 = vld [vmem:[#allocation2 + $0x54] sm:$0xff]
        %v3596 = vld [vmem:[#allocation2 + $0x5c] sm:$0xff]
        %v3597 = vld [vmem:[#allocation2 + $0x64] sm:$0xff]
        %v3598 = vld [vmem:[#allocation2 + $0x2d] sm:$0xff]
        %v3599 = vld [vmem:[#allocation2 + $0x35] sm:$0xff]
        %v3600 = vld [vmem:[#allocation2 + $0x3d] sm:$0xff]
        %v3601 = vld [vmem:[#allocation2 + $0x45] sm:$0xff]
        %v3602 = vld [vmem:[#allocation2 + $0x4d] sm:$0xff]
        %v3603 = vld [vmem:[#allocation2 + $0x55] sm:$0xff]
        %v3604 = vld [vmem:[#allocation2 + $0x5d] sm:$0xff]
        %v3605 = vld [vmem:[#allocation2 + $0x65] sm:$0xff]
        %3614 = vrot.lane.b32.xlu0 %v3590, 16
        %v3615 = vpop.permute.xlu0 %3614
        %3616 = vrot.lane.b32.xlu0 %v3591, 16
        %v3617 = vpop.permute.xlu0 %3616
        %3618 = vrot.lane.b32.xlu0 %v3592, 16
        %v3619 = vpop.permute.xlu0 %3618
        %3620 = vrot.lane.b32.xlu0 %v3593, 16
        %v3621 = vpop.permute.xlu0 %3620
        %3622 = vrot.lane.b32.xlu0 %v3594, 16
        %v3623 = vpop.permute.xlu0 %3622
        %3624 = vrot.lane.b32.xlu0 %v3595, 16
        %v3625 = vpop.permute.xlu0 %3624
        %3626 = vrot.lane.b32.xlu0 %v3596, 16
        %v3627 = vpop.permute.xlu0 %3626
        %3628 = vrot.lane.b32.xlu0 %v3597, 16
        %v3629 = vpop.permute.xlu0 %3628
        %3646 = vrot.lane.b32.xlu0 %v3598, 32
        %v3647 = vpop.permute.xlu0 %3646
        %3648 = vrot.lane.b32.xlu0 %v3599, 32
        %v3649 = vpop.permute.xlu0 %3648
        %3650 = vrot.lane.b32.xlu0 %v3600, 32
        %v3651 = vpop.permute.xlu0 %3650
        %3652 = vrot.lane.b32.xlu0 %v3601, 32
        %v3653 = vpop.permute.xlu0 %3652
        %3654 = vrot.lane.b32.xlu0 %v3602, 32
        %v3655 = vpop.permute.xlu0 %3654
        %3656 = vrot.lane.b32.xlu0 %v3603, 32
        %v3657 = vpop.permute.xlu0 %3656
        %3658 = vrot.lane.b32.xlu0 %v3604, 32
        %v3659 = vpop.permute.xlu0 %3658
        %3660 = vrot.lane.b32.xlu0 %v3605, 32
        %v3661 = vpop.permute.xlu0 %3660
        %v3670 = vsel %vm370, %v3582, %v3615
        %v3671 = vsel %vm370, %v3583, %v3617
        %v3672 = vsel %vm370, %v3584, %v3619
        %v3673 = vsel %vm370, %v3585, %v3621
        %v3674 = vsel %vm370, %v3586, %v3623
        %v3675 = vsel %vm370, %v3587, %v3625
        %v3676 = vsel %vm370, %v3588, %v3627
        %v3677 = vsel %vm370, %v3589, %v3629
        %v3678 = vsel %vm377, %v3670, %v3647
        %v3679 = vsel %vm377, %v3671, %v3649
        %v3680 = vsel %vm377, %v3672, %v3651
        %v3681 = vsel %vm377, %v3673, %v3653
        %v3682 = vsel %vm377, %v3674, %v3655
        %v3683 = vsel %vm377, %v3675, %v3657
        %v3684 = vsel %vm377, %v3676, %v3659
        %v3685 = vsel %vm377, %v3677, %v3661
        %v3686 = vld [vmem:[%s6 + $0x18] sm:$0xff]
        %v3687 = vld [vmem:[%s6 + $0x38] sm:$0xff]
        %v3688 = vld [vmem:[%s6 + $0x58] sm:$0xff]
        %v3689 = vld [vmem:[%s6 + $0x78] sm:$0xff]
        %v3690 = vld [vmem:[%s6 + $0x98] sm:$0xff]
        %v3691 = vld [vmem:[%s6 + $0xb8] sm:$0xff]
        %v3692 = vld [vmem:[%s6 + $0xd8] sm:$0xff]
        %v3693 = vld [vmem:[%s6 + $0xf8] sm:$0xff]
        %v3694 = vmul.f32 %v3678, %v3686
        %v3695 = vmul.f32 %v3679, %v3687
        %v3696 = vmul.f32 %v3680, %v3688
        %v3697 = vmul.f32 %v3681, %v3689
        %v3698 = vmul.f32 %v3682, %v3690
        %v3699 = vmul.f32 %v3683, %v3691
        %v3700 = vmul.f32 %v3684, %v3692
        %v3701 = vmul.f32 %v3685, %v3693
        %v3702 = vpack.c.bf16 %v3694, %v3694
        %v3703 = vpack.c.bf16 %v3695, %v3695
        %v3704 = vpack.c.bf16 %v3696, %v3696
        %v3705 = vpack.c.bf16 %v3697, %v3697
        %v3706 = vpack.c.bf16 %v3698, %v3698
        %v3707 = vpack.c.bf16 %v3699, %v3699
        %v3708 = vpack.c.bf16 %v3700, %v3700
        %v3709 = vpack.c.bf16 %v3701, %v3701
        %3710 = vst.msk [vmem:[#allocation4 + $0xc] sm:$0xf] %vm1938, %v3702
        %3711 = vst.msk [vmem:[#allocation4 + $0x28] sm:$0xf] %vm1938, %v3703
        %3712 = vst.msk [vmem:[#allocation4 + $0x44] sm:$0xf] %vm1938, %v3704
        %3713 = vst.msk [vmem:[#allocation4 + $0x60] sm:$0xf] %vm1938, %v3705
        %3714 = vst.msk [vmem:[#allocation4 + $0x7c] sm:$0xf] %vm1938, %v3706
        %3715 = vst.msk [vmem:[#allocation4 + $0x98] sm:$0xf] %vm1938, %v3707
        %3716 = vst.msk [vmem:[#allocation4 + $0xb4] sm:$0xf] %vm1938, %v3708
        %3717 = vst.msk [vmem:[#allocation4 + $0xd0] sm:$0xf] %vm1938, %v3709
        %v3718 = vld [vmem:[#allocation4] sm:$0xff]
        %v3719 = vld [vmem:[#allocation4 + $0x8] sm:$0xff]
        %v3720 = vld [vmem:[#allocation4 + $0x1c] sm:$0xff]
        %v3721 = vld [vmem:[#allocation4 + $0x24] sm:$0xff]
        %v3722 = vld [vmem:[#allocation4 + $0x38] sm:$0xff]
        %v3723 = vld [vmem:[#allocation4 + $0x40] sm:$0xff]
        %v3724 = vld [vmem:[#allocation4 + $0x54] sm:$0xff]
        %v3725 = vld [vmem:[#allocation4 + $0x5c] sm:$0xff]
        %v3726 = vld [vmem:[#allocation4 + $0x70] sm:$0xff]
        %v3727 = vld [vmem:[#allocation4 + $0x78] sm:$0xff]
        %v3728 = vld [vmem:[#allocation4 + $0x8c] sm:$0xff]
        %v3729 = vld [vmem:[#allocation4 + $0x94] sm:$0xff]
        %v3730 = vld [vmem:[#allocation4 + $0xa8] sm:$0xff]
        %v3731 = vld [vmem:[#allocation4 + $0xb0] sm:$0xff]
        %v3732 = vld [vmem:[#allocation4 + $0xc4] sm:$0xff]
        %v3733 = vld [vmem:[#allocation4 + $0xcc] sm:$0xff]
        %v3734 = vld [vmem:[%s3] sm:$0xf]
        %v3735 = vld [vmem:[%s3 + $0x4] sm:$0xf]
        %v3736 = vld [vmem:[%s3 + $0x8] sm:$0xf]
        %v3737 = vld [vmem:[%s3 + $0xc] sm:$0xf]
        %v3738 = vld [vmem:[%s3 + $0x10] sm:$0xf]
        %v3739 = vld [vmem:[%s3 + $0x14] sm:$0xf]
        %v3740 = vld [vmem:[%s3 + $0x18] sm:$0xf]
        %v3741 = vld [vmem:[%s3 + $0x1c] sm:$0xf]
        %v3742 = vld [vmem:[%s3 + $0x20] sm:$0xf]
        %v3743 = vld [vmem:[%s3 + $0x24] sm:$0xf]
        %v3744 = vld [vmem:[%s3 + $0x28] sm:$0xf]
        %v3745 = vld [vmem:[%s3 + $0x2c] sm:$0xf]
        %v3746 = vld [vmem:[%s3 + $0x30] sm:$0xf]
        %v3747 = vld [vmem:[%s3 + $0x34] sm:$0xf]
        %v3748 = vld [vmem:[%s3 + $0x38] sm:$0xf]
        %v3749 = vld [vmem:[%s3 + $0x3c] sm:$0xf]
        %v3750 = vld [vmem:[%s3 + $0x40] sm:$0xf]
        %v3751 = vld [vmem:[%s3 + $0x44] sm:$0xf]
        %v3752 = vld [vmem:[%s3 + $0x48] sm:$0xf]
        %v3753 = vld [vmem:[%s3 + $0x4c] sm:$0xf]
        %v3754 = vld [vmem:[%s3 + $0x50] sm:$0xf]
        %v3755 = vld [vmem:[%s3 + $0x54] sm:$0xf]
        %v3756 = vld [vmem:[%s3 + $0x58] sm:$0xf]
        %v3757 = vld [vmem:[%s3 + $0x5c] sm:$0xf]
        %v3758 = vld [vmem:[%s3 + $0x60] sm:$0xf]
        %v3759 = vld [vmem:[%s3 + $0x64] sm:$0xf]
        %v3760 = vld [vmem:[%s3 + $0x68] sm:$0xf]
        %v3761 = vld [vmem:[%s3 + $0x6c] sm:$0xf]
        %v3762 = vld [vmem:[%s3 + $0x70] sm:$0xf]
        %v3763 = vld [vmem:[%s3 + $0x74] sm:$0xf]
        %v3764 = vld [vmem:[%s3 + $0x78] sm:$0xf]
        %v3765 = vld [vmem:[%s3 + $0x7c] sm:$0xf]
        %v3766 = vld [vmem:[%s3 + $0x80] sm:$0xf]
        %v3767 = vld [vmem:[%s3 + $0x84] sm:$0xf]
        %v3768 = vld [vmem:[%s3 + $0x88] sm:$0xf]
        %v3769 = vld [vmem:[%s3 + $0x8c] sm:$0xf]
        %v3770 = vld [vmem:[%s3 + $0x90] sm:$0xf]
        %v3771 = vld [vmem:[%s3 + $0x94] sm:$0xf]
        %v3772 = vld [vmem:[%s3 + $0x98] sm:$0xf]
        %v3773 = vld [vmem:[%s3 + $0x9c] sm:$0xf]
        %v3774 = vld [vmem:[%s3 + $0xa0] sm:$0xf]
        %v3775 = vld [vmem:[%s3 + $0xa4] sm:$0xf]
        %v3776 = vld [vmem:[%s3 + $0xa8] sm:$0xf]
        %v3777 = vld [vmem:[%s3 + $0xac] sm:$0xf]
        %v3778 = vld [vmem:[%s3 + $0xb0] sm:$0xf]
        %v3779 = vld [vmem:[%s3 + $0xb4] sm:$0xf]
        %v3780 = vld [vmem:[%s3 + $0xb8] sm:$0xf]
        %v3781 = vld [vmem:[%s3 + $0xbc] sm:$0xf]
        %v3782 = vld [vmem:[%s3 + $0xc0] sm:$0xf]
        %v3783 = vld [vmem:[%s3 + $0xc4] sm:$0xf]
        %v3784 = vld [vmem:[%s3 + $0xc8] sm:$0xf]
        %v3785 = vld [vmem:[%s3 + $0xcc] sm:$0xf]
        %v3786 = vld [vmem:[%s3 + $0xd0] sm:$0xf]
        %v3787 = vld [vmem:[%s3 + $0xd4] sm:$0xf]
        %v3804 = vunpack.c.l.b16 %v3718
        %v3805 = vunpack.c.h.b16 %v3718
        %v3806 = vunpack.c.l.b16 %v3719
        %v3807 = vunpack.c.h.b16 %v3719
        %v3808 = vunpack.c.l.b16 %v3720
        %v3809 = vunpack.c.h.b16 %v3720
        %v3810 = vunpack.c.l.b16 %v3721
        %v3811 = vunpack.c.h.b16 %v3721
        %v3812 = vunpack.c.l.b16 %v3722
        %v3813 = vunpack.c.h.b16 %v3722
        %v3814 = vunpack.c.l.b16 %v3723
        %v3815 = vunpack.c.h.b16 %v3723
        %v3816 = vunpack.c.l.b16 %v3724
        %v3817 = vunpack.c.h.b16 %v3724
        %v3818 = vunpack.c.l.b16 %v3725
        %v3819 = vunpack.c.h.b16 %v3725
        %v3820 = vunpack.c.l.b16 %v3726
        %v3821 = vunpack.c.h.b16 %v3726
        %v3822 = vunpack.c.l.b16 %v3727
        %v3823 = vunpack.c.h.b16 %v3727
        %v3824 = vunpack.c.l.b16 %v3728
        %v3825 = vunpack.c.h.b16 %v3728
        %v3826 = vunpack.c.l.b16 %v3729
        %v3827 = vunpack.c.h.b16 %v3729
        %v3828 = vunpack.c.l.b16 %v3730
        %v3829 = vunpack.c.h.b16 %v3730
        %v3830 = vunpack.c.l.b16 %v3731
        %v3831 = vunpack.c.h.b16 %v3731
        %v3832 = vunpack.c.l.b16 %v3732
        %v3833 = vunpack.c.h.b16 %v3732
        %v3834 = vunpack.c.l.b16 %v3733
        %v3835 = vunpack.c.h.b16 %v3733
        %v3836 = vpack.c.b16 %v3808, %v3804
        %v3837 = vpack.c.b16 %v3809, %v3805
        %v3838 = vpack.c.b16 %v3810, %v3806
        %v3839 = vpack.c.b16 %v3811, %v3807
        %v3840 = vpack.c.b16 %v3816, %v3812
        %v3841 = vpack.c.b16 %v3817, %v3813
        %v3842 = vpack.c.b16 %v3818, %v3814
        %v3843 = vpack.c.b16 %v3819, %v3815
        %v3844 = vpack.c.b16 %v3824, %v3820
        %v3845 = vpack.c.b16 %v3825, %v3821
        %v3846 = vpack.c.b16 %v3826, %v3822
        %v3847 = vpack.c.b16 %v3827, %v3823
        %v3848 = vpack.c.b16 %v3832, %v3828
        %v3849 = vpack.c.b16 %v3833, %v3829
        %v3850 = vpack.c.b16 %v3834, %v3830
        %v3851 = vpack.c.b16 %v3835, %v3831
        %v3918 = vunpack.c.l.b16 %v3734
        %v3919 = vunpack.c.l.b16 %v3735
        %v3920 = vunpack.c.l.b16 %v3736
        %v3921 = vunpack.c.l.b16 %v3737
        %v3922 = vunpack.c.l.b16 %v3738
        %v3923 = vunpack.c.l.b16 %v3739
        %v3924 = vunpack.c.l.b16 %v3740
        %v3925 = vunpack.c.l.b16 %v3741
        %v3926 = vunpack.c.l.b16 %v3742
        %v3927 = vunpack.c.l.b16 %v3743
        %v3928 = vunpack.c.l.b16 %v3744
        %v3929 = vunpack.c.l.b16 %v3745
        %v3930 = vunpack.c.l.b16 %v3746
        %v3931 = vunpack.c.l.b16 %v3747
        %v3932 = vunpack.c.l.b16 %v3748
        %v3933 = vunpack.c.l.b16 %v3749
        %v3934 = vunpack.c.l.b16 %v3750
        %v3935 = vunpack.c.l.b16 %v3751
        %v3936 = vunpack.c.l.b16 %v3752
        %v3937 = vunpack.c.l.b16 %v3753
        %v3938 = vunpack.c.l.b16 %v3754
        %v3939 = vunpack.c.l.b16 %v3755
        %v3940 = vunpack.c.l.b16 %v3756
        %v3941 = vunpack.c.l.b16 %v3757
        %v3942 = vunpack.c.l.b16 %v3758
        %v3943 = vunpack.c.l.b16 %v3759
        %v3944 = vunpack.c.l.b16 %v3760
        %v3945 = vunpack.c.l.b16 %v3761
        %v3946 = vunpack.c.l.b16 %v3762
        %v3947 = vunpack.c.l.b16 %v3763
        %v3948 = vunpack.c.l.b16 %v3764
        %v3949 = vunpack.c.l.b16 %v3765
        %v3950 = vunpack.c.l.b16 %v3766
        %v3951 = vunpack.c.l.b16 %v3767
        %v3952 = vunpack.c.l.b16 %v3768
        %v3953 = vunpack.c.l.b16 %v3769
        %v3954 = vunpack.c.l.b16 %v3770
        %v3955 = vunpack.c.l.b16 %v3771
        %v3956 = vunpack.c.l.b16 %v3772
        %v3957 = vunpack.c.l.b16 %v3773
        %v3958 = vunpack.c.l.b16 %v3774
        %v3959 = vunpack.c.l.b16 %v3775
        %v3960 = vunpack.c.l.b16 %v3776
        %v3961 = vunpack.c.l.b16 %v3777
        %v3962 = vunpack.c.l.b16 %v3778
        %v3963 = vunpack.c.l.b16 %v3779
        %v3964 = vunpack.c.l.b16 %v3780
        %v3965 = vunpack.c.l.b16 %v3781
        %v3966 = vunpack.c.l.b16 %v3782
        %v3967 = vunpack.c.l.b16 %v3783
        %v3968 = vunpack.c.l.b16 %v3784
        %v3969 = vunpack.c.l.b16 %v3785
        %v3970 = vunpack.c.l.b16 %v3786
        %v3971 = vunpack.c.l.b16 %v3787
        %v3972 = vpack.c.b16 %v3919, %v3918
        %v3973 = vpack.c.b16 %v3921, %v3920
        %v3974 = vpack.c.b16 %v3923, %v3922
        %v3975 = vpack.c.b16 %v3925, %v3924
        %v3976 = vpack.c.b16 %v3927, %v3926
        %v3977 = vpack.c.b16 %v3929, %v3928
        %v3978 = vpack.c.b16 %v3931, %v3930
        %v3979 = vpack.c.b16 %v3933, %v3932
        %v3980 = vpack.c.b16 %v3935, %v3934
        %v3981 = vpack.c.b16 %v3937, %v3936
        %v3982 = vpack.c.b16 %v3939, %v3938
        %v3983 = vpack.c.b16 %v3941, %v3940
        %v3984 = vpack.c.b16 %v3943, %v3942
        %v3985 = vpack.c.b16 %v3945, %v3944
        %v3986 = vpack.c.b16 %v3947, %v3946
        %v3987 = vpack.c.b16 %v3949, %v3948
        %v3988 = vpack.c.b16 %v3951, %v3950
        %v3989 = vpack.c.b16 %v3953, %v3952
        %v3990 = vpack.c.b16 %v3955, %v3954
        %v3991 = vpack.c.b16 %v3957, %v3956
        %v3992 = vpack.c.b16 %v3959, %v3958
        %v3993 = vpack.c.b16 %v3961, %v3960
        %v3994 = vpack.c.b16 %v3963, %v3962
        %v3995 = vpack.c.b16 %v3965, %v3964
        %v3996 = vpack.c.b16 %v3967, %v3966
        %v3997 = vpack.c.b16 %v3969, %v3968
        %v3998 = vpack.c.b16 %v3971, %v3970
        %v4027 = vsel %vm1023, %v3839, 0
        %v4030 = vsel %vm1023, %v3843, 0
        %v4033 = vsel %vm1023, %v3847, 0
        %v4036 = vsel %vm1023, %v3851, 0
        %4038 = vmatpush.bf16.msra.mxu0 %v3979
        %4039 = vmatpush.bf16.msra.mxu0 %v3978
        %4040 = vmatpush.bf16.msra.mxu0 %v3977
        %4041 = vmatpush.bf16.msra.mxu0 %v3976
        %4042 = vmatpush.bf16.msra.mxu0 %v3975
        %4043 = vmatpush.bf16.msra.mxu0 %v3974
        %4044 = vmatpush.bf16.msra.mxu0 %v3973
        %4045 = vmatpush.bf16.msra.mxu0 %v3972
        %4046 = vmatmul.bf16.gmra.mxu0 %v3836
        %v4047 = vpop.f32.mrf.mxu0
        %v4048 = vadd.f32 0.0, %v4047
        %v4049 = vpop.f32.mrf.mxu0
        %v4050 = vadd.f32 0.0, %v4049
        %4051 = vmatmul.bf16.gmra.mxu0 %v3840
        %v4052 = vpop.f32.mrf.mxu0
        %v4053 = vadd.f32 0.0, %v4052
        %v4054 = vpop.f32.mrf.mxu0
        %v4055 = vadd.f32 0.0, %v4054
        %4056 = vmatmul.bf16.gmra.mxu0 %v3844
        %v4057 = vpop.f32.mrf.mxu0
        %v4058 = vadd.f32 0.0, %v4057
        %v4059 = vpop.f32.mrf.mxu0
        %v4060 = vadd.f32 0.0, %v4059
        %4061 = vmatmul.bf16.gmra.mxu0 %v3848
        %v4062 = vpop.f32.mrf.mxu0
        %v4063 = vadd.f32 0.0, %v4062
        %v4064 = vpop.f32.mrf.mxu0
        %v4065 = vadd.f32 0.0, %v4064
        %4066 = vdwg.mxu0
        %4067 = vmatpush.bf16.msra.mxu0 %v3987
        %4068 = vmatpush.bf16.msra.mxu0 %v3986
        %4069 = vmatpush.bf16.msra.mxu0 %v3985
        %4070 = vmatpush.bf16.msra.mxu0 %v3984
        %4071 = vmatpush.bf16.msra.mxu0 %v3983
        %4072 = vmatpush.bf16.msra.mxu0 %v3982
        %4073 = vmatpush.bf16.msra.mxu0 %v3981
        %4074 = vmatpush.bf16.msra.mxu0 %v3980
        %4075 = vmatmul.bf16.gmra.mxu0 %v3837
        %v4076 = vpop.f32.mrf.mxu0
        %v4077 = vadd.f32 %v4048, %v4076
        %v4078 = vpop.f32.mrf.mxu0
        %v4079 = vadd.f32 %v4050, %v4078
        %4080 = vmatmul.bf16.gmra.mxu0 %v3841
        %v4081 = vpop.f32.mrf.mxu0
        %v4082 = vadd.f32 %v4053, %v4081
        %v4083 = vpop.f32.mrf.mxu0
        %v4084 = vadd.f32 %v4055, %v4083
        %4085 = vmatmul.bf16.gmra.mxu0 %v3845
        %v4086 = vpop.f32.mrf.mxu0
        %v4087 = vadd.f32 %v4058, %v4086
        %v4088 = vpop.f32.mrf.mxu0
        %v4089 = vadd.f32 %v4060, %v4088
        %4090 = vmatmul.bf16.gmra.mxu0 %v3849
        %v4091 = vpop.f32.mrf.mxu0
        %v4092 = vadd.f32 %v4063, %v4091
        %v4093 = vpop.f32.mrf.mxu0
        %v4094 = vadd.f32 %v4065, %v4093
        %4095 = vdwg.mxu0
        %4096 = vmatpush.bf16.msra.mxu0 %v3995
        %4097 = vmatpush.bf16.msra.mxu0 %v3994
        %4098 = vmatpush.bf16.msra.mxu0 %v3993
        %4099 = vmatpush.bf16.msra.mxu0 %v3992
        %4100 = vmatpush.bf16.msra.mxu0 %v3991
        %4101 = vmatpush.bf16.msra.mxu0 %v3990
        %4102 = vmatpush.bf16.msra.mxu0 %v3989
        %4103 = vmatpush.bf16.msra.mxu0 %v3988
        %4104 = vmatmul.bf16.gmra.mxu0 %v3838
        %v4105 = vpop.f32.mrf.mxu0
        %v4106 = vadd.f32 %v4077, %v4105
        %v4107 = vpop.f32.mrf.mxu0
        %v4108 = vadd.f32 %v4079, %v4107
        %4109 = vmatmul.bf16.gmra.mxu0 %v3842
        %v4110 = vpop.f32.mrf.mxu0
        %v4111 = vadd.f32 %v4082, %v4110
        %v4112 = vpop.f32.mrf.mxu0
        %v4113 = vadd.f32 %v4084, %v4112
        %4114 = vmatmul.bf16.gmra.mxu0 %v3846
        %v4115 = vpop.f32.mrf.mxu0
        %v4116 = vadd.f32 %v4087, %v4115
        %v4117 = vpop.f32.mrf.mxu0
        %v4118 = vadd.f32 %v4089, %v4117
        %4119 = vmatmul.bf16.gmra.mxu0 %v3850
        %v4120 = vpop.f32.mrf.mxu0
        %v4121 = vadd.f32 %v4092, %v4120
        %v4122 = vpop.f32.mrf.mxu0
        %v4123 = vadd.f32 %v4094, %v4122
        %4124 = vdwg.mxu0
        %4125 = vmatpush.bf16.msra.mxu0 0
        %4126 = vmatpush.bf16.msra.mxu0 0
        %4127 = vmatpush.bf16.msra.mxu0 0
        %4128 = vmatpush.bf16.msra.mxu0 0
        %4129 = vmatpush.bf16.msra.mxu0 0
        %4130 = vmatpush.bf16.msra.mxu0 %v3998
        %4131 = vmatpush.bf16.msra.mxu0 %v3997
        %4132 = vmatpush.bf16.msra.mxu0 %v3996
        %4133 = vmatmul.bf16.gmra.mxu0 %v4027
        %v4134 = vpop.f32.mrf.mxu0
        %v4135 = vadd.f32 %v4106, %v4134
        %v4136 = vpop.f32.mrf.mxu0
        %v4137 = vadd.f32 %v4108, %v4136
        %4138 = vmatmul.bf16.gmra.mxu0 %v4030
        %v4139 = vpop.f32.mrf.mxu0
        %v4140 = vadd.f32 %v4111, %v4139
        %v4141 = vpop.f32.mrf.mxu0
        %v4142 = vadd.f32 %v4113, %v4141
        %4143 = vmatmul.bf16.gmra.mxu0 %v4033
        %v4144 = vpop.f32.mrf.mxu0
        %v4145 = vadd.f32 %v4116, %v4144
        %v4146 = vpop.f32.mrf.mxu0
        %v4147 = vadd.f32 %v4118, %v4146
        %4148 = vmatmul.bf16.gmra.mxu0 %v4036
        %v4149 = vpop.f32.mrf.mxu0
        %v4150 = vadd.f32 %v4121, %v4149
        %v4151 = vpop.f32.mrf.mxu0
        %v4152 = vadd.f32 %v4123, %v4151
        %4153 = vdwg.mxu0
        %v4154 = vld [vmem:[%s8] sm:$0xff]
        %v4156 = vsel %vm1032, %v4154, 0
        %4158 = vmatpush.msra.mxu0 0.0
        %4159 = vmatpush.msra.mxu0 0.0
        %4160 = vmatpush.msra.mxu0 0.0
        %4161 = vmatpush.msra.mxu0 0.0
        %4162 = vmatpush.msra.mxu0 0.0
        %4163 = vmatpush.msra.mxu0 0.0
        %4164 = vmatpush.msra.mxu0 0.0
        %4165 = vmatpush.msra.mxu0 0.0
        %4166 = vmatpush.msra.mxu0 %v4152
        %4167 = vmatpush.msra.mxu0 %v4150
        %4168 = vmatpush.msra.mxu0 %v4147
        %4169 = vmatpush.msra.mxu0 %v4145
        %4170 = vmatpush.msra.mxu0 %v4142
        %4171 = vmatpush.msra.mxu0 %v4140
        %4172 = vmatpush.msra.mxu0 %v4137
        %4173 = vmatpush.msra.mxu0 %v4135
        %4174 = vmatmul.f32.gmra.mxu0 %v4156
        %v4175 = vpop.f32.mrf.mxu0
        %v4176 = vadd.f32 0.0, %v4175
        %4177 = vdwg.mxu0
        %v4178 = vld [vmem:[%s5 + $0x4] sm:$0x1]
        %v4179 = vld [vmem:[%s5 + $0x5] sm:$0x1]
        %v4180 = vsel %vm377, %v4176, 0.0
        %v4181 = vrot.slane %v4180, 4
        %v4182 = vadd.f32 %v4180, %v4181
        %v4183 = vrot.slane %v4182, 2
        %v4184 = vadd.f32 %v4182, %v4183
        %v4185 = vrot.slane %v4184, 1
        %v4186 = vadd.f32 %v4184, %v4185
        %v4187 = vrcp.pop 8.0
        %v4188 = vmul.f32 8.0, %v4187
        %v4189 = vsub.f32 1.0, %v4188
        %v4190 = vmul.f32 %v4187, %v4189
        %v4191 = vadd.f32 %v4187, %v4190
        %vm4192 = vweird.f32 %v4187
        %v4193 = vsel %vm4192, %v4187, %v4191
        %v4194 = vmul.f32 %v4186, %v4193
        %v4195 = vsub.f32 %v4176, %v4194
        %v4196 = vmul.f32 %v4195, %v4195
        %v4197 = vsel %vm377, %v4196, 0.0
        %v4198 = vrot.slane %v4197, 4
        %v4199 = vadd.f32 %v4197, %v4198
        %v4200 = vrot.slane %v4199, 2
        %v4201 = vadd.f32 %v4199, %v4200
        %v4202 = vrot.slane %v4201, 1
        %v4203 = vadd.f32 %v4201, %v4202
        %v4204 = vmul.f32 %v4203, %v4193
        %v4205 = vadd.f32 %v4204, 1e-05
        %v4206 = vrsqrt.pop %v4205
        %v4207 = vmul.f32 %v4206, %v4205
        %v4208 = vmul.f32 %v4207, %v4206
        %v4209 = vmul.f32 0.5, %v4208
        %v4210 = vsub.f32 1.5, %v4209
        %v4211 = vmul.f32 %v4206, %v4210
        %vm4212 = vweird.f32 %v4205
        %vm4213 = vweird.f32 %v4206
        %vm4214 = vmor %vm4212, %vm4213
        %v4215 = vsel %vm4214, %v4206, %v4211
        %v4216 = vmul.f32 %v4178, %v4215
        %v4217 = vmul.f32 %v4194, %v4216
        %v4218 = vsub.f32 %v4179, %v4217
        %v4219 = vperm.slane %v4216, 0
        %v4220 = vmul.f32 %v4176, %v4219
        %v4221 = vperm.slane %v4218, 0
        %v4222 = vadd.f32 %v4220, %v4221
        %vm4223 = vcmp.ge.f32.partialorder %v4222, 0.0
        %v4224 = vmul.f32 %v4222, 0.1
        %v4225 = vsel %vm4223, %v4222, %v4224
        %4226 = vst.msk [vmem:[#allocation3 + $0x8] sm:$0xff] %vm377, %v4225
        %v4227 = vld [vmem:[#allocation3 + $0x1] sm:$0xff]
        %v4228 = vld [vmem:[#allocation3 + $0x2] sm:$0xff]
        %v4229 = vld [vmem:[#allocation3 + $0x3] sm:$0xff]
        %4231 = vrot.lane.b32.xlu0 %v4228, 32
        %v4232 = vpop.permute.xlu0 %4231
        %4235 = vrot.lane.b32.xlu0 %v4229, 64
        %v4236 = vpop.permute.xlu0 %4235
        %4238 = vrot.lane.b32.xlu0 %v4229, 96
        %v4239 = vpop.permute.xlu0 %4238
        %v4241 = vsel %vm377, %v4227, %v4232
        %v4242 = vsel %vm1032, %v4241, %v4236
        %v4243 = vsel %vm1050, %v4242, %v4239
        %v4244 = vld [vmem:[%s7] sm:$0xff]
        %v4245 = vmul.f32 %v4243, %v4244
        %v4246 = vpack.c.bf16 %v4245, %v4245
        %4247 = vst [vmem:[#allocation4] sm:$0xf] %v4246
        %v4248 = vld [vmem:[#allocation3 + $0x4] sm:$0xff]
        %v4249 = vld [vmem:[#allocation3 + $0x5] sm:$0xff]
        %v4250 = vld [vmem:[#allocation3 + $0x6] sm:$0xff]
        %4252 = vrot.lane.b32.xlu0 %v4249, 32
        %v4253 = vpop.permute.xlu0 %4252
        %4255 = vrot.lane.b32.xlu0 %v4249, 64
        %v4256 = vpop.permute.xlu0 %4255
        %4259 = vrot.lane.b32.xlu0 %v4250, 96
        %v4260 = vpop.permute.xlu0 %4259
        %v4262 = vsel %vm377, %v4248, %v4253
        %v4263 = vsel %vm1032, %v4262, %v4256
        %v4264 = vsel %vm1050, %v4263, %v4260
        %v4265 = vld [vmem:[%s7 + $0x8] sm:$0xff]
        %v4266 = vmul.f32 %v4264, %v4265
        %v4267 = vpack.c.bf16 %v4266, %v4266
        %4268 = vst [vmem:[#allocation4 + $0x4] sm:$0xf] %v4267
        %v4269 = vld [vmem:[#allocation3 + $0x7] sm:$0xff]
        %v4270 = vld [vmem:[#allocation3 + $0x5] sm:$0xff]
        %v4271 = vld [vmem:[#allocation3 + $0x6] sm:$0xff]
        %4273 = vrot.lane.b32.xlu0 %v4270, 32
        %v4274 = vpop.permute.xlu0 %4273
        %4277 = vrot.lane.b32.xlu0 %v4271, 64
        %v4278 = vpop.permute.xlu0 %4277
        %4281 = vrot.lane.b32.xlu0 %v4269, 96
        %v4282 = vpop.permute.xlu0 %4281
        %v4284 = vsel %vm377, %v4269, %v4274
        %v4285 = vsel %vm1032, %v4284, %v4278
        %v4286 = vsel %vm1050, %v4285, %v4282
        %v4287 = vld [vmem:[%s7 + $0x10] sm:$0xff]
        %v4288 = vmul.f32 %v4286, %v4287
        %v4289 = vpack.c.bf16 %v4288, %v4288
        %4290 = vst [vmem:[#allocation4 + $0x8] sm:$0xf] %v4289
        %v4291 = vld [vmem:[#allocation3 + $0x7] sm:$0xff]
        %v4292 = vld [vmem:[#allocation3 + $0x8] sm:$0xff]
        %v4293 = vld [vmem:[#allocation3 + $0x9] sm:$0xff]
        %4295 = vrot.lane.b32.xlu0 %v4292, 32
        %v4296 = vpop.permute.xlu0 %4295
        %4299 = vrot.lane.b32.xlu0 %v4293, 64
        %v4300 = vpop.permute.xlu0 %4299
        %4302 = vrot.lane.b32.xlu0 %v4293, 96
        %v4303 = vpop.permute.xlu0 %4302
        %v4305 = vsel %vm377, %v4291, %v4296
        %v4306 = vsel %vm1032, %v4305, %v4300
        %v4307 = vsel %vm1050, %v4306, %v4303
        %v4308 = vld [vmem:[%s7 + $0x18] sm:$0xff]
        %v4309 = vmul.f32 %v4307, %v4308
        %v4310 = vpack.c.bf16 %v4309, %v4309
        %4311 = vst [vmem:[#allocation4 + $0xc] sm:$0xf] %v4310
        %v4312 = vld [vmem:[#allocation3 + $0xa] sm:$0xff]
        %v4313 = vld [vmem:[#allocation3 + $0xb] sm:$0xff]
        %v4314 = vld [vmem:[#allocation3 + $0x9] sm:$0xff]
        %4316 = vrot.lane.b32.xlu0 %v4313, 32
        %v4317 = vpop.permute.xlu0 %4316
        %4320 = vrot.lane.b32.xlu0 %v4314, 64
        %v4321 = vpop.permute.xlu0 %4320
        %4324 = vrot.lane.b32.xlu0 %v4312, 96
        %v4325 = vpop.permute.xlu0 %4324
        %v4327 = vsel %vm377, %v4312, %v4317
        %v4328 = vsel %vm1032, %v4327, %v4321
        %v4329 = vsel %vm1050, %v4328, %v4325
        %v4330 = vld [vmem:[%s7 + $0x20] sm:$0xff]
        %v4331 = vmul.f32 %v4329, %v4330
        %v4332 = vpack.c.bf16 %v4331, %v4331
        %4333 = vst [vmem:[#allocation4 + $0x10] sm:$0xf] %v4332
        %v4334 = vld [vmem:[#allocation3 + $0xb] sm:$0xff]
        %v4335 = vld [vmem:[#allocation3 + $0xc] sm:$0xff]
        %v4336 = vld [vmem:[#allocation3 + $0xd] sm:$0xff]
        %4338 = vrot.lane.b32.xlu0 %v4334, 32
        %v4339 = vpop.permute.xlu0 %4338
        %4342 = vrot.lane.b32.xlu0 %v4335, 64
        %v4343 = vpop.permute.xlu0 %4342
        %4346 = vrot.lane.b32.xlu0 %v4336, 96
        %v4347 = vpop.permute.xlu0 %4346
        %v4349 = vsel %vm377, %v4334, %v4339
        %v4350 = vsel %vm1032, %v4349, %v4343
        %v4351 = vsel %vm1050, %v4350, %v4347
        %v4352 = vld [vmem:[%s7 + $0x28] sm:$0xff]
        %v4353 = vmul.f32 %v4351, %v4352
        %v4354 = vpack.c.bf16 %v4353, %v4353
        %4355 = vst [vmem:[#allocation4 + $0x14] sm:$0xf] %v4354
        %v4356 = vld [vmem:[#allocation3 + $0xd] sm:$0xff]
        %v4357 = vld [vmem:[#allocation3 + $0xe] sm:$0xff]
        %v4358 = vld [vmem:[#allocation3 + $0xf] sm:$0xff]
        %4360 = vrot.lane.b32.xlu0 %v4357, 32
        %v4361 = vpop.permute.xlu0 %4360
        %4364 = vrot.lane.b32.xlu0 %v4358, 64
        %v4365 = vpop.permute.xlu0 %4364
        %v4367 = vsel %vm377, %v4356, %v4361
        %v4368 = vsel %vm1032, %v4367, %v4365
        %v4369 = vld [vmem:[%s7 + $0x30] sm:$0xff]
        %v4370 = vmul.f32 %v4368, %v4369
        %v4371 = vpack.c.bf16 %v4370, %v4370
        %vm4372 = vcmask 781312
        %4373 = vst.msk [vmem:[#allocation4 + $0x18] sm:$0xf] %vm4372, %v4371
        %v4374 = vld [vmem:[#allocation4] sm:$0xff]
        %v4375 = vld [vmem:[#allocation4 + $0x8] sm:$0xff]
        %v4376 = vld [vmem:[#allocation4 + $0x10] sm:$0xff]
        %v4377 = vld [vmem:[#allocation4 + $0x18] sm:$0xf]
        %v4378 = vld [vmem:[%s4] sm:$0xf]
        %v4379 = vld [vmem:[%s4 + $0x4] sm:$0xf]
        %v4380 = vld [vmem:[%s4 + $0x8] sm:$0xf]
        %v4381 = vld [vmem:[%s4 + $0xc] sm:$0xf]
        %v4382 = vld [vmem:[%s4 + $0x10] sm:$0xf]
        %v4383 = vld [vmem:[%s4 + $0x14] sm:$0xf]
        %v4384 = vld [vmem:[%s4 + $0x18] sm:$0xf]
        %v4385 = vld [vmem:[%s4 + $0x1c] sm:$0xf]
        %v4386 = vld [vmem:[%s4 + $0x20] sm:$0xf]
        %v4387 = vld [vmem:[%s4 + $0x24] sm:$0xf]
        %v4388 = vld [vmem:[%s4 + $0x28] sm:$0xf]
        %v4389 = vld [vmem:[%s4 + $0x2c] sm:$0xf]
        %v4390 = vld [vmem:[%s4 + $0x30] sm:$0xf]
        %v4391 = vld [vmem:[%s4 + $0x34] sm:$0xf]
        %v4392 = vld [vmem:[%s4 + $0x38] sm:$0xf]
        %v4393 = vld [vmem:[%s4 + $0x3c] sm:$0xf]
        %v4394 = vld [vmem:[%s4 + $0x40] sm:$0xf]
        %v4395 = vld [vmem:[%s4 + $0x44] sm:$0xf]
        %v4396 = vld [vmem:[%s4 + $0x48] sm:$0xf]
        %v4397 = vld [vmem:[%s4 + $0x4c] sm:$0xf]
        %v4398 = vld [vmem:[%s4 + $0x50] sm:$0xf]
        %v4399 = vld [vmem:[%s4 + $0x54] sm:$0xf]
        %v4400 = vld [vmem:[%s4 + $0x58] sm:$0xf]
        %v4401 = vld [vmem:[%s4 + $0x5c] sm:$0xf]
        %v4402 = vld [vmem:[%s4 + $0x60] sm:$0xf]
        %v4403 = vld [vmem:[%s4 + $0x64] sm:$0xf]
        %v4404 = vld [vmem:[%s4 + $0x68] sm:$0xf]
        %v4405 = vld [vmem:[%s4 + $0x6c] sm:$0xf]
        %v4406 = vld [vmem:[%s4 + $0x70] sm:$0xf]
        %v4407 = vld [vmem:[%s4 + $0x74] sm:$0xf]
        %v4408 = vld [vmem:[%s4 + $0x78] sm:$0xf]
        %v4409 = vld [vmem:[%s4 + $0x7c] sm:$0xf]
        %v4410 = vld [vmem:[%s4 + $0x80] sm:$0xf]
        %v4411 = vld [vmem:[%s4 + $0x84] sm:$0xf]
        %v4412 = vld [vmem:[%s4 + $0x88] sm:$0xf]
        %v4413 = vld [vmem:[%s4 + $0x8c] sm:$0xf]
        %v4414 = vld [vmem:[%s4 + $0x90] sm:$0xf]
        %v4415 = vld [vmem:[%s4 + $0x94] sm:$0xf]
        %v4416 = vld [vmem:[%s4 + $0x98] sm:$0xf]
        %v4417 = vld [vmem:[%s4 + $0x9c] sm:$0xf]
        %v4418 = vld [vmem:[%s4 + $0xa0] sm:$0xf]
        %v4419 = vld [vmem:[%s4 + $0xa4] sm:$0xf]
        %v4420 = vld [vmem:[%s4 + $0xa8] sm:$0xf]
        %v4421 = vld [vmem:[%s4 + $0xac] sm:$0xf]
        %v4422 = vld [vmem:[%s4 + $0xb0] sm:$0xf]
        %v4423 = vld [vmem:[%s4 + $0xb4] sm:$0xf]
        %v4424 = vld [vmem:[%s4 + $0xb8] sm:$0xf]
        %v4425 = vld [vmem:[%s4 + $0xbc] sm:$0xf]
        %v4426 = vld [vmem:[%s4 + $0xc0] sm:$0xf]
        %v4427 = vld [vmem:[%s4 + $0xc4] sm:$0xf]
        %v4428 = vld [vmem:[%s4 + $0xc8] sm:$0xf]
        %v4429 = vld [vmem:[%s4 + $0xcc] sm:$0xf]
        %v4430 = vld [vmem:[%s4 + $0xd0] sm:$0xf]
        %v4431 = vld [vmem:[%s4 + $0xd4] sm:$0xf]
        %v4432 = vld [vmem:[%s4 + $0xd8] sm:$0xf]
        %v4433 = vld [vmem:[%s4 + $0xdc] sm:$0xf]
        %v4434 = vld [vmem:[%s4 + $0xe0] sm:$0xf]
        %v4435 = vld [vmem:[%s4 + $0xe4] sm:$0xf]
        %v4436 = vld [vmem:[%s4 + $0xe8] sm:$0xf]
        %v4437 = vld [vmem:[%s4 + $0xec] sm:$0xf]
        %v4438 = vld [vmem:[%s4 + $0xf0] sm:$0xf]
        %v4439 = vld [vmem:[%s4 + $0xf4] sm:$0xf]
        %v4440 = vld [vmem:[%s4 + $0xf8] sm:$0xf]
        %v4441 = vld [vmem:[%s4 + $0xfc] sm:$0xf]
        %v4442 = vld [vmem:[%s4 + $0x100] sm:$0xf]
        %v4443 = vld [vmem:[%s4 + $0x104] sm:$0xf]
        %v4444 = vld [vmem:[%s4 + $0x108] sm:$0xf]
        %v4445 = vld [vmem:[%s4 + $0x10c] sm:$0xf]
        %v4446 = vld [vmem:[%s4 + $0x110] sm:$0xf]
        %v4447 = vld [vmem:[%s4 + $0x114] sm:$0xf]
        %v4448 = vld [vmem:[%s4 + $0x118] sm:$0xf]
        %v4449 = vld [vmem:[%s4 + $0x11c] sm:$0xf]
        %v4450 = vld [vmem:[%s4 + $0x120] sm:$0xf]
        %v4451 = vld [vmem:[%s4 + $0x124] sm:$0xf]
        %v4452 = vld [vmem:[%s4 + $0x128] sm:$0xf]
        %v4453 = vld [vmem:[%s4 + $0x12c] sm:$0xf]
        %v4454 = vld [vmem:[%s4 + $0x130] sm:$0xf]
        %v4455 = vld [vmem:[%s4 + $0x134] sm:$0xf]
        %v4456 = vld [vmem:[%s4 + $0x138] sm:$0xf]
        %v4457 = vld [vmem:[%s4 + $0x13c] sm:$0xf]
        %v4458 = vld [vmem:[%s4 + $0x140] sm:$0xf]
        %v4459 = vld [vmem:[%s4 + $0x144] sm:$0xf]
        %v4460 = vld [vmem:[%s4 + $0x148] sm:$0xf]
        %v4461 = vld [vmem:[%s4 + $0x14c] sm:$0xf]
        %v4462 = vld [vmem:[%s4 + $0x150] sm:$0xf]
        %v4463 = vld [vmem:[%s4 + $0x154] sm:$0xf]
        %v4464 = vld [vmem:[%s4 + $0x158] sm:$0xf]
        %v4465 = vld [vmem:[%s4 + $0x15c] sm:$0xf]
        %v4466 = vld [vmem:[%s4 + $0x160] sm:$0xf]
        %v4467 = vld [vmem:[%s4 + $0x164] sm:$0xf]
        %v4468 = vld [vmem:[%s4 + $0x168] sm:$0xf]
        %v4469 = vld [vmem:[%s4 + $0x16c] sm:$0xf]
        %v4470 = vld [vmem:[%s4 + $0x170] sm:$0xf]
        %v4471 = vld [vmem:[%s4 + $0x174] sm:$0xf]
        %v4472 = vld [vmem:[%s4 + $0x178] sm:$0xf]
        %v4473 = vld [vmem:[%s4 + $0x17c] sm:$0xf]
        %v4474 = vld [vmem:[%s4 + $0x180] sm:$0xf]
        %v4475 = vld [vmem:[%s4 + $0x184] sm:$0xf]
        %v4476 = vld [vmem:[%s4 + $0x188] sm:$0xf]
        %v4477 = vld [vmem:[%s4 + $0x18c] sm:$0xf]
        %v4478 = vld [vmem:[%s4 + $0x190] sm:$0xf]
        %v4479 = vld [vmem:[%s4 + $0x194] sm:$0xf]
        %v4480 = vld [vmem:[%s4 + $0x198] sm:$0xf]
        %v4481 = vld [vmem:[%s4 + $0x19c] sm:$0xf]
        %v4482 = vld [vmem:[%s4 + $0x1a0] sm:$0xf]
        %v4483 = vld [vmem:[%s4 + $0x1a4] sm:$0xf]
        %v4484 = vld [vmem:[%s4 + $0x1a8] sm:$0xf]
        %v4485 = vld [vmem:[%s4 + $0x1ac] sm:$0xf]
        %v4490 = vunpack.c.l.b16 %v4374
        %v4491 = vunpack.c.h.b16 %v4374
        %v4492 = vunpack.c.l.b16 %v4375
        %v4493 = vunpack.c.h.b16 %v4375
        %v4494 = vunpack.c.l.b16 %v4376
        %v4495 = vunpack.c.h.b16 %v4376
        %v4496 = vunpack.c.l.b16 %v4377
        %v4497 = vpack.c.b16 %v4490, %v4490
        %v4498 = vpack.c.b16 %v4491, %v4491
        %v4499 = vpack.c.b16 %v4492, %v4492
        %v4500 = vpack.c.b16 %v4493, %v4493
        %v4501 = vpack.c.b16 %v4494, %v4494
        %v4502 = vpack.c.b16 %v4495, %v4495
        %v4503 = vpack.c.b16 %v4496, %v4496
        %v4618 = vunpack.c.l.b16 %v4378
        %v4619 = vunpack.c.l.b16 %v4379
        %v4620 = vunpack.c.l.b16 %v4380
        %v4621 = vunpack.c.l.b16 %v4381
        %v4622 = vunpack.c.l.b16 %v4382
        %v4623 = vunpack.c.l.b16 %v4383
        %v4624 = vunpack.c.l.b16 %v4384
        %v4625 = vunpack.c.l.b16 %v4385
        %v4626 = vunpack.c.l.b16 %v4386
        %v4627 = vunpack.c.l.b16 %v4387
        %v4628 = vunpack.c.l.b16 %v4388
        %v4629 = vunpack.c.l.b16 %v4389
        %v4630 = vunpack.c.l.b16 %v4390
        %v4631 = vunpack.c.l.b16 %v4391
        %v4632 = vunpack.c.l.b16 %v4392
        %v4633 = vunpack.c.l.b16 %v4393
        %v4634 = vunpack.c.l.b16 %v4394
        %v4635 = vunpack.c.l.b16 %v4395
        %v4636 = vunpack.c.l.b16 %v4396
        %v4637 = vunpack.c.l.b16 %v4397
        %v4638 = vunpack.c.l.b16 %v4398
        %v4639 = vunpack.c.l.b16 %v4399
        %v4640 = vunpack.c.l.b16 %v4400
        %v4641 = vunpack.c.l.b16 %v4401
        %v4642 = vunpack.c.l.b16 %v4402
        %v4643 = vunpack.c.l.b16 %v4403
        %v4644 = vunpack.c.l.b16 %v4404
        %v4645 = vunpack.c.l.b16 %v4405
        %v4646 = vunpack.c.l.b16 %v4406
        %v4647 = vunpack.c.l.b16 %v4407
        %v4648 = vunpack.c.l.b16 %v4408
        %v4649 = vunpack.c.l.b16 %v4409
        %v4650 = vunpack.c.l.b16 %v4410
        %v4651 = vunpack.c.l.b16 %v4411
        %v4652 = vunpack.c.l.b16 %v4412
        %v4653 = vunpack.c.l.b16 %v4413
        %v4654 = vunpack.c.l.b16 %v4414
        %v4655 = vunpack.c.l.b16 %v4415
        %v4656 = vunpack.c.l.b16 %v4416
        %v4657 = vunpack.c.l.b16 %v4417
        %v4658 = vunpack.c.l.b16 %v4418
        %v4659 = vunpack.c.l.b16 %v4419
        %v4660 = vunpack.c.l.b16 %v4420
        %v4661 = vunpack.c.l.b16 %v4421
        %v4662 = vunpack.c.l.b16 %v4422
        %v4663 = vunpack.c.l.b16 %v4423
        %v4664 = vunpack.c.l.b16 %v4424
        %v4665 = vunpack.c.l.b16 %v4425
        %v4666 = vunpack.c.l.b16 %v4426
        %v4667 = vunpack.c.l.b16 %v4427
        %v4668 = vunpack.c.l.b16 %v4428
        %v4669 = vunpack.c.l.b16 %v4429
        %v4670 = vunpack.c.l.b16 %v4430
        %v4671 = vunpack.c.l.b16 %v4431
        %v4672 = vunpack.c.l.b16 %v4432
        %v4673 = vunpack.c.l.b16 %v4433
        %v4674 = vunpack.c.l.b16 %v4434
        %v4675 = vunpack.c.l.b16 %v4435
        %v4676 = vunpack.c.l.b16 %v4436
        %v4677 = vunpack.c.l.b16 %v4437
        %v4678 = vunpack.c.l.b16 %v4438
        %v4679 = vunpack.c.l.b16 %v4439
        %v4680 = vunpack.c.l.b16 %v4440
        %v4681 = vunpack.c.l.b16 %v4441
        %v4682 = vunpack.c.l.b16 %v4442
        %v4683 = vunpack.c.l.b16 %v4443
        %v4684 = vunpack.c.l.b16 %v4444
        %v4685 = vunpack.c.l.b16 %v4445
        %v4686 = vunpack.c.l.b16 %v4446
        %v4687 = vunpack.c.l.b16 %v4447
        %v4688 = vunpack.c.l.b16 %v4448
        %v4689 = vunpack.c.l.b16 %v4449
        %v4690 = vunpack.c.l.b16 %v4450
        %v4691 = vunpack.c.l.b16 %v4451
        %v4692 = vunpack.c.l.b16 %v4452
        %v4693 = vunpack.c.l.b16 %v4453
        %v4694 = vunpack.c.l.b16 %v4454
        %v4695 = vunpack.c.l.b16 %v4455
        %v4696 = vunpack.c.l.b16 %v4456
        %v4697 = vunpack.c.l.b16 %v4457
        %v4698 = vunpack.c.l.b16 %v4458
        %v4699 = vunpack.c.l.b16 %v4459
        %v4700 = vunpack.c.l.b16 %v4460
        %v4701 = vunpack.c.l.b16 %v4461
        %v4702 = vunpack.c.l.b16 %v4462
        %v4703 = vunpack.c.l.b16 %v4463
        %v4704 = vunpack.c.l.b16 %v4464
        %v4705 = vunpack.c.l.b16 %v4465
        %v4706 = vunpack.c.l.b16 %v4466
        %v4707 = vunpack.c.l.b16 %v4467
        %v4708 = vunpack.c.l.b16 %v4468
        %v4709 = vunpack.c.l.b16 %v4469
        %v4710 = vunpack.c.l.b16 %v4470
        %v4711 = vunpack.c.l.b16 %v4471
        %v4712 = vunpack.c.l.b16 %v4472
        %v4713 = vunpack.c.l.b16 %v4473
        %v4714 = vunpack.c.l.b16 %v4474
        %v4715 = vunpack.c.l.b16 %v4475
        %v4716 = vunpack.c.l.b16 %v4476
        %v4717 = vunpack.c.l.b16 %v4477
        %v4718 = vunpack.c.l.b16 %v4478
        %v4719 = vunpack.c.l.b16 %v4479
        %v4720 = vunpack.c.l.b16 %v4480
        %v4721 = vunpack.c.l.b16 %v4481
        %v4722 = vunpack.c.l.b16 %v4482
        %v4723 = vunpack.c.l.b16 %v4483
        %v4724 = vunpack.c.l.b16 %v4484
        %v4725 = vunpack.c.l.b16 %v4485
        %v4726 = vpack.c.b16 %v4619, %v4618
        %v4727 = vpack.c.b16 %v4621, %v4620
        %v4728 = vpack.c.b16 %v4623, %v4622
        %v4729 = vpack.c.b16 %v4625, %v4624
        %v4730 = vpack.c.b16 %v4627, %v4626
        %v4731 = vpack.c.b16 %v4629, %v4628
        %v4732 = vpack.c.b16 %v4631, %v4630
        %v4733 = vpack.c.b16 %v4633, %v4632
        %v4734 = vpack.c.b16 %v4635, %v4634
        %v4735 = vpack.c.b16 %v4637, %v4636
        %v4736 = vpack.c.b16 %v4639, %v4638
        %v4737 = vpack.c.b16 %v4641, %v4640
        %v4738 = vpack.c.b16 %v4643, %v4642
        %v4739 = vpack.c.b16 %v4645, %v4644
        %v4740 = vpack.c.b16 %v4647, %v4646
        %v4741 = vpack.c.b16 %v4649, %v4648
        %v4742 = vpack.c.b16 %v4651, %v4650
        %v4743 = vpack.c.b16 %v4653, %v4652
        %v4744 = vpack.c.b16 %v4655, %v4654
        %v4745 = vpack.c.b16 %v4657, %v4656
        %v4746 = vpack.c.b16 %v4659, %v4658
        %v4747 = vpack.c.b16 %v4661, %v4660
        %v4748 = vpack.c.b16 %v4663, %v4662
        %v4749 = vpack.c.b16 %v4665, %v4664
        %v4750 = vpack.c.b16 %v4667, %v4666
        %v4751 = vpack.c.b16 %v4669, %v4668
        %v4752 = vpack.c.b16 %v4671, %v4670
        %v4753 = vpack.c.b16 %v4673, %v4672
        %v4754 = vpack.c.b16 %v4675, %v4674
        %v4755 = vpack.c.b16 %v4677, %v4676
        %v4756 = vpack.c.b16 %v4679, %v4678
        %v4757 = vpack.c.b16 %v4681, %v4680
        %v4758 = vpack.c.b16 %v4683, %v4682
        %v4759 = vpack.c.b16 %v4685, %v4684
        %v4760 = vpack.c.b16 %v4687, %v4686
        %v4761 = vpack.c.b16 %v4689, %v4688
        %v4762 = vpack.c.b16 %v4691, %v4690
        %v4763 = vpack.c.b16 %v4693, %v4692
        %v4764 = vpack.c.b16 %v4695, %v4694
        %v4765 = vpack.c.b16 %v4697, %v4696
        %v4766 = vpack.c.b16 %v4699, %v4698
        %v4767 = vpack.c.b16 %v4701, %v4700
        %v4768 = vpack.c.b16 %v4703, %v4702
        %v4769 = vpack.c.b16 %v4705, %v4704
        %v4770 = vpack.c.b16 %v4707, %v4706
        %v4771 = vpack.c.b16 %v4709, %v4708
        %v4772 = vpack.c.b16 %v4711, %v4710
        %v4773 = vpack.c.b16 %v4713, %v4712
        %v4774 = vpack.c.b16 %v4715, %v4714
        %v4775 = vpack.c.b16 %v4717, %v4716
        %v4776 = vpack.c.b16 %v4719, %v4718
        %v4777 = vpack.c.b16 %v4721, %v4720
        %v4778 = vpack.c.b16 %v4723, %v4722
        %v4779 = vpack.c.b16 %v4725, %v4724
        %v4835 = vsel %vm1050, %v4503, 0
        %4837 = vmatpush.bf16.msra.mxu0 %v4733
        %4838 = vmatpush.bf16.msra.mxu0 %v4732
        %4839 = vmatpush.bf16.msra.mxu0 %v4731
        %4840 = vmatpush.bf16.msra.mxu0 %v4730
        %4841 = vmatpush.bf16.msra.mxu0 %v4729
        %4842 = vmatpush.bf16.msra.mxu0 %v4728
        %4843 = vmatpush.bf16.msra.mxu0 %v4727
        %4844 = vmatpush.bf16.msra.mxu0 %v4726
        %4845 = vmatmul.bf16.gmra.mxu0 %v4497
        %v4846 = vpop.f32.mrf.mxu0
        %v4847 = vadd.f32 0.0, %v4846
        %v4848 = vpop.f32.mrf.mxu0
        %4849 = vdwg.mxu0
        %4850 = vmatpush.bf16.msra.mxu0 %v4741
        %4851 = vmatpush.bf16.msra.mxu0 %v4740
        %4852 = vmatpush.bf16.msra.mxu0 %v4739
        %4853 = vmatpush.bf16.msra.mxu0 %v4738
        %4854 = vmatpush.bf16.msra.mxu0 %v4737
        %4855 = vmatpush.bf16.msra.mxu0 %v4736
        %4856 = vmatpush.bf16.msra.mxu0 %v4735
        %4857 = vmatpush.bf16.msra.mxu0 %v4734
        %4858 = vmatmul.bf16.gmra.mxu0 %v4498
        %v4859 = vpop.f32.mrf.mxu0
        %v4860 = vadd.f32 %v4847, %v4859
        %v4861 = vpop.f32.mrf.mxu0
        %4862 = vdwg.mxu0
        %4863 = vmatpush.bf16.msra.mxu0 %v4749
        %4864 = vmatpush.bf16.msra.mxu0 %v4748
        %4865 = vmatpush.bf16.msra.mxu0 %v4747
        %4866 = vmatpush.bf16.msra.mxu0 %v4746
        %4867 = vmatpush.bf16.msra.mxu0 %v4745
        %4868 = vmatpush.bf16.msra.mxu0 %v4744
        %4869 = vmatpush.bf16.msra.mxu0 %v4743
        %4870 = vmatpush.bf16.msra.mxu0 %v4742
        %4871 = vmatmul.bf16.gmra.mxu0 %v4499
        %v4872 = vpop.f32.mrf.mxu0
        %v4873 = vadd.f32 %v4860, %v4872
        %v4874 = vpop.f32.mrf.mxu0
        %4875 = vdwg.mxu0
        %4876 = vmatpush.bf16.msra.mxu0 %v4757
        %4877 = vmatpush.bf16.msra.mxu0 %v4756
        %4878 = vmatpush.bf16.msra.mxu0 %v4755
        %4879 = vmatpush.bf16.msra.mxu0 %v4754
        %4880 = vmatpush.bf16.msra.mxu0 %v4753
        %4881 = vmatpush.bf16.msra.mxu0 %v4752
        %4882 = vmatpush.bf16.msra.mxu0 %v4751
        %4883 = vmatpush.bf16.msra.mxu0 %v4750
        %4884 = vmatmul.bf16.gmra.mxu0 %v4500
        %v4885 = vpop.f32.mrf.mxu0
        %v4886 = vadd.f32 %v4873, %v4885
        %v4887 = vpop.f32.mrf.mxu0
        %4888 = vdwg.mxu0
        %4889 = vmatpush.bf16.msra.mxu0 %v4765
        %4890 = vmatpush.bf16.msra.mxu0 %v4764
        %4891 = vmatpush.bf16.msra.mxu0 %v4763
        %4892 = vmatpush.bf16.msra.mxu0 %v4762
        %4893 = vmatpush.bf16.msra.mxu0 %v4761
        %4894 = vmatpush.bf16.msra.mxu0 %v4760
        %4895 = vmatpush.bf16.msra.mxu0 %v4759
        %4896 = vmatpush.bf16.msra.mxu0 %v4758
        %4897 = vmatmul.bf16.gmra.mxu0 %v4501
        %v4898 = vpop.f32.mrf.mxu0
        %v4899 = vadd.f32 %v4886, %v4898
        %v4900 = vpop.f32.mrf.mxu0
        %4901 = vdwg.mxu0
        %4902 = vmatpush.bf16.msra.mxu0 %v4773
        %4903 = vmatpush.bf16.msra.mxu0 %v4772
        %4904 = vmatpush.bf16.msra.mxu0 %v4771
        %4905 = vmatpush.bf16.msra.mxu0 %v4770
        %4906 = vmatpush.bf16.msra.mxu0 %v4769
        %4907 = vmatpush.bf16.msra.mxu0 %v4768
        %4908 = vmatpush.bf16.msra.mxu0 %v4767
        %4909 = vmatpush.bf16.msra.mxu0 %v4766
        %4910 = vmatmul.bf16.gmra.mxu0 %v4502
        %v4911 = vpop.f32.mrf.mxu0
        %v4912 = vadd.f32 %v4899, %v4911
        %v4913 = vpop.f32.mrf.mxu0
        %4914 = vdwg.mxu0
        %4915 = vmatpush.bf16.msra.mxu0 0
        %4916 = vmatpush.bf16.msra.mxu0 0
        %4917 = vmatpush.bf16.msra.mxu0 %v4779
        %4918 = vmatpush.bf16.msra.mxu0 %v4778
        %4919 = vmatpush.bf16.msra.mxu0 %v4777
        %4920 = vmatpush.bf16.msra.mxu0 %v4776
        %4921 = vmatpush.bf16.msra.mxu0 %v4775
        %4922 = vmatpush.bf16.msra.mxu0 %v4774
        %4923 = vmatmul.bf16.gmra.mxu0 %v4835
        %v4924 = vpop.f32.mrf.mxu0
        %v4925 = vadd.f32 %v4912, %v4924
        %v4926 = vpop.f32.mrf.mxu0
        %4927 = vdwg.mxu0
        %v4928 = vld [vmem:[%s5 + $0x6] sm:$0x1]
        %v4929 = vld [vmem:[%s5 + $0x7] sm:$0x1]
        %v4930 = vsel %vm377, %v4925, 0.0
        %v4931 = vrot.slane %v4930, 4
        %v4932 = vadd.f32 %v4930, %v4931
        %v4933 = vrot.slane %v4932, 2
        %v4934 = vadd.f32 %v4932, %v4933
        %v4935 = vrot.slane %v4934, 1
        %v4936 = vadd.f32 %v4934, %v4935
        %v4937 = vmul.f32 %v4936, %v4193
        %v4938 = vsub.f32 %v4925, %v4937
        %v4939 = vmul.f32 %v4938, %v4938
        %v4940 = vsel %vm377, %v4939, 0.0
        %v4941 = vrot.slane %v4940, 4
        %v4942 = vadd.f32 %v4940, %v4941
        %v4943 = vrot.slane %v4942, 2
        %v4944 = vadd.f32 %v4942, %v4943
        %v4945 = vrot.slane %v4944, 1
        %v4946 = vadd.f32 %v4944, %v4945
        %v4947 = vmul.f32 %v4946, %v4193
        %v4948 = vadd.f32 %v4947, 1e-05
        %v4949 = vrsqrt.pop %v4948
        %v4950 = vmul.f32 %v4949, %v4948
        %v4951 = vmul.f32 %v4950, %v4949
        %v4952 = vmul.f32 0.5, %v4951
        %v4953 = vsub.f32 1.5, %v4952
        %v4954 = vmul.f32 %v4949, %v4953
        %vm4955 = vweird.f32 %v4948
        %vm4956 = vweird.f32 %v4949
        %vm4957 = vmor %vm4955, %vm4956
        %v4958 = vsel %vm4957, %v4949, %v4954
        %v4959 = vmul.f32 %v4928, %v4958
        %v4960 = vmul.f32 %v4937, %v4959
        %v4961 = vsub.f32 %v4929, %v4960
        %v4962 = vperm.slane %v4959, 0
        %v4963 = vmul.f32 %v4925, %v4962
        %v4964 = vperm.slane %v4961, 0
        %v4965 = vadd.f32 %v4963, %v4964
        %vm4966 = vcmp.ge.f32.partialorder %v4965, 0.0
        %v4967 = vmul.f32 %v4965, 0.1
        %v4968 = vsel %vm4966, %v4965, %v4967
        %4969 = vst.msk [vmem:[%s363] sm:$0xff] %vm377, %v4968
        %s4970 = sand.u32 %s230, 1
        %s4971 = scalar_lea.sflag [#allocation6], %s4970
        %s4972 = sand.u32 %s230, 1
        %s4973 = smul.addr %s4972, 64
        %s4974 = scalar_lea.vmem [#allocation5], %s4973
        %s4975 = sand.u32 %s256, 1
        %s4976 = scalar_lea.sflag [#allocation8], %s4975
        %s4977 = sand.u32 %s256, 1
        %s4978 = smul.addr %s4977, 8
        %s4979 = scalar_lea.vmem [#allocation7], %s4978
        // Predicated region
        $region57: #{deep_encoder_forward.1} parent=55 // pred_check
          %p4980 = pneg %p240
        $region58: #{deep_encoder_forward.1} parent=55 // pred_check_branch
          %4982 = sbr.rel (%p4980) target = $region60
        $region59: #{deep_encoder_forward.1} parent=55 // pred_region
          %4984 = vsyncadd %s4971, 0
          %s4985 = smul.addr %s28, 8
          %s4986 = smul.addr %s4985, 8
          %s4987 = scalar_lea.hbm %s9, %s4986
          %s4988 = sshll.u32 %s4974, 4
          %s4989 = int_to_ptr.vmem [resolvable:$true] %s4988
          %s4990 = sshll.u32 %s4987, 4
          %s4991 = int_to_ptr.hbm [resolvable:$true] %s4990
          %4996 = dma.vmem_to_hbm [thread:$0]  %s4989, 1024, %s4991, %s4971, 128, 128, 8
        $region60: #{deep_encoder_forward.1} parent=55 // pred_fallthru
          _
        // Predicated region
        $region61: #{deep_encoder_forward.1} parent=55 // pred_check
          %p4997 = pneg %p266
        $region62: #{deep_encoder_forward.1} parent=55 // pred_check_branch
          %4999 = sbr.rel (%p4997) target = $region64
        $region63: #{deep_encoder_forward.1} parent=55 // pred_region
          %5001 = vsyncadd %s4976, 0
          %s5002 = smul.addr %s28, 8
          %s5003 = scalar_lea.hbm %s10, %s5002
          %s5005 = sshll.u32 %s4979, 4
          %s5006 = int_to_ptr.vmem [resolvable:$true] %s5005
          %s5007 = sshll.u32 %s5003, 4
          %s5008 = int_to_ptr.hbm [resolvable:$true] %s5007
          %5010 = dma.vmem_to_hbm [thread:$0]  %s5006, 128, %s5008, %s4976
        $region64: #{deep_encoder_forward.1} parent=55 // pred_fallthru
          _
      $region56: #{deep_encoder_forward.1} parent=5 // pred_fallthru
        _
      %p5011 = scmp.le.s32.totalorder 2, %s23
      // Predicated region
      $region65: #{deep_encoder_forward.1} parent=5 // pred_check
        %p5012 = pneg %p5011
      $region66: #{deep_encoder_forward.1} parent=5 // pred_check_branch
        %5014 = sbr.rel (%p5012) target = $region68
      $region67: #{deep_encoder_forward.1} parent=5 // pred_region
        %s5015 = ssub.s32 %s23, 2
        // Predicated region
        $region69: #{deep_encoder_forward.1} parent=67 // pred_check
          %p5016 = pneg %p246
        $region70: #{deep_encoder_forward.1} parent=67 // pred_check_branch
          %5018 = sbr.rel (%p5016) target = $region72
        $region71: #{deep_encoder_forward.1} parent=67 // pred_region
          %s5019 = sand.u32 %s231, 1
          %s5020 = scalar_lea.sflag [#allocation6], %s5019
          %s5021 = sand.u32 %s231, 1
          %s5022 = smul.addr %s5021, 64
          %s5023 = scalar_lea.vmem [#allocation5], %s5022
          %5025 = dma.done %s5020, 1024
        $region72: #{deep_encoder_forward.1} parent=67 // pred_fallthru
          _
        // Predicated region
        $region73: #{deep_encoder_forward.1} parent=67 // pred_check
          %p5026 = pneg %p272
        $region74: #{deep_encoder_forward.1} parent=67 // pred_check_branch
          %5028 = sbr.rel (%p5026) target = $region76
        $region75: #{deep_encoder_forward.1} parent=67 // pred_region
          %s5029 = sand.u32 %s257, 1
          %s5030 = scalar_lea.sflag [#allocation8], %s5029
          %s5031 = sand.u32 %s257, 1
          %s5032 = smul.addr %s5031, 8
          %s5033 = scalar_lea.vmem [#allocation7], %s5032
          %5035 = dma.done %s5030, 128
        $region76: #{deep_encoder_forward.1} parent=67 // pred_fallthru
          _
      $region68: #{deep_encoder_forward.1} parent=5 // pred_fallthru
        _
    $region6: #{deep_encoder_forward.1} parent=1 // loop_footer
      %s27 = sadd.s32 1, %s23
    $region7: #{deep_encoder_forward.1} parent=1 // loop_footer_branch
      %22 = sbr.rel target = $region3
    $region8: #{deep_encoder_forward.1} parent=1 // loop_exit
      _
    %5036 = vsyncpa [#allocation6], 1
    %s5037 = scalar_lea.sflag [#allocation6], 1
    %5038 = vsyncpa %s5037, 1
    %5039 = vsyncpa [#allocation8], 1
    %s5040 = scalar_lea.sflag [#allocation8], 1
    %5041 = vsyncpa %s5040, 1

</llo_original>
